<compile_context>
chip_gen: v6e
topology: v6e:2x2x1
jax: 0.10.0
libtpu: 0.0.40
codegen_flags: <defaults>
</compile_context>

<pallas_src>
import numpy as np
import jax
import jax.numpy as jnp
from jax import lax
from jax.experimental import pallas as pl
from jax.experimental.pallas import tpu as pltpu

# ---------------- synthetic OPT-like config ----------------
VOCAB = 256
HIDDEN = 128
N_HEADS = 4
HEAD_DIM = HIDDEN // N_HEADS
FFN = 256
N_LAYERS = 2
MAX_POS = 64

# synthetic tokenizer ids (stand-ins for the HF special tokens)
PAD_ID, EOS_ID, HIST_ID, CANDI_ID, USERREP_ID = 0, 1, 2, 3, 4


# ---------------- fused decoder + lm_head + CE Pallas kernel ----------------
def _fused_lm_kernel(
    # full (grid-invariant) inputs
    x_ref,      # (B, Tp, H)  f32  inputs_embeds (+pad rows)
    pos_ref,    # (Tp, H)     f32  absolute positional embeddings
    bias_ref,   # (M, BG)     f32  additive mask: 0 valid / -1e9 masked
    rep_ref,    # (BG, M)     bf16 (batch,head)-replication one-hot matrix
    hmask_ref,  # (BG, H)     f32  head-column mask for the packed K/V rows
    gmt_ref,    # (G, BG)     f32  group (b,head) indicator, G = B*NH
    lbl_ref,    # (M, 1)      i32  pre-shifted labels, -100 = ignore
    # per-layer (streamed) weights
    ln1g_ref, ln1b_ref,       # (1, 1, H) f32
    wqkv_ref,                 # (1, H, 3H) bf16   (wq*scale | wk | wv)
    bqkv_ref,                 # (1, 1, 3H) f32
    wo_ref,                   # (1, H, H)  bf16
    bo_ref,                   # (1, 1, H)  f32
    ln2g_ref, ln2b_ref,       # (1, 1, H)  f32
    w1_ref,                   # (1, H, F)  bf16
    b1_ref,                   # (1, 1, F)  f32
    w2_ref,                   # (1, F, H)  bf16
    b2_ref,                   # (1, 1, H)  f32
    # final / tied head
    lnfg_ref, lnfb_ref,       # (1, H) f32
    embt_ref,                 # (H, V) bf16  tied lm_head (pre-transposed)
    # output + scratch
    loss_ref,                 # (1, 1) f32
    xs_ref,                   # (M, H) f32 VMEM residual stream (persists over grid)
):
    l = pl.program_id(0)
    B, Tp, H = x_ref.shape
    M = B * Tp
    bf16 = jnp.bfloat16
    f32 = jnp.float32

    def layer_norm(x2d, g, b):
        mu = jnp.mean(x2d, axis=-1, keepdims=True)
        var = jnp.mean((x2d - mu) ** 2, axis=-1, keepdims=True)
        return (x2d - mu) * lax.rsqrt(var + 1e-5) * g + b

    @pl.when(l == 0)
    def _():
        # pos-emb add fused into the first grid step; residual stream lives in VMEM.
        xs_ref[...] = (x_ref[...] + pos_ref[...][None, :, :]).reshape(M, H)
        loss_ref[...] = jnp.zeros_like(loss_ref)

    x = xs_ref[...]                      # (M, H) f32
    bias = bias_ref[...]                 # (M, BG)
    rep = rep_ref[...]                   # (BG, M) bf16
    hmask = hmask_ref[...]               # (BG, H)
    gmt = gmt_ref[...]                   # (G, BG)

    # ---- attention block (block-diagonal over batch & head) ----
    h = layer_norm(x, ln1g_ref[0], ln1b_ref[0])
    qkv = jnp.dot(h.astype(bf16), wqkv_ref[0], preferred_element_type=f32) + bqkv_ref[0]
    q = qkv[:, 0:H]
    k = qkv[:, H:2 * H]
    v = qkv[:, 2 * H:3 * H]

    # Replicate K/V rows once per head (one-hot matmul) and zero the columns
    # outside that head -> block-diagonal operands, no concats / lane slices.
    k_big = (jnp.dot(rep, k.astype(bf16), preferred_element_type=f32) * hmask).astype(bf16)
    v_big = (jnp.dot(rep, v.astype(bf16), preferred_element_type=f32) * hmask).astype(bf16)

    # All (batch, head) scores in one lane-dense matmul; scale pre-folded into wq.
    s = lax.dot_general(q.astype(bf16), k_big, (((1,), (1,)), ((), ())),
                        preferred_element_type=f32) + bias            # (M, BG)
    m = jnp.max(s, axis=-1, keepdims=True)     # row-global max (upper bound per group)
    e = jnp.exp(s - m)                         # masked entries underflow to exactly 0
    # per-(batch, head) softmax denominator via group-indicator matmuls (no reshapes)
    gsum = lax.dot_general(e, gmt, (((1,), (1,)), ((), ())),
                           preferred_element_type=f32)                 # (M, G)
    inv = pl.reciprocal(jnp.maximum(gsum, 1e-20), approx=True)         # EUP, not VPU
    inv_b = jnp.dot(inv, gmt, preferred_element_type=f32)              # (M, BG)
    p = e * inv_b
    o = lax.dot_general(p.astype(bf16), v_big, (((1,), (0,)), ((), ())),
                        preferred_element_type=f32)                    # (M, H) lane-dense

    o = jnp.dot(o.astype(bf16), wo_ref[0], preferred_element_type=f32) + bo_ref[0]
    x = x + o                                                          # residual

    # ---- FFN block (intermediate never leaves VMEM) ----
    h = layer_norm(x, ln2g_ref[0], ln2b_ref[0])
    f = jnp.dot(h.astype(bf16), w1_ref[0], preferred_element_type=f32) + b1_ref[0]
    f = jnp.maximum(f, 0.0)
    f = jnp.dot(f.astype(bf16), w2_ref[0], preferred_element_type=f32) + b2_ref[0]
    x = x + f                                                          # residual
    xs_ref[...] = x

    # ---- final LN + tied lm_head + masked mean cross-entropy (last layer only) ----
    @pl.when(l == pl.num_programs(0) - 1)
    def _():
        hf = layer_norm(x, lnfg_ref[...], lnfb_ref[...])
        logits = jnp.dot(hf.astype(bf16), embt_ref[...], preferred_element_type=f32)
        lbl = lbl_ref[...]                                             # (M, 1) i32
        mx = jnp.max(logits, axis=-1, keepdims=True)
        lse = mx + jnp.log(jnp.sum(jnp.exp(logits - mx), axis=-1, keepdims=True))
        vcol = lax.broadcasted_iota(jnp.int32, logits.shape, 1)
        onehot = (vcol == lbl).astype(f32)
        tgt = jnp.sum(logits * onehot, axis=-1, keepdims=True)
        valid = (lbl != -100).astype(f32)
        loss_sum = jnp.sum((lse - tgt) * valid, keepdims=True)         # (1, 1)
        cnt = jnp.sum(valid, keepdims=True)                            # (1, 1)
        loss_ref[...] = loss_sum / jnp.maximum(cnt, 1.0)               # 0/0 guard


def _full_spec(a):
    nd = a.ndim
    return pl.BlockSpec(a.shape, lambda l, nd=nd: (0,) * nd)


def _layer_spec(a):
    blk = (1,) + a.shape[1:]
    nd = a.ndim
    return pl.BlockSpec(blk, lambda l, nd=nd: (l,) + (0,) * (nd - 1))


def llm_causal_lm_loss(packed, inputs_embeds_np, attention_mask_np, targets_np):
    """Causal LM with labels (HF-style: shift inside, ignore_index=-100, mean)."""
    B, T, H = inputs_embeds_np.shape
    Tp = max(8, ((T + 7) // 8) * 8)           # pad seq to a sublane multiple
    assert Tp <= MAX_POS
    M = B * Tp
    BG = B * N_HEADS * Tp                      # packed (batch, head, key) lane axis
    G = B * N_HEADS

    x_np = np.zeros((B, Tp, H), np.float32)
    x_np[:, :T, :] = inputs_embeds_np
    m_np = np.zeros((B, Tp), np.float32)
    m_np[:, :T] = attention_mask_np

    # HF shift: loss(logits[:, :-1], labels[:, 1:]) — pre-shift labels on host
    shift_np = np.full((B, Tp), -100, np.int32)
    shift_np[:, :T - 1] = targets_np[:, 1:]

    # --- host-precomputed, layer-independent attention layout constants ---
    r = np.arange(M)
    rb, rt = r // Tp, r % Tp
    c = np.arange(BG)
    cb, ct = c // (N_HEADS * Tp), c % Tp
    key_ok = m_np[cb, ct] > 0.5
    valid = (rb[:, None] == cb[None, :]) & (ct[None, :] <= rt[:, None]) & key_ok[None, :]
    bias_np = np.where(valid, 0.0, -1e9).astype(np.float32)            # (M, BG)

    src = cb * Tp + ct                                                 # source row per packed row
    rep_np = (np.arange(M)[None, :] == src[:, None]).astype(np.float32)   # (BG, M)
    rowh = (c // Tp) % N_HEADS
    colh = np.arange(H) // HEAD_DIM
    hmask_np = (rowh[:, None] == colh[None, :]).astype(np.float32)        # (BG, H)
    gmt_np = ((c[None, :] // Tp) == np.arange(G)[:, None]).astype(np.float32)  # (G, BG)

    x = jnp.asarray(x_np)
    bias = jnp.asarray(bias_np)
    rep = jnp.asarray(rep_np).astype(jnp.bfloat16)
    hmask = jnp.asarray(hmask_np)
    gmt = jnp.asarray(gmt_np)
    labels = jnp.asarray(shift_np.reshape(M, 1))
    pos = packed["pos"][:Tp]

    full_args = [x, pos, bias, rep, hmask, gmt, labels]
    layer_args = [packed[k] for k in ("ln1_g", "ln1_b", "wqkv", "bqkv", "wo", "bo",
                                      "ln2_g", "ln2_b", "w1", "b1", "w2", "b2")]
    tail_args = [packed["lnf_g"], packed["lnf_b"], packed["emb_t"]]

    in_specs = ([_full_spec(a) for a in full_args]
                + [_layer_spec(a) for a in layer_args]
                + [_full_spec(a) for a in tail_args])

    loss = pl.pallas_call(
        _fused_lm_kernel,
        out_shape=jax.ShapeDtypeStruct((1, 1), jnp.float32),
        grid_spec=pltpu.PrefetchScalarGridSpec(
            num_scalar_prefetch=0,
            grid=(N_LAYERS,),                 # layer axis: streamed, double-buffered weights
            in_specs=in_specs,
            out_specs=pl.BlockSpec((1, 1), lambda l: (0, 0)),
            scratch_shapes=[pltpu.VMEM((M, HIDDEN), jnp.float32)],
        ),
        compiler_params=pltpu.CompilerParams(
            dimension_semantics=("arbitrary",),     # layers are sequential
            vmem_limit_bytes=32 * 1024 * 1024,      # portable across v5e/v6e/v7x
        ),
    )(*full_args, *layer_args, *tail_args)
    return loss[0, 0]


# ---------------- parameter init / packing ----------------
def init_params(key):
    def nrm(k, shape, scale=0.02):
        return scale * jax.random.normal(k, shape, dtype=jnp.float32)

    keys = jax.random.split(key, 2 + N_LAYERS)
    params = {
        "emb": nrm(keys[0], (VOCAB, HIDDEN)),
        "pos": nrm(keys[1], (MAX_POS, HIDDEN)),
        "lnf_g": jnp.ones((HIDDEN,), jnp.float32),
        "lnf_b": jnp.zeros((HIDDEN,), jnp.float32),
        "layers": [],
    }
    for l in range(N_LAYERS):
        lk = jax.random.split(keys[2 + l], 6)
        params["layers"].append(
            {
                "ln1_g": jnp.ones((HIDDEN,), jnp.float32),
                "ln1_b": jnp.zeros((HIDDEN,), jnp.float32),
                "wq": nrm(lk[0], (HIDDEN, HIDDEN)),
                "bq": jnp.zeros((HIDDEN,), jnp.float32),
                "wk": nrm(lk[1], (HIDDEN, HIDDEN)),
                "bk": jnp.zeros((HIDDEN,), jnp.float32),
                "wv": nrm(lk[2], (HIDDEN, HIDDEN)),
                "bv": jnp.zeros((HIDDEN,), jnp.float32),
                "wo": nrm(lk[3], (HIDDEN, HIDDEN)),
                "bo": jnp.zeros((HIDDEN,), jnp.float32),
                "ln2_g": jnp.ones((HIDDEN,), jnp.float32),
                "ln2_b": jnp.zeros((HIDDEN,), jnp.float32),
                "w1": nrm(lk[4], (HIDDEN, FFN)),
                "b1": jnp.zeros((FFN,), jnp.float32),
                "w2": nrm(lk[5], (FFN, HIDDEN)),
                "b2": jnp.zeros((HIDDEN,), jnp.float32),
            }
        )
    return params


def pack_params(params):
    """Stack per-layer weights, fuse QKV, fold 1/sqrt(dh) into Q, cast MXU operands to bf16."""
    ls = params["layers"]
    scale = 1.0 / (HEAD_DIM ** 0.5)

    def stack_vec(name):            # (L, 1, dim) f32 — layer-blockable bias/LN vectors
        return jnp.stack([l[name] for l in ls]).reshape(N_LAYERS, 1, -1)

    def stack_mat(name, dtype):
        return jnp.stack([l[name] for l in ls]).astype(dtype)

    wqkv = jnp.stack(
        [jnp.concatenate([l["wq"] * scale, l["wk"], l["wv"]], axis=1) for l in ls]
    ).astype(jnp.bfloat16)
    bqkv = jnp.stack(
        [jnp.concatenate([l["bq"] * scale, l["bk"], l["bv"]]) for l in ls]
    ).reshape(N_LAYERS, 1, 3 * HIDDEN)
    return {
        "ln1_g": stack_vec("ln1_g"), "ln1_b": stack_vec("ln1_b"),
        "wqkv": wqkv, "bqkv": bqkv,
        "wo": stack_mat("wo", jnp.bfloat16), "bo": stack_vec("bo"),
        "ln2_g": stack_vec("ln2_g"), "ln2_b": stack_vec("ln2_b"),
        "w1": stack_mat("w1", jnp.bfloat16), "b1": stack_vec("b1"),
        "w2": stack_mat("w2", jnp.bfloat16), "b2": stack_vec("b2"),
        "lnf_g": params["lnf_g"].reshape(1, HIDDEN),
        "lnf_b": params["lnf_b"].reshape(1, HIDDEN),
        "emb_t": params["emb"].T.astype(jnp.bfloat16),   # tied lm_head, pre-transposed
        "pos": params["pos"],
        "emb_np": np.asarray(params["emb"]),             # host copy for embedding glue
    }


# ---------------- llm4rec glue (mirrors the PyTorch forward, pure numpy) ----------------
def concat_text_input_output(input_ids, input_atts, output_ids, output_atts):
    B = input_ids.shape[0]
    input_part_targets_len = []
    ids_rows, att_rows = [], []
    for i in range(B):
        n = int(input_atts[i].sum())
        input_part_targets_len.append(n)
        ids_rows.append(
            np.concatenate([input_ids[i][:n], output_ids[i][1:], input_ids[i][n:]])
        )
        att_rows.append(
            np.concatenate([input_atts[i][:n], output_atts[i][1:], input_atts[i][n:]])
        )
    llm_tokens = {
        "input_ids": np.stack(ids_rows),
        "attention_mask": np.stack(att_rows),
    }
    return llm_tokens, input_part_targets_len


def replace_hist_candi_token(llm_tokens, inputs_embeds, interact_embs, candidate_embs):
    """Splice item embeddings into the [HistoryEmb]/[CandidateEmb] slots (host numpy)."""
    if len(interact_embs) == 0:
        return llm_tokens, inputs_embeds
    ids = llm_tokens["input_ids"]
    for b in range(ids.shape[0]):
        hist_idx = np.nonzero(ids[b] == HIST_ID)[0]
        ie = np.asarray(interact_embs[b], dtype=np.float32)
        n = min(len(hist_idx), ie.shape[0])
        if n:
            inputs_embeds[b, hist_idx[:n]] = ie[:n]
        cand_idx = np.nonzero(ids[b] == CANDI_ID)[0]
        ce = np.asarray(candidate_embs[b], dtype=np.float32)
        n = min(len(cand_idx), ce.shape[0])
        if n:
            inputs_embeds[b, cand_idx[:n]] = ce[:n]
    return llm_tokens, inputs_embeds


def llm4rec_forward(packed, log_emb, samples):
    # samples carry pre-tokenized ids (synthetic vocab) instead of raw strings.
    B = log_emb.shape[0]
    llm_tokens, input_part_targets_len = concat_text_input_output(
        samples["text_input_ids"],
        samples["text_input_atts"],
        samples["text_output_ids"],
        samples["text_output_atts"],
    )
    ids = llm_tokens["input_ids"]
    targets = np.where(ids == PAD_ID, -100, ids).astype(np.int64)
    for i, l in enumerate(input_part_targets_len):
        targets[i, :l] = -100
    empty_targets = np.full((B, 1), -100, dtype=np.int64)   # for the log_emb token
    targets = np.concatenate([empty_targets, targets], axis=1)

    # embedding lookup + item-embedding splice entirely on host (single transfer later)
    inputs_embeds = packed["emb_np"][ids].astype(np.float32)
    llm_tokens, inputs_embeds = replace_hist_candi_token(
        llm_tokens, inputs_embeds, samples["interact"], samples["candidate"]
    )

    # prepend the recommender log_emb as a soft-prompt token
    inputs_embeds = np.concatenate(
        [np.asarray(log_emb, dtype=np.float32)[:, None, :], inputs_embeds], axis=1
    )
    attention_mask = np.concatenate(
        [np.ones((B, 1), np.int64), llm_tokens["attention_mask"]], axis=1
    )
    # TODO(synk): real OPT derives positions from attention-mask cumsum (+2);
    # absolute positions are used here (harmless with synthetic weights).
    return llm_causal_lm_loss(packed, inputs_embeds, attention_mask, targets)


# ---------------- main ----------------
if __name__ == "__main__":
    key = jax.random.PRNGKey(0)
    pkey, lkey, ikey, ckey = jax.random.split(key, 4)
    params = init_params(pkey)
    packed = pack_params(params)

    B = 2
    log_emb = 0.02 * jax.random.normal(lkey, (B, HIDDEN), dtype=jnp.float32)

    # synthetic tokenized samples (padding='longest' already applied)
    text_input_ids = np.array(
        [
            [EOS_ID, 5, HIST_ID, HIST_ID, CANDI_ID, 6],
            [EOS_ID, 9, HIST_ID, CANDI_ID, PAD_ID, PAD_ID],
        ],
        dtype=np.int64,
    )
    text_input_atts = np.array([[1, 1, 1, 1, 1, 1], [1, 1, 1, 1, 0, 0]], dtype=np.int64)
    # output tokenization includes BOS at position 0 and appended EOS
    text_output_ids = np.array(
        [
            [EOS_ID, 7, 8, EOS_ID, PAD_ID],
            [EOS_ID, 10, 11, 12, EOS_ID],
        ],
        dtype=np.int64,
    )
    text_output_atts = np.array([[1, 1, 1, 1, 0], [1, 1, 1, 1, 1]], dtype=np.int64)

    interact = [
        0.02 * jax.random.normal(jax.random.fold_in(ikey, 0), (2, HIDDEN), jnp.float32),
        0.02 * jax.random.normal(jax.random.fold_in(ikey, 1), (1, HIDDEN), jnp.float32),
    ]
    candidate = [
        0.02 * jax.random.normal(jax.random.fold_in(ckey, 0), (1, HIDDEN), jnp.float32),
        0.02 * jax.random.normal(jax.random.fold_in(ckey, 1), (1, HIDDEN), jnp.float32),
    ]

    samples = {
        "text_input_ids": text_input_ids,
        "text_input_atts": text_input_atts,
        "text_output_ids": text_output_ids,
        "text_output_atts": text_output_atts,
        "interact": interact,
        "candidate": candidate,
    }

    loss = llm4rec_forward(packed, log_emb, samples)
    loss = jax.block_until_ready(loss)
    assert bool(jnp.isfinite(loss)), f"non-finite loss: {loss}"
    print("KERNEL_OK")
</pallas_src>

<mosaic_0001>
module attributes {stable_mosaic.version = 11 : i64} {
  func.func @_fused_lm_kernel(%arg0: i32, %arg1: memref<2x16x128xf32, #tpu.memory_space<vmem>>, %arg2: memref<16x128xf32, #tpu.memory_space<vmem>>, %arg3: memref<32x128xf32, #tpu.memory_space<vmem>>, %arg4: memref<128x32xbf16, #tpu.memory_space<vmem>>, %arg5: memref<128x128xf32, #tpu.memory_space<vmem>>, %arg6: memref<8x128xf32, #tpu.memory_space<vmem>>, %arg7: memref<32x1xi32, #tpu.memory_space<vmem>>, %arg8: memref<1x1x128xf32, #tpu.memory_space<vmem>>, %arg9: memref<1x1x128xf32, #tpu.memory_space<vmem>>, %arg10: memref<1x128x384xbf16, #tpu.memory_space<vmem>>, %arg11: memref<1x1x384xf32, #tpu.memory_space<vmem>>, %arg12: memref<1x128x128xbf16, #tpu.memory_space<vmem>>, %arg13: memref<1x1x128xf32, #tpu.memory_space<vmem>>, %arg14: memref<1x1x128xf32, #tpu.memory_space<vmem>>, %arg15: memref<1x1x128xf32, #tpu.memory_space<vmem>>, %arg16: memref<1x128x256xbf16, #tpu.memory_space<vmem>>, %arg17: memref<1x1x256xf32, #tpu.memory_space<vmem>>, %arg18: memref<1x256x128xbf16, #tpu.memory_space<vmem>>, %arg19: memref<1x1x128xf32, #tpu.memory_space<vmem>>, %arg20: memref<1x128xf32, #tpu.memory_space<vmem>>, %arg21: memref<1x128xf32, #tpu.memory_space<vmem>>, %arg22: memref<128x256xbf16, #tpu.memory_space<vmem>>, %arg23: memref<1x1xf32, #tpu.memory_space<vmem>>, %arg24: memref<32x128xf32, #tpu.memory_space<vmem>>) attributes {dimension_semantics = [#tpu.dimension_semantics<arbitrary>], iteration_bounds = array<i64: 2>, scalar_prefetch = 0 : i64, scratch_operands = 1 : i64, tpu.core_type = #tpu.core_type<tc>, window_params = [{pipeline_mode = #tpu.pipeline_mode<synchronous>, transform_indices = @transform_0, window_bounds = array<i64: 2, 16, 128>}, {pipeline_mode = #tpu.pipeline_mode<synchronous>, transform_indices = @transform_1, window_bounds = array<i64: 16, 128>}, {pipeline_mode = #tpu.pipeline_mode<synchronous>, transform_indices = @transform_2, window_bounds = array<i64: 32, 128>}, {pipeline_mode = #tpu.pipeline_mode<synchronous>, transform_indices = @transform_3, window_bounds = array<i64: 128, 32>}, {pipeline_mode = #tpu.pipeline_mode<synchronous>, transform_indices = @transform_4, window_bounds = array<i64: 128, 128>}, {pipeline_mode = #tpu.pipeline_mode<synchronous>, transform_indices = @transform_5, window_bounds = array<i64: 8, 128>}, {pipeline_mode = #tpu.pipeline_mode<synchronous>, transform_indices = @transform_6, window_bounds = array<i64: 32, 1>}, {transform_indices = @transform_7, window_bounds = array<i64: 1, 1, 128>}, {transform_indices = @transform_8, window_bounds = array<i64: 1, 1, 128>}, {transform_indices = @transform_9, window_bounds = array<i64: 1, 128, 384>}, {transform_indices = @transform_10, window_bounds = array<i64: 1, 1, 384>}, {transform_indices = @transform_11, window_bounds = array<i64: 1, 128, 128>}, {transform_indices = @transform_12, window_bounds = array<i64: 1, 1, 128>}, {transform_indices = @transform_13, window_bounds = array<i64: 1, 1, 128>}, {transform_indices = @transform_14, window_bounds = array<i64: 1, 1, 128>}, {transform_indices = @transform_15, window_bounds = array<i64: 1, 128, 256>}, {transform_indices = @transform_16, window_bounds = array<i64: 1, 1, 256>}, {transform_indices = @transform_17, window_bounds = array<i64: 1, 256, 128>}, {transform_indices = @transform_18, window_bounds = array<i64: 1, 1, 128>}, {pipeline_mode = #tpu.pipeline_mode<synchronous>, transform_indices = @transform_19, window_bounds = array<i64: 1, 128>}, {pipeline_mode = #tpu.pipeline_mode<synchronous>, transform_indices = @transform_20, window_bounds = array<i64: 1, 128>}, {pipeline_mode = #tpu.pipeline_mode<synchronous>, transform_indices = @transform_21, window_bounds = array<i64: 128, 256>}, {pipeline_mode = #tpu.pipeline_mode<synchronous>, transform_indices = @transform_22, window_bounds = array<i64: 1, 1>}]} {
    %c0_i32 = arith.constant 0 : i32
    %0 = arith.cmpi eq, %arg0, %c0_i32 : i32
    %1 = arith.extui %0 : i1 to i32
    %c0_i32_0 = arith.constant 0 : i32
    %2 = arith.cmpi ne, %1, %c0_i32_0 : i32
    scf.if %2 {
      %c0_71 = arith.constant 0 : index
      %c0_72 = arith.constant 0 : index
      %c0_73 = arith.constant 0 : index
      %127 = vector.load %arg1[%c0_71, %c0_72, %c0_73] : memref<2x16x128xf32, #tpu.memory_space<vmem>>, vector<2x16x128xf32>
      %c0_74 = arith.constant 0 : index
      %c0_75 = arith.constant 0 : index
      %128 = vector.load %arg2[%c0_74, %c0_75] : memref<16x128xf32, #tpu.memory_space<vmem>>, vector<16x128xf32>
      %129 = vector.shape_cast %128 : vector<16x128xf32> to vector<1x16x128xf32>
      %130 = vector.broadcast %129 : vector<1x16x128xf32> to vector<2x16x128xf32>
      %131 = arith.addf %127, %130 : vector<2x16x128xf32>
      %132 = vector.shape_cast %131 : vector<2x16x128xf32> to vector<32x128xf32>
      %c0_76 = arith.constant 0 : index
      %c0_77 = arith.constant 0 : index
      %133 = vector.load %arg24[%c0_76, %c0_77] : memref<32x128xf32, #tpu.memory_space<vmem>>, vector<32x128xf32>
      tpu.vector_store %arg24[%c0_76, %c0_77], %132 {strides = array<i32>} : memref<32x128xf32, #tpu.memory_space<vmem>>, vector<32x128xf32>,
      %cst_78 = arith.constant 0.000000e+00 : f32
      %134 = vector.broadcast %cst_78 : f32 to vector<1x1xf32>
      %c0_79 = arith.constant 0 : index
      %c0_80 = arith.constant 0 : index
      %135 = vector.load %arg23[%c0_79, %c0_80] : memref<1x1xf32, #tpu.memory_space<vmem>>, vector<1x1xf32>
      tpu.vector_store %arg23[%c0_79, %c0_80], %134 {strides = array<i32>} : memref<1x1xf32, #tpu.memory_space<vmem>>, vector<1x1xf32>,
    } else {
    }
    %c0 = arith.constant 0 : index
    %c0_1 = arith.constant 0 : index
    %3 = vector.load %arg24[%c0, %c0_1] : memref<32x128xf32, #tpu.memory_space<vmem>>, vector<32x128xf32>
    %c0_2 = arith.constant 0 : index
    %c0_3 = arith.constant 0 : index
    %4 = vector.load %arg3[%c0_2, %c0_3] : memref<32x128xf32, #tpu.memory_space<vmem>>, vector<32x128xf32>
    %c0_4 = arith.constant 0 : index
    %c0_5 = arith.constant 0 : index
    %5 = vector.load %arg4[%c0_4, %c0_5] : memref<128x32xbf16, #tpu.memory_space<vmem>>, vector<128x32xbf16>
    %c0_6 = arith.constant 0 : index
    %c0_7 = arith.constant 0 : index
    %6 = vector.load %arg5[%c0_6, %c0_7] : memref<128x128xf32, #tpu.memory_space<vmem>>, vector<128x128xf32>
    %c0_8 = arith.constant 0 : index
    %c0_9 = arith.constant 0 : index
    %7 = vector.load %arg6[%c0_8, %c0_9] : memref<8x128xf32, #tpu.memory_space<vmem>>, vector<8x128xf32>
    %c0_10 = arith.constant 0 : index
    %c0_11 = arith.constant 0 : index
    %c0_12 = arith.constant 0 : index
    %8 = vector.load %arg8[%c0_10, %c0_11, %c0_12] : memref<1x1x128xf32, #tpu.memory_space<vmem>>, vector<1x1x128xf32>
    %9 = vector.shape_cast %8 : vector<1x1x128xf32> to vector<1x128xf32>
    %c0_13 = arith.constant 0 : index
    %c0_14 = arith.constant 0 : index
    %c0_15 = arith.constant 0 : index
    %10 = vector.load %arg9[%c0_13, %c0_14, %c0_15] : memref<1x1x128xf32, #tpu.memory_space<vmem>>, vector<1x1x128xf32>
    %11 = vector.shape_cast %10 : vector<1x1x128xf32> to vector<1x128xf32>
    %cst = arith.constant dense<0.000000e+00> : vector<32xf32>
    %12 = vector.multi_reduction <add>, %3, %cst [1] : vector<32x128xf32> to vector<32xf32>
    %13 = vector.shape_cast %12 : vector<32xf32> to vector<32x1xf32>
    %cst_16 = arith.constant 1.280000e+02 : f32
    %14 = vector.broadcast %cst_16 : f32 to vector<32x1xf32>
    %15 = arith.divf %13, %14 : vector<32x1xf32>
    %16 = vector.broadcast %15 : vector<32x1xf32> to vector<32x128xf32>
    %17 = arith.subf %3, %16 : vector<32x128xf32>
    %18 = arith.mulf %17, %17 : vector<32x128xf32>
    %cst_17 = arith.constant dense<0.000000e+00> : vector<32xf32>
    %19 = vector.multi_reduction <add>, %18, %cst_17 [1] : vector<32x128xf32> to vector<32xf32>
    %20 = vector.shape_cast %19 : vector<32xf32> to vector<32x1xf32>
    %cst_18 = arith.constant 1.280000e+02 : f32
    %21 = vector.broadcast %cst_18 : f32 to vector<32x1xf32>
    %22 = arith.divf %20, %21 : vector<32x1xf32>
    %23 = vector.broadcast %15 : vector<32x1xf32> to vector<32x128xf32>
    %24 = arith.subf %3, %23 : vector<32x128xf32>
    %cst_19 = arith.constant 9.99999974E-6 : f32
    %25 = vector.broadcast %cst_19 : f32 to vector<32x1xf32>
    %26 = arith.addf %22, %25 : vector<32x1xf32>
    %27 = math.rsqrt %26 : vector<32x1xf32>
    %28 = vector.broadcast %27 : vector<32x1xf32> to vector<32x128xf32>
    %29 = arith.mulf %24, %28 : vector<32x128xf32>
    %30 = vector.broadcast %9 : vector<1x128xf32> to vector<32x128xf32>
    %31 = arith.mulf %29, %30 : vector<32x128xf32>
    %32 = vector.broadcast %11 : vector<1x128xf32> to vector<32x128xf32>
    %33 = arith.addf %31, %32 : vector<32x128xf32>
    %34 = arith.truncf %33 : vector<32x128xf32> to vector<32x128xbf16>
    %c0_20 = arith.constant 0 : index
    %c0_21 = arith.constant 0 : index
    %c0_22 = arith.constant 0 : index
    %35 = vector.load %arg10[%c0_20, %c0_21, %c0_22] : memref<1x128x384xbf16, #tpu.memory_space<vmem>>, vector<1x128x384xbf16>
    %36 = vector.shape_cast %35 : vector<1x128x384xbf16> to vector<128x384xbf16>
    %cst_23 = arith.constant dense<0.000000e+00> : vector<32x384xf32>
    %37 = tpu.matmul %34, %36, %cst_23 {dimension_numbers = #tpu.dot_dimension_numbers<[1], [0], [0], [1], [0, 0, 1, 1], [], []>} : vector<32x128xbf16>, vector<128x384xbf16>, vector<32x384xf32> -> vector<32x384xf32>
    %c0_24 = arith.constant 0 : index
    %c0_25 = arith.constant 0 : index
    %c0_26 = arith.constant 0 : index
    %38 = vector.load %arg11[%c0_24, %c0_25, %c0_26] : memref<1x1x384xf32, #tpu.memory_space<vmem>>, vector<1x1x384xf32>
    %39 = vector.shape_cast %38 : vector<1x1x384xf32> to vector<1x384xf32>
    %40 = vector.broadcast %39 : vector<1x384xf32> to vector<32x384xf32>
    %41 = arith.addf %37, %40 : vector<32x384xf32>
    %42 = vector.extract_strided_slice %41 {offsets = [0, 0], sizes = [32, 128], strides = [1, 1]} : vector<32x384xf32> to vector<32x128xf32>
    %43 = vector.extract_strided_slice %41 {offsets = [0, 128], sizes = [32, 128], strides = [1, 1]} : vector<32x384xf32> to vector<32x128xf32>
    %44 = vector.extract_strided_slice %41 {offsets = [0, 256], sizes = [32, 128], strides = [1, 1]} : vector<32x384xf32> to vector<32x128xf32>
    %45 = arith.truncf %43 : vector<32x128xf32> to vector<32x128xbf16>
    %cst_27 = arith.constant dense<0.000000e+00> : vector<128x128xf32>
    %46 = tpu.matmul %5, %45, %cst_27 {dimension_numbers = #tpu.dot_dimension_numbers<[1], [0], [0], [1], [0, 0, 1, 1], [], []>} : vector<128x32xbf16>, vector<32x128xbf16>, vector<128x128xf32> -> vector<128x128xf32>
    %47 = arith.mulf %46, %6 : vector<128x128xf32>
    %48 = arith.truncf %47 : vector<128x128xf32> to vector<128x128xbf16>
    %49 = arith.truncf %44 : vector<32x128xf32> to vector<32x128xbf16>
    %cst_28 = arith.constant dense<0.000000e+00> : vector<128x128xf32>
    %50 = tpu.matmul %5, %49, %cst_28 {dimension_numbers = #tpu.dot_dimension_numbers<[1], [0], [0], [1], [0, 0, 1, 1], [], []>} : vector<128x32xbf16>, vector<32x128xbf16>, vector<128x128xf32> -> vector<128x128xf32>
    %51 = arith.mulf %50, %6 : vector<128x128xf32>
    %52 = arith.truncf %51 : vector<128x128xf32> to vector<128x128xbf16>
    %53 = arith.truncf %42 : vector<32x128xf32> to vector<32x128xbf16>
    %cst_29 = arith.constant dense<0.000000e+00> : vector<32x128xf32>
    %54 = tpu.matmul %53, %48, %cst_29 {dimension_numbers = #tpu.dot_dimension_numbers<[1], [1], [0], [0], [0, 0, 1, 0], [], []>} : vector<32x128xbf16>, vector<128x128xbf16>, vector<32x128xf32> -> vector<32x128xf32>
    %55 = arith.addf %54, %4 : vector<32x128xf32>
    %cst_30 = arith.constant dense<0xFF800000> : vector<32xf32>
    %56 = vector.multi_reduction <maximumf>, %55, %cst_30 [1] : vector<32x128xf32> to vector<32xf32>
    %57 = vector.shape_cast %56 : vector<32xf32> to vector<32x1xf32>
    %58 = vector.broadcast %57 : vector<32x1xf32> to vector<32x128xf32>
    %59 = arith.subf %55, %58 : vector<32x128xf32>
    %60 = math.exp %59 : vector<32x128xf32>
    %cst_31 = arith.constant dense<0.000000e+00> : vector<32x8xf32>
    %61 = tpu.matmul %60, %7, %cst_31 {dimension_numbers = #tpu.dot_dimension_numbers<[1], [1], [0], [0], [0, 0, 1, 0], [], []>} : vector<32x128xf32>, vector<8x128xf32>, vector<32x8xf32> -> vector<32x8xf32>
    %cst_32 = arith.constant 9.99999968E-21 : f32
    %62 = vector.broadcast %cst_32 : f32 to vector<32x8xf32>
    %63 = arith.maximumf %61, %62 : vector<32x8xf32>
    %64 = tpu.reciprocal %63 {approx = true} : vector<32x8xf32> -> vector<32x8xf32>
    %cst_33 = arith.constant dense<0.000000e+00> : vector<32x128xf32>
    %65 = tpu.matmul %64, %7, %cst_33 {dimension_numbers = #tpu.dot_dimension_numbers<[1], [0], [0], [1], [0, 0, 1, 1], [], []>} : vector<32x8xf32>, vector<8x128xf32>, vector<32x128xf32> -> vector<32x128xf32>
    %66 = arith.mulf %60, %65 : vector<32x128xf32>
    %67 = arith.truncf %66 : vector<32x128xf32> to vector<32x128xbf16>
    %cst_34 = arith.constant dense<0.000000e+00> : vector<32x128xf32>
    %68 = tpu.matmul %67, %52, %cst_34 {dimension_numbers = #tpu.dot_dimension_numbers<[1], [0], [0], [1], [0, 0, 1, 1], [], []>} : vector<32x128xbf16>, vector<128x128xbf16>, vector<32x128xf32> -> vector<32x128xf32>
    %69 = arith.truncf %68 : vector<32x128xf32> to vector<32x128xbf16>
    %c0_35 = arith.constant 0 : index
    %c0_36 = arith.constant 0 : index
    %c0_37 = arith.constant 0 : index
    %70 = vector.load %arg12[%c0_35, %c0_36, %c0_37] : memref<1x128x128xbf16, #tpu.memory_space<vmem>>, vector<1x128x128xbf16>
    %71 = vector.shape_cast %70 : vector<1x128x128xbf16> to vector<128x128xbf16>
    %cst_38 = arith.constant dense<0.000000e+00> : vector<32x128xf32>
    %72 = tpu.matmul %69, %71, %cst_38 {dimension_numbers = #tpu.dot_dimension_numbers<[1], [0], [0], [1], [0, 0, 1, 1], [], []>} : vector<32x128xbf16>, vector<128x128xbf16>, vector<32x128xf32> -> vector<32x128xf32>
    %c0_39 = arith.constant 0 : index
    %c0_40 = arith.constant 0 : index
    %c0_41 = arith.constant 0 : index
    %73 = vector.load %arg13[%c0_39, %c0_40, %c0_41] : memref<1x1x128xf32, #tpu.memory_space<vmem>>, vector<1x1x128xf32>
    %74 = vector.shape_cast %73 : vector<1x1x128xf32> to vector<1x128xf32>
    %75 = vector.broadcast %74 : vector<1x128xf32> to vector<32x128xf32>
    %76 = arith.addf %72, %75 : vector<32x128xf32>
    %77 = arith.addf %3, %76 : vector<32x128xf32>
    %c0_42 = arith.constant 0 : index
    %c0_43 = arith.constant 0 : index
    %c0_44 = arith.constant 0 : index
    %78 = vector.load %arg14[%c0_42, %c0_43, %c0_44] : memref<1x1x128xf32, #tpu.memory_space<vmem>>, vector<1x1x128xf32>
    %79 = vector.shape_cast %78 : vector<1x1x128xf32> to vector<1x128xf32>
    %c0_45 = arith.constant 0 : index
    %c0_46 = arith.constant 0 : index
    %c0_47 = arith.constant 0 : index
    %80 = vector.load %arg15[%c0_45, %c0_46, %c0_47] : memref<1x1x128xf32, #tpu.memory_space<vmem>>, vector<1x1x128xf32>
    %81 = vector.shape_cast %80 : vector<1x1x128xf32> to vector<1x128xf32>
    %cst_48 = arith.constant dense<0.000000e+00> : vector<32xf32>
    %82 = vector.multi_reduction <add>, %77, %cst_48 [1] : vector<32x128xf32> to vector<32xf32>
    %83 = vector.shape_cast %82 : vector<32xf32> to vector<32x1xf32>
    %cst_49 = arith.constant 1.280000e+02 : f32
    %84 = vector.broadcast %cst_49 : f32 to vector<32x1xf32>
    %85 = arith.divf %83, %84 : vector<32x1xf32>
    %86 = vector.broadcast %85 : vector<32x1xf32> to vector<32x128xf32>
    %87 = arith.subf %77, %86 : vector<32x128xf32>
    %88 = arith.mulf %87, %87 : vector<32x128xf32>
    %cst_50 = arith.constant dense<0.000000e+00> : vector<32xf32>
    %89 = vector.multi_reduction <add>, %88, %cst_50 [1] : vector<32x128xf32> to vector<32xf32>
    %90 = vector.shape_cast %89 : vector<32xf32> to vector<32x1xf32>
    %cst_51 = arith.constant 1.280000e+02 : f32
    %91 = vector.broadcast %cst_51 : f32 to vector<32x1xf32>
    %92 = arith.divf %90, %91 : vector<32x1xf32>
    %93 = vector.broadcast %85 : vector<32x1xf32> to vector<32x128xf32>
    %94 = arith.subf %77, %93 : vector<32x128xf32>
    %cst_52 = arith.constant 9.99999974E-6 : f32
    %95 = vector.broadcast %cst_52 : f32 to vector<32x1xf32>
    %96 = arith.addf %92, %95 : vector<32x1xf32>
    %97 = math.rsqrt %96 : vector<32x1xf32>
    %98 = vector.broadcast %97 : vector<32x1xf32> to vector<32x128xf32>
    %99 = arith.mulf %94, %98 : vector<32x128xf32>
    %100 = vector.broadcast %79 : vector<1x128xf32> to vector<32x128xf32>
    %101 = arith.mulf %99, %100 : vector<32x128xf32>
    %102 = vector.broadcast %81 : vector<1x128xf32> to vector<32x128xf32>
    %103 = arith.addf %101, %102 : vector<32x128xf32>
    %104 = arith.truncf %103 : vector<32x128xf32> to vector<32x128xbf16>
    %c0_53 = arith.constant 0 : index
    %c0_54 = arith.constant 0 : index
    %c0_55 = arith.constant 0 : index
    %105 = vector.load %arg16[%c0_53, %c0_54, %c0_55] : memref<1x128x256xbf16, #tpu.memory_space<vmem>>, vector<1x128x256xbf16>
    %106 = vector.shape_cast %105 : vector<1x128x256xbf16> to vector<128x256xbf16>
    %cst_56 = arith.constant dense<0.000000e+00> : vector<32x256xf32>
    %107 = tpu.matmul %104, %106, %cst_56 {dimension_numbers = #tpu.dot_dimension_numbers<[1], [0], [0], [1], [0, 0, 1, 1], [], []>} : vector<32x128xbf16>, vector<128x256xbf16>, vector<32x256xf32> -> vector<32x256xf32>
    %c0_57 = arith.constant 0 : index
    %c0_58 = arith.constant 0 : index
    %c0_59 = arith.constant 0 : index
    %108 = vector.load %arg17[%c0_57, %c0_58, %c0_59] : memref<1x1x256xf32, #tpu.memory_space<vmem>>, vector<1x1x256xf32>
    %109 = vector.shape_cast %108 : vector<1x1x256xf32> to vector<1x256xf32>
    %110 = vector.broadcast %109 : vector<1x256xf32> to vector<32x256xf32>
    %111 = arith.addf %107, %110 : vector<32x256xf32>
    %cst_60 = arith.constant 0.000000e+00 : f32
    %112 = vector.broadcast %cst_60 : f32 to vector<32x256xf32>
    %113 = arith.maximumf %111, %112 : vector<32x256xf32>
    %114 = arith.truncf %113 : vector<32x256xf32> to vector<32x256xbf16>
    %c0_61 = arith.constant 0 : index
    %c0_62 = arith.constant 0 : index
    %c0_63 = arith.constant 0 : index
    %115 = vector.load %arg18[%c0_61, %c0_62, %c0_63] : memref<1x256x128xbf16, #tpu.memory_space<vmem>>, vector<1x256x128xbf16>
    %116 = vector.shape_cast %115 : vector<1x256x128xbf16> to vector<256x128xbf16>
    %cst_64 = arith.constant dense<0.000000e+00> : vector<32x128xf32>
    %117 = tpu.matmul %114, %116, %cst_64 {dimension_numbers = #tpu.dot_dimension_numbers<[1], [0], [0], [1], [0, 0, 1, 1], [], []>} : vector<32x256xbf16>, vector<256x128xbf16>, vector<32x128xf32> -> vector<32x128xf32>
    %c0_65 = arith.constant 0 : index
    %c0_66 = arith.constant 0 : index
    %c0_67 = arith.constant 0 : index
    %118 = vector.load %arg19[%c0_65, %c0_66, %c0_67] : memref<1x1x128xf32, #tpu.memory_space<vmem>>, vector<1x1x128xf32>
    %119 = vector.shape_cast %118 : vector<1x1x128xf32> to vector<1x128xf32>
    %120 = vector.broadcast %119 : vector<1x128xf32> to vector<32x128xf32>
    %121 = arith.addf %117, %120 : vector<32x128xf32>
    %122 = arith.addf %77, %121 : vector<32x128xf32>
    %c0_68 = arith.constant 0 : index
    %c0_69 = arith.constant 0 : index
    %123 = vector.load %arg24[%c0_68, %c0_69] : memref<32x128xf32, #tpu.memory_space<vmem>>, vector<32x128xf32>
    tpu.vector_store %arg24[%c0_68, %c0_69], %122 {strides = array<i32>} : memref<32x128xf32, #tpu.memory_space<vmem>>, vector<32x128xf32>,
    %c1_i32 = arith.constant 1 : i32
    %124 = arith.cmpi eq, %arg0, %c1_i32 : i32
    %125 = arith.extui %124 : i1 to i32
    %c0_i32_70 = arith.constant 0 : i32
    %126 = arith.cmpi ne, %125, %c0_i32_70 : i32
    scf.if %126 {
      %c0_71 = arith.constant 0 : index
      %c0_72 = arith.constant 0 : index
      %127 = vector.load %arg20[%c0_71, %c0_72] : memref<1x128xf32, #tpu.memory_space<vmem>>, vector<1x128xf32>
      %c0_73 = arith.constant 0 : index
      %c0_74 = arith.constant 0 : index
      %128 = vector.load %arg21[%c0_73, %c0_74] : memref<1x128xf32, #tpu.memory_space<vmem>>, vector<1x128xf32>
      %cst_75 = arith.constant dense<0.000000e+00> : vector<32xf32>
      %129 = vector.multi_reduction <add>, %122, %cst_75 [1] : vector<32x128xf32> to vector<32xf32>
      %130 = vector.shape_cast %129 : vector<32xf32> to vector<32x1xf32>
      %cst_76 = arith.constant 1.280000e+02 : f32
      %131 = vector.broadcast %cst_76 : f32 to vector<32x1xf32>
      %132 = arith.divf %130, %131 : vector<32x1xf32>
      %133 = vector.broadcast %132 : vector<32x1xf32> to vector<32x128xf32>
      %134 = arith.subf %122, %133 : vector<32x128xf32>
      %135 = arith.mulf %134, %134 : vector<32x128xf32>
      %cst_77 = arith.constant dense<0.000000e+00> : vector<32xf32>
      %136 = vector.multi_reduction <add>, %135, %cst_77 [1] : vector<32x128xf32> to vector<32xf32>
      %137 = vector.shape_cast %136 : vector<32xf32> to vector<32x1xf32>
      %cst_78 = arith.constant 1.280000e+02 : f32
      %138 = vector.broadcast %cst_78 : f32 to vector<32x1xf32>
      %139 = arith.divf %137, %138 : vector<32x1xf32>
      %140 = vector.broadcast %132 : vector<32x1xf32> to vector<32x128xf32>
      %141 = arith.subf %122, %140 : vector<32x128xf32>
      %cst_79 = arith.constant 9.99999974E-6 : f32
      %142 = vector.broadcast %cst_79 : f32 to vector<32x1xf32>
      %143 = arith.addf %139, %142 : vector<32x1xf32>
      %144 = math.rsqrt %143 : vector<32x1xf32>
      %145 = vector.broadcast %144 : vector<32x1xf32> to vector<32x128xf32>
      %146 = arith.mulf %141, %145 : vector<32x128xf32>
      %147 = vector.broadcast %127 : vector<1x128xf32> to vector<32x128xf32>
      %148 = arith.mulf %146, %147 : vector<32x128xf32>
      %149 = vector.broadcast %128 : vector<1x128xf32> to vector<32x128xf32>
      %150 = arith.addf %148, %149 : vector<32x128xf32>
      %151 = arith.truncf %150 : vector<32x128xf32> to vector<32x128xbf16>
      %c0_80 = arith.constant 0 : index
      %c0_81 = arith.constant 0 : index
      %152 = vector.load %arg22[%c0_80, %c0_81] : memref<128x256xbf16, #tpu.memory_space<vmem>>, vector<128x256xbf16>
      %cst_82 = arith.constant dense<0.000000e+00> : vector<32x256xf32>
      %153 = tpu.matmul %151, %152, %cst_82 {dimension_numbers = #tpu.dot_dimension_numbers<[1], [0], [0], [1], [0, 0, 1, 1], [], []>} : vector<32x128xbf16>, vector<128x256xbf16>, vector<32x256xf32> -> vector<32x256xf32>
      %c0_83 = arith.constant 0 : index
      %c0_84 = arith.constant 0 : index
      %154 = vector.load %arg7[%c0_83, %c0_84] : memref<32x1xi32, #tpu.memory_space<vmem>>, vector<32x1xi32>
      %cst_85 = arith.constant dense<0xFF800000> : vector<32xf32>
      %155 = vector.multi_reduction <maximumf>, %153, %cst_85 [1] : vector<32x256xf32> to vector<32xf32>
      %156 = vector.shape_cast %155 : vector<32xf32> to vector<32x1xf32>
      %157 = vector.broadcast %156 : vector<32x1xf32> to vector<32x256xf32>
      %158 = arith.subf %153, %157 : vector<32x256xf32>
      %159 = math.exp %158 : vector<32x256xf32>
      %cst_86 = arith.constant dense<0.000000e+00> : vector<32xf32>
      %160 = vector.multi_reduction <add>, %159, %cst_86 [1] : vector<32x256xf32> to vector<32xf32>
      %161 = vector.shape_cast %160 : vector<32xf32> to vector<32x1xf32>
      %162 = math.log %161 : vector<32x1xf32>
      %163 = arith.addf %156, %162 : vector<32x1xf32>
      %164 = tpu.iota {dimensions = array<i32: 1>} : vector<32x256xi32>
      %165 = vector.broadcast %154 : vector<32x1xi32> to vector<32x256xi32>
      %166 = arith.cmpi eq, %164, %165 : vector<32x256xi32>
      %167 = arith.extui %166 : vector<32x256xi1> to vector<32x256xi32>
      %168 = arith.sitofp %167 : vector<32x256xi32> to vector<32x256xf32>
      %169 = arith.mulf %153, %168 : vector<32x256xf32>
      %cst_87 = arith.constant dense<0.000000e+00> : vector<32xf32>
      %170 = vector.multi_reduction <add>, %169, %cst_87 [1] : vector<32x256xf32> to vector<32xf32>
      %171 = vector.shape_cast %170 : vector<32xf32> to vector<32x1xf32>
      %c-100_i32 = arith.constant -100 : i32
      %172 = vector.broadcast %c-100_i32 : i32 to vector<32x1xi32>
      %173 = arith.cmpi ne, %154, %172 : vector<32x1xi32>
      %174 = arith.extui %173 : vector<32x1xi1> to vector<32x1xi32>
      %175 = arith.sitofp %174 : vector<32x1xi32> to vector<32x1xf32>
      %176 = arith.subf %163, %171 : vector<32x1xf32>
      %177 = arith.mulf %176, %175 : vector<32x1xf32>
      %178 = vector.shape_cast %177 : vector<32x1xf32> to vector<1x32x1xf32>
      %cst_88 = arith.constant dense<0.000000e+00> : vector<1xf32>
      %179 = vector.multi_reduction <add>, %178, %cst_88 [1, 2] : vector<1x32x1xf32> to vector<1xf32>
      %180 = vector.shape_cast %179 : vector<1xf32> to vector<1x1x1xf32>
      %181 = vector.extract %180[0, 0, 0] : f32 from vector<1x1x1xf32>
      %182 = vector.broadcast %181 : f32 to vector<1x1xf32>
      %183 = vector.shape_cast %175 : vector<32x1xf32> to vector<1x32x1xf32>
      %cst_89 = arith.constant dense<0.000000e+00> : vector<1xf32>
      %184 = vector.multi_reduction <add>, %183, %cst_89 [1, 2] : vector<1x32x1xf32> to vector<1xf32>
      %185 = vector.shape_cast %184 : vector<1xf32> to vector<1x1x1xf32>
      %186 = vector.extract %185[0, 0, 0] : f32 from vector<1x1x1xf32>
      %187 = vector.broadcast %186 : f32 to vector<1x1xf32>
      %cst_90 = arith.constant 1.000000e+00 : f32
      %188 = vector.broadcast %cst_90 : f32 to vector<1x1xf32>
      %189 = arith.maximumf %187, %188 : vector<1x1xf32>
      %190 = arith.divf %182, %189 : vector<1x1xf32>
      %c0_91 = arith.constant 0 : index
      %c0_92 = arith.constant 0 : index
      %191 = vector.load %arg23[%c0_91, %c0_92] : memref<1x1xf32, #tpu.memory_space<vmem>>, vector<1x1xf32>
      tpu.vector_store %arg23[%c0_91, %c0_92], %190 {strides = array<i32>} : memref<1x1xf32, #tpu.memory_space<vmem>>, vector<1x1xf32>,
    } else {
    }
    return
  }
  func.func @transform_0(%arg0: i32) -> (i32, i32, i32) {
    %c0_i32 = arith.constant 0 : i32
    %c0_i32_0 = arith.constant 0 : i32
    %c0_i32_1 = arith.constant 0 : i32
    %c0_i32_2 = arith.constant 0 : i32
    return %c0_i32, %c0_i32_0, %c0_i32_1 : i32, i32, i32
  }
  func.func @transform_1(%arg0: i32) -> (i32, i32) {
    %c0_i32 = arith.constant 0 : i32
    %c0_i32_0 = arith.constant 0 : i32
    %c0_i32_1 = arith.constant 0 : i32
    return %c0_i32, %c0_i32_0 : i32, i32
  }
  func.func @transform_2(%arg0: i32) -> (i32, i32) {
    %c0_i32 = arith.constant 0 : i32
    %c0_i32_0 = arith.constant 0 : i32
    %c0_i32_1 = arith.constant 0 : i32
    return %c0_i32, %c0_i32_0 : i32, i32
  }
  func.func @transform_3(%arg0: i32) -> (i32, i32) {
    %c0_i32 = arith.constant 0 : i32
    %c0_i32_0 = arith.constant 0 : i32
    %c0_i32_1 = arith.constant 0 : i32
    return %c0_i32, %c0_i32_0 : i32, i32
  }
  func.func @transform_4(%arg0: i32) -> (i32, i32) {
    %c0_i32 = arith.constant 0 : i32
    %c0_i32_0 = arith.constant 0 : i32
    %c0_i32_1 = arith.constant 0 : i32
    return %c0_i32, %c0_i32_0 : i32, i32
  }
  func.func @transform_5(%arg0: i32) -> (i32, i32) {
    %c0_i32 = arith.constant 0 : i32
    %c0_i32_0 = arith.constant 0 : i32
    %c0_i32_1 = arith.constant 0 : i32
    return %c0_i32, %c0_i32_0 : i32, i32
  }
  func.func @transform_6(%arg0: i32) -> (i32, i32) {
    %c0_i32 = arith.constant 0 : i32
    %c0_i32_0 = arith.constant 0 : i32
    %c0_i32_1 = arith.constant 0 : i32
    return %c0_i32, %c0_i32_0 : i32, i32
  }
  func.func @transform_7(%arg0: i32) -> (i32, i32, i32) {
    %c0_i32 = arith.constant 0 : i32
    %c0_i32_0 = arith.constant 0 : i32
    %c0_i32_1 = arith.constant 0 : i32
    return %arg0, %c0_i32, %c0_i32_0 : i32, i32, i32
  }
  func.func @transform_8(%arg0: i32) -> (i32, i32, i32) {
    %c0_i32 = arith.constant 0 : i32
    %c0_i32_0 = arith.constant 0 : i32
    %c0_i32_1 = arith.constant 0 : i32
    return %arg0, %c0_i32, %c0_i32_0 : i32, i32, i32
  }
  func.func @transform_9(%arg0: i32) -> (i32, i32, i32) {
    %c0_i32 = arith.constant 0 : i32
    %c0_i32_0 = arith.constant 0 : i32
    %c0_i32_1 = arith.constant 0 : i32
    return %arg0, %c0_i32, %c0_i32_0 : i32, i32, i32
  }
  func.func @transform_10(%arg0: i32) -> (i32, i32, i32) {
    %c0_i32 = arith.constant 0 : i32
    %c0_i32_0 = arith.constant 0 : i32
    %c0_i32_1 = arith.constant 0 : i32
    return %arg0, %c0_i32, %c0_i32_0 : i32, i32, i32
  }
  func.func @transform_11(%arg0: i32) -> (i32, i32, i32) {
    %c0_i32 = arith.constant 0 : i32
    %c0_i32_0 = arith.constant 0 : i32
    %c0_i32_1 = arith.constant 0 : i32
    return %arg0, %c0_i32, %c0_i32_0 : i32, i32, i32
  }
  func.func @transform_12(%arg0: i32) -> (i32, i32, i32) {
    %c0_i32 = arith.constant 0 : i32
    %c0_i32_0 = arith.constant 0 : i32
    %c0_i32_1 = arith.constant 0 : i32
    return %arg0, %c0_i32, %c0_i32_0 : i32, i32, i32
  }
  func.func @transform_13(%arg0: i32) -> (i32, i32, i32) {
    %c0_i32 = arith.constant 0 : i32
    %c0_i32_0 = arith.constant 0 : i32
    %c0_i32_1 = arith.constant 0 : i32
    return %arg0, %c0_i32, %c0_i32_0 : i32, i32, i32
  }
  func.func @transform_14(%arg0: i32) -> (i32, i32, i32) {
    %c0_i32 = arith.constant 0 : i32
    %c0_i32_0 = arith.constant 0 : i32
    %c0_i32_1 = arith.constant 0 : i32
    return %arg0, %c0_i32, %c0_i32_0 : i32, i32, i32
  }
  func.func @transform_15(%arg0: i32) -> (i32, i32, i32) {
    %c0_i32 = arith.constant 0 : i32
    %c0_i32_0 = arith.constant 0 : i32
    %c0_i32_1 = arith.constant 0 : i32
    return %arg0, %c0_i32, %c0_i32_0 : i32, i32, i32
  }
  func.func @transform_16(%arg0: i32) -> (i32, i32, i32) {
    %c0_i32 = arith.constant 0 : i32
    %c0_i32_0 = arith.constant 0 : i32
    %c0_i32_1 = arith.constant 0 : i32
    return %arg0, %c0_i32, %c0_i32_0 : i32, i32, i32
  }
  func.func @transform_17(%arg0: i32) -> (i32, i32, i32) {
    %c0_i32 = arith.constant 0 : i32
    %c0_i32_0 = arith.constant 0 : i32
    %c0_i32_1 = arith.constant 0 : i32
    return %arg0, %c0_i32, %c0_i32_0 : i32, i32, i32
  }
  func.func @transform_18(%arg0: i32) -> (i32, i32, i32) {
    %c0_i32 = arith.constant 0 : i32
    %c0_i32_0 = arith.constant 0 : i32
    %c0_i32_1 = arith.constant 0 : i32
    return %arg0, %c0_i32, %c0_i32_0 : i32, i32, i32
  }
  func.func @transform_19(%arg0: i32) -> (i32, i32) {
    %c0_i32 = arith.constant 0 : i32
    %c0_i32_0 = arith.constant 0 : i32
    %c0_i32_1 = arith.constant 0 : i32
    return %c0_i32, %c0_i32_0 : i32, i32
  }
  func.func @transform_20(%arg0: i32) -> (i32, i32) {
    %c0_i32 = arith.constant 0 : i32
    %c0_i32_0 = arith.constant 0 : i32
    %c0_i32_1 = arith.constant 0 : i32
    return %c0_i32, %c0_i32_0 : i32, i32
  }
  func.func @transform_21(%arg0: i32) -> (i32, i32) {
    %c0_i32 = arith.constant 0 : i32
    %c0_i32_0 = arith.constant 0 : i32
    %c0_i32_1 = arith.constant 0 : i32
    return %c0_i32, %c0_i32_0 : i32, i32
  }
  func.func @transform_22(%arg0: i32) -> (i32, i32) {
    %c0_i32 = arith.constant 0 : i32
    %c0_i32_0 = arith.constant 0 : i32
    %c0_i32_1 = arith.constant 0 : i32
    return %c0_i32, %c0_i32_0 : i32, i32
  }
}

</mosaic_0001>

<llo_original>
// kernel: tpu_custom_call.1
$region0: #{tpu_custom_call.1}
  #allocation0 [shape = 'u32[]', space=smem, size = 0x4, offset = 0x4, fixed_abs, tag = 'smem constant byte address 0x4 - core index']
  #allocation1 [shape = 'u32[144,128]{1,0:T(1,128)}', space=vmem, size = 0x12000, scoped, tag = 'internal scratch']
  #allocation2 [shape = 'f32[32,128]{1,0:T(8,128)}', space=vmem, size = 0x4000, scoped, tag = 'scratch operand']
  %s0 = inlined_call_operand.hbm [shape: f32[2,16,128], index: 0, kind: input, shape index: {}]
  %s1 = inlined_call_operand.hbm [shape: f32[16,128], index: 1, kind: input, shape index: {}]
  %s2 = inlined_call_operand.hbm [shape: f32[32,128], index: 2, kind: input, shape index: {}]
  %s3 = inlined_call_operand.vmem [shape: bf16[128,32], index: 3, kind: input, shape index: {}]
  %s4 = inlined_call_operand.hbm [shape: f32[128,128], index: 4, kind: input, shape index: {}]
  %s5 = inlined_call_operand.hbm [shape: f32[8,128], index: 5, kind: input, shape index: {}]
  %s6 = inlined_call_operand.vmem [shape: s32[32,1], index: 6, kind: input, shape index: {}]
  %s7 = inlined_call_operand.hbm [shape: f32[2,1,128], index: 7, kind: input, shape index: {}]
  %s8 = inlined_call_operand.hbm [shape: f32[2,1,128], index: 8, kind: input, shape index: {}]
  %s9 = inlined_call_operand.hbm [shape: bf16[2,128,384], index: 9, kind: input, shape index: {}]
  %s10 = inlined_call_operand.hbm [shape: f32[2,1,384], index: 10, kind: input, shape index: {}]
  %s11 = inlined_call_operand.vmem [shape: bf16[2,128,128], index: 11, kind: input, shape index: {}]
  %s12 = inlined_call_operand.vmem [shape: f32[2,1,128], index: 12, kind: input, shape index: {}]
  %s13 = inlined_call_operand.vmem [shape: f32[2,1,128], index: 13, kind: input, shape index: {}]
  %s14 = inlined_call_operand.vmem [shape: f32[2,1,128], index: 14, kind: input, shape index: {}]
  %s15 = inlined_call_operand.hbm [shape: bf16[2,128,256], index: 15, kind: input, shape index: {}]
  %s16 = inlined_call_operand.vmem [shape: f32[2,1,256], index: 16, kind: input, shape index: {}]
  %s17 = inlined_call_operand.hbm [shape: bf16[2,256,128], index: 17, kind: input, shape index: {}]
  %s18 = inlined_call_operand.vmem [shape: f32[2,1,128], index: 18, kind: input, shape index: {}]
  %s19 = inlined_call_operand.vmem [shape: f32[1,128], index: 19, kind: input, shape index: {}]
  %s20 = inlined_call_operand.vmem [shape: f32[1,128], index: 20, kind: input, shape index: {}]
  %s21 = inlined_call_operand.hbm [shape: bf16[128,256], index: 21, kind: input, shape index: {}]
  %s22 = inlined_call_operand.hbm [shape: f32[1,1], index: 22, kind: output, shape index: {}]
  %s23 = sld [smem:[#allocation0]]
  $region177: #{tpu_custom_call.1} parent=0
    _
  %s25 = ssub.s32 1, %s23
  %s26 = scalar_select 0, %s25, %s23
  $region1: #{tpu_custom_call.1} parent=0
    #allocation3 [shape = 'u8[16384]{0}', space=vmem, size = 0x4000, scoped, tag = 'input window, operand 0, single buffered']
    #allocation4 [shape = 's32[2]{0}', space=sflag, size = 0x8, scoped, tag = 'scoped memory for tpu_custom_call.1']
    #allocation5 [shape = 's32[2]{0}', space=sflag, size = 0x8, scoped, tag = 'scoped memory for tpu_custom_call.1']
    #allocation6 [shape = 'u8[8192]{0}', space=vmem, size = 0x2000, scoped, tag = 'input window, operand 1, single buffered']
    #allocation7 [shape = 's32[1]{0}', space=sflag, size = 0x4, scoped, tag = 'scoped memory for tpu_custom_call.1']
    #allocation8 [shape = 'u8[16384]{0}', space=vmem, size = 0x4000, scoped, tag = 'input window, operand 2, single buffered']
    #allocation9 [shape = 'u8[65536]{0}', space=vmem, size = 0x10000, scoped, tag = 'input window, operand 4, single buffered']
    #allocation10 [shape = 's32[1]{0}', space=sflag, size = 0x4, scoped, tag = 'scoped memory for tpu_custom_call.1']
    #allocation11 [shape = 'u8[4096]{0}', space=vmem, size = 0x1000, scoped, tag = 'input window, operand 5, single buffered']
    #allocation12 [shape = 'u8[1024]{0}', space=vmem, size = 0x400, scoped, tag = 'input window, operand 7']
    #allocation13 [shape = 's32[2]{0}', space=sflag, size = 0x8, scoped, tag = 'scoped memory for tpu_custom_call.1']
    #allocation14 [shape = 'u8[1024]{0}', space=vmem, size = 0x400, scoped, tag = 'input window, operand 8']
    #allocation15 [shape = 'u8[196608]{0}', space=vmem, size = 0x30000, scoped, tag = 'input window, operand 9']
    #allocation16 [shape = 's32[2]{0}', space=sflag, size = 0x8, scoped, tag = 'scoped memory for tpu_custom_call.1']
    #allocation17 [shape = 'u8[3072]{0}', space=vmem, size = 0xc00, scoped, tag = 'input window, operand 10']
    #allocation18 [shape = 'u8[131072]{0}', space=vmem, size = 0x20000, scoped, tag = 'input window, operand 15']
    #allocation19 [shape = 's32[2]{0}', space=sflag, size = 0x8, scoped, tag = 'scoped memory for tpu_custom_call.1']
    #allocation20 [shape = 'u8[131072]{0}', space=vmem, size = 0x20000, scoped, tag = 'input window, operand 17']
    #allocation21 [shape = 'u8[65536]{0}', space=vmem, size = 0x10000, scoped, tag = 'input window, operand 21, single buffered']
    #allocation22 [shape = 's32[1]{0}', space=sflag, size = 0x4, scoped, tag = 'scoped memory for tpu_custom_call.1']
    #allocation23 [shape = 'u8[512]{0}', space=vmem, size = 0x400, scoped, tag = 'output window, operand 0, single buffered']
    %27 = vsyncpa [#allocation4], 0
    %28 = vsyncpa [#allocation7], 0
    %29 = vsyncpa [#allocation10], 0
    %30 = vsyncpa [#allocation13], 0
    %s31 = scalar_lea.sflag [#allocation13], 1
    %32 = vsyncpa %s31, 0
    %33 = vsyncpa [#allocation16], 0
    %s34 = scalar_lea.sflag [#allocation16], 1
    %35 = vsyncpa %s34, 0
    %36 = vsyncpa [#allocation19], 0
    %s37 = scalar_lea.sflag [#allocation19], 1
    %38 = vsyncpa %s37, 0
    %39 = vsyncpa [#allocation22], 0
    %40 = vsyncpa [#allocation5], 0
    loop: start=0, step=1, limit=4
    $region2: #{tpu_custom_call.1} parent=1 // loop_pre_header
      _
    $region3: #{tpu_custom_call.1} parent=1 // loop_header
      %s42 = sphi 0, %s46
      %p43 = scmp.ge.s32.totalorder %s42, 4
      %s50 = sphi 0, %s50
      %s52 = sphi 0, %s50
      %s53 = sphi 0, %s52
      %s67 = sphi 0, %s53
      %s71 = sphi 0, %s71
      %s73 = sphi 0, %s71
      %s74 = sphi 0, %s73
      %s88 = sphi 0, %s74
      %s92 = sphi 0, %s92
      %s94 = sphi 0, %s92
      %s95 = sphi 0, %s94
      %s109 = sphi 0, %s95
      %s113 = sphi 0, %s113
      %s115 = sphi 0, %s113
      %s116 = sphi 0, %s115
      %s130 = sphi 0, %s116
      %s134 = sphi 0, %s134
      %s136 = sphi 0, %s134
      %s137 = sphi 0, %s136
      %s151 = sphi 0, %s137
      %s155 = sphi 0, %s155
      %s157 = sphi 0, %s155
      %s158 = sphi 0, %s157
      %s172 = sphi 0, %s158
      %s176 = sphi 0, %s176
      %s178 = sphi 0, %s176
      %s179 = sphi 0, %s178
      %s193 = sphi 0, %s179
      %s199 = sphi 0, %s201
      %s202 = sphi 0, %s199
      %s203 = sphi 0, %s202
      %s219 = sphi 0, %s203
      %s225 = sphi 0, %s227
      %s228 = sphi 0, %s225
      %s229 = sphi 0, %s228
      %s245 = sphi 0, %s229
      %s251 = sphi 0, %s253
      %s254 = sphi 0, %s251
      %s255 = sphi 0, %s254
      %s271 = sphi 0, %s255
      %s277 = sphi 0, %s279
      %s280 = sphi 0, %s277
      %s281 = sphi 0, %s280
      %s297 = sphi 0, %s281
      %s303 = sphi 0, %s305
      %s306 = sphi 0, %s303
      %s307 = sphi 0, %s306
      %s323 = sphi 0, %s307
      %s329 = sphi 0, %s331
      %s332 = sphi 0, %s329
      %s333 = sphi 0, %s332
      %s349 = sphi 0, %s333
      %s355 = sphi 0, %s357
      %s358 = sphi 0, %s355
      %s359 = sphi 0, %s358
      %s375 = sphi 0, %s359
      %s381 = sphi 0, %s383
      %s384 = sphi 0, %s381
      %s385 = sphi 0, %s384
      %s401 = sphi 0, %s385
      %s407 = sphi 0, %s409
      %s410 = sphi 0, %s407
      %s411 = sphi 0, %s410
      %s427 = sphi 0, %s411
      %s433 = sphi 0, %s435
      %s436 = sphi 0, %s433
      %s437 = sphi 0, %s436
      %s453 = sphi 0, %s437
      %s459 = sphi 0, %s461
      %s462 = sphi 0, %s459
      %s463 = sphi 0, %s462
      %s479 = sphi 0, %s463
      %s485 = sphi 0, %s487
      %s488 = sphi 0, %s485
      %s489 = sphi 0, %s488
      %s505 = sphi 0, %s489
      %s509 = sphi 0, %s509
      %s511 = sphi 0, %s509
      %s512 = sphi 0, %s511
      %s526 = sphi 0, %s512
      %s530 = sphi 0, %s530
      %s532 = sphi 0, %s530
      %s533 = sphi 0, %s532
      %s547 = sphi 0, %s533
      %s551 = sphi 0, %s551
      %s553 = sphi 0, %s551
      %s554 = sphi 0, %s553
      %s568 = sphi 0, %s554
      %s572 = sphi 0, %s572
      %s574 = sphi 0, %s572
      %s575 = sphi 0, %s574
      %s589 = sphi 0, %s575
    $region4: #{tpu_custom_call.1} parent=1 // loop_header_branch
      %45 = sbr.rel (%p43) target = $region8
    $region5: #{tpu_custom_call.1} parent=1 // loop_body
      %s47 = ssub.s32 %s42, 1
      %s48 = ssub.s32 %s42, 2
      %s49 = sadd.s32 %s42, 1
      %s51 = sadd.s32 %s50, 1
      %p54 = scmp.eq.s32.totalorder %s42, 1
      %p55 = scmp.ne.s32.totalorder %s50, %s52
      %p56 = scmp.eq.s32.totalorder %s42, 0
      %p57 = por %p55, %p56
      %p58 = scmp.ne.s32.totalorder %s50, %s52
      %p59 = scmp.eq.s32.totalorder %s47, 1
      %p60 = por %p58, %p59
      %p61 = scmp.ne.s32.totalorder %s52, %s53
      %p62 = scmp.eq.s32.totalorder %s47, 0
      %p63 = por %p61, %p62
      %p64 = scmp.ne.s32.totalorder %s52, %s53
      %p65 = scmp.eq.s32.totalorder %s48, 1
      %p66 = por %p64, %p65
      %p68 = scmp.ne.s32.totalorder %s53, %s67
      %p69 = scmp.eq.s32.totalorder %s48, 0
      %p70 = por %p68, %p69
      %s72 = sadd.s32 %s71, 1
      %p75 = scmp.eq.s32.totalorder %s42, 1
      %p76 = scmp.ne.s32.totalorder %s71, %s73
      %p77 = scmp.eq.s32.totalorder %s42, 0
      %p78 = por %p76, %p77
      %p79 = scmp.ne.s32.totalorder %s71, %s73
      %p80 = scmp.eq.s32.totalorder %s47, 1
      %p81 = por %p79, %p80
      %p82 = scmp.ne.s32.totalorder %s73, %s74
      %p83 = scmp.eq.s32.totalorder %s47, 0
      %p84 = por %p82, %p83
      %p85 = scmp.ne.s32.totalorder %s73, %s74
      %p86 = scmp.eq.s32.totalorder %s48, 1
      %p87 = por %p85, %p86
      %p89 = scmp.ne.s32.totalorder %s74, %s88
      %p90 = scmp.eq.s32.totalorder %s48, 0
      %p91 = por %p89, %p90
      %s93 = sadd.s32 %s92, 1
      %p96 = scmp.eq.s32.totalorder %s42, 1
      %p97 = scmp.ne.s32.totalorder %s92, %s94
      %p98 = scmp.eq.s32.totalorder %s42, 0
      %p99 = por %p97, %p98
      %p100 = scmp.ne.s32.totalorder %s92, %s94
      %p101 = scmp.eq.s32.totalorder %s47, 1
      %p102 = por %p100, %p101
      %p103 = scmp.ne.s32.totalorder %s94, %s95
      %p104 = scmp.eq.s32.totalorder %s47, 0
      %p105 = por %p103, %p104
      %p106 = scmp.ne.s32.totalorder %s94, %s95
      %p107 = scmp.eq.s32.totalorder %s48, 1
      %p108 = por %p106, %p107
      %p110 = scmp.ne.s32.totalorder %s95, %s109
      %p111 = scmp.eq.s32.totalorder %s48, 0
      %p112 = por %p110, %p111
      %s114 = sadd.s32 %s113, 1
      %p117 = scmp.eq.s32.totalorder %s42, 1
      %p118 = scmp.ne.s32.totalorder %s113, %s115
      %p119 = scmp.eq.s32.totalorder %s42, 0
      %p120 = por %p118, %p119
      %p121 = scmp.ne.s32.totalorder %s113, %s115
      %p122 = scmp.eq.s32.totalorder %s47, 1
      %p123 = por %p121, %p122
      %p124 = scmp.ne.s32.totalorder %s115, %s116
      %p125 = scmp.eq.s32.totalorder %s47, 0
      %p126 = por %p124, %p125
      %p127 = scmp.ne.s32.totalorder %s115, %s116
      %p128 = scmp.eq.s32.totalorder %s48, 1
      %p129 = por %p127, %p128
      %p131 = scmp.ne.s32.totalorder %s116, %s130
      %p132 = scmp.eq.s32.totalorder %s48, 0
      %p133 = por %p131, %p132
      %s135 = sadd.s32 %s134, 1
      %p138 = scmp.eq.s32.totalorder %s42, 1
      %p139 = scmp.ne.s32.totalorder %s134, %s136
      %p140 = scmp.eq.s32.totalorder %s42, 0
      %p141 = por %p139, %p140
      %p142 = scmp.ne.s32.totalorder %s134, %s136
      %p143 = scmp.eq.s32.totalorder %s47, 1
      %p144 = por %p142, %p143
      %p145 = scmp.ne.s32.totalorder %s136, %s137
      %p146 = scmp.eq.s32.totalorder %s47, 0
      %p147 = por %p145, %p146
      %p148 = scmp.ne.s32.totalorder %s136, %s137
      %p149 = scmp.eq.s32.totalorder %s48, 1
      %p150 = por %p148, %p149
      %p152 = scmp.ne.s32.totalorder %s137, %s151
      %p153 = scmp.eq.s32.totalorder %s48, 0
      %p154 = por %p152, %p153
      %s156 = sadd.s32 %s155, 1
      %p159 = scmp.eq.s32.totalorder %s42, 1
      %p160 = scmp.ne.s32.totalorder %s155, %s157
      %p161 = scmp.eq.s32.totalorder %s42, 0
      %p162 = por %p160, %p161
      %p163 = scmp.ne.s32.totalorder %s155, %s157
      %p164 = scmp.eq.s32.totalorder %s47, 1
      %p165 = por %p163, %p164
      %p166 = scmp.ne.s32.totalorder %s157, %s158
      %p167 = scmp.eq.s32.totalorder %s47, 0
      %p168 = por %p166, %p167
      %p169 = scmp.ne.s32.totalorder %s157, %s158
      %p170 = scmp.eq.s32.totalorder %s48, 1
      %p171 = por %p169, %p170
      %p173 = scmp.ne.s32.totalorder %s158, %s172
      %p174 = scmp.eq.s32.totalorder %s48, 0
      %p175 = por %p173, %p174
      %s177 = sadd.s32 %s176, 1
      %p180 = scmp.eq.s32.totalorder %s42, 1
      %p181 = scmp.ne.s32.totalorder %s176, %s178
      %p182 = scmp.eq.s32.totalorder %s42, 0
      %p183 = por %p181, %p182
      %p184 = scmp.ne.s32.totalorder %s176, %s178
      %p185 = scmp.eq.s32.totalorder %s47, 1
      %p186 = por %p184, %p185
      %p187 = scmp.ne.s32.totalorder %s178, %s179
      %p188 = scmp.eq.s32.totalorder %s47, 0
      %p189 = por %p187, %p188
      %p190 = scmp.ne.s32.totalorder %s178, %s179
      %p191 = scmp.eq.s32.totalorder %s48, 1
      %p192 = por %p190, %p191
      %p194 = scmp.ne.s32.totalorder %s179, %s193
      %p195 = scmp.eq.s32.totalorder %s48, 0
      %p196 = por %p194, %p195
      %s197 = ssub.s32 %s42, %s49
      %p198 = scmp.eq.s32.totalorder %s197, 0
      %s200 = sadd.s32 %s199, 1
      %s201 = scalar_select %p198, %s199, %s200
      %p204 = pneg %p198
      %p205 = scmp.eq.s32.totalorder %s42, 1
      %p206 = por %p204, %p205
      %p207 = scmp.ne.s32.totalorder %s199, %s202
      %p208 = scmp.eq.s32.totalorder %s42, 0
      %p209 = por %p207, %p208
      %p210 = scmp.ne.s32.totalorder %s199, %s202
      %p211 = scmp.eq.s32.totalorder %s47, 1
      %p212 = por %p210, %p211
      %p213 = scmp.ne.s32.totalorder %s202, %s203
      %p214 = scmp.eq.s32.totalorder %s47, 0
      %p215 = por %p213, %p214
      %p216 = scmp.ne.s32.totalorder %s202, %s203
      %p217 = scmp.eq.s32.totalorder %s48, 1
      %p218 = por %p216, %p217
      %p220 = scmp.ne.s32.totalorder %s203, %s219
      %p221 = scmp.eq.s32.totalorder %s48, 0
      %p222 = por %p220, %p221
      %s223 = ssub.s32 %s42, %s49
      %p224 = scmp.eq.s32.totalorder %s223, 0
      %s226 = sadd.s32 %s225, 1
      %s227 = scalar_select %p224, %s225, %s226
      %p230 = pneg %p224
      %p231 = scmp.eq.s32.totalorder %s42, 1
      %p232 = por %p230, %p231
      %p233 = scmp.ne.s32.totalorder %s225, %s228
      %p234 = scmp.eq.s32.totalorder %s42, 0
      %p235 = por %p233, %p234
      %p236 = scmp.ne.s32.totalorder %s225, %s228
      %p237 = scmp.eq.s32.totalorder %s47, 1
      %p238 = por %p236, %p237
      %p239 = scmp.ne.s32.totalorder %s228, %s229
      %p240 = scmp.eq.s32.totalorder %s47, 0
      %p241 = por %p239, %p240
      %p242 = scmp.ne.s32.totalorder %s228, %s229
      %p243 = scmp.eq.s32.totalorder %s48, 1
      %p244 = por %p242, %p243
      %p246 = scmp.ne.s32.totalorder %s229, %s245
      %p247 = scmp.eq.s32.totalorder %s48, 0
      %p248 = por %p246, %p247
      %s249 = ssub.s32 %s42, %s49
      %p250 = scmp.eq.s32.totalorder %s249, 0
      %s252 = sadd.s32 %s251, 1
      %s253 = scalar_select %p250, %s251, %s252
      %p256 = pneg %p250
      %p257 = scmp.eq.s32.totalorder %s42, 1
      %p258 = por %p256, %p257
      %p259 = scmp.ne.s32.totalorder %s251, %s254
      %p260 = scmp.eq.s32.totalorder %s42, 0
      %p261 = por %p259, %p260
      %p262 = scmp.ne.s32.totalorder %s251, %s254
      %p263 = scmp.eq.s32.totalorder %s47, 1
      %p264 = por %p262, %p263
      %p265 = scmp.ne.s32.totalorder %s254, %s255
      %p266 = scmp.eq.s32.totalorder %s47, 0
      %p267 = por %p265, %p266
      %p268 = scmp.ne.s32.totalorder %s254, %s255
      %p269 = scmp.eq.s32.totalorder %s48, 1
      %p270 = por %p268, %p269
      %p272 = scmp.ne.s32.totalorder %s255, %s271
      %p273 = scmp.eq.s32.totalorder %s48, 0
      %p274 = por %p272, %p273
      %s275 = ssub.s32 %s42, %s49
      %p276 = scmp.eq.s32.totalorder %s275, 0
      %s278 = sadd.s32 %s277, 1
      %s279 = scalar_select %p276, %s277, %s278
      %p282 = pneg %p276
      %p283 = scmp.eq.s32.totalorder %s42, 1
      %p284 = por %p282, %p283
      %p285 = scmp.ne.s32.totalorder %s277, %s280
      %p286 = scmp.eq.s32.totalorder %s42, 0
      %p287 = por %p285, %p286
      %p288 = scmp.ne.s32.totalorder %s277, %s280
      %p289 = scmp.eq.s32.totalorder %s47, 1
      %p290 = por %p288, %p289
      %p291 = scmp.ne.s32.totalorder %s280, %s281
      %p292 = scmp.eq.s32.totalorder %s47, 0
      %p293 = por %p291, %p292
      %p294 = scmp.ne.s32.totalorder %s280, %s281
      %p295 = scmp.eq.s32.totalorder %s48, 1
      %p296 = por %p294, %p295
      %p298 = scmp.ne.s32.totalorder %s281, %s297
      %p299 = scmp.eq.s32.totalorder %s48, 0
      %p300 = por %p298, %p299
      %s301 = ssub.s32 %s42, %s49
      %p302 = scmp.eq.s32.totalorder %s301, 0
      %s304 = sadd.s32 %s303, 1
      %s305 = scalar_select %p302, %s303, %s304
      %p308 = pneg %p302
      %p309 = scmp.eq.s32.totalorder %s42, 1
      %p310 = por %p308, %p309
      %p311 = scmp.ne.s32.totalorder %s303, %s306
      %p312 = scmp.eq.s32.totalorder %s42, 0
      %p313 = por %p311, %p312
      %p314 = scmp.ne.s32.totalorder %s303, %s306
      %p315 = scmp.eq.s32.totalorder %s47, 1
      %p316 = por %p314, %p315
      %p317 = scmp.ne.s32.totalorder %s306, %s307
      %p318 = scmp.eq.s32.totalorder %s47, 0
      %p319 = por %p317, %p318
      %p320 = scmp.ne.s32.totalorder %s306, %s307
      %p321 = scmp.eq.s32.totalorder %s48, 1
      %p322 = por %p320, %p321
      %p324 = scmp.ne.s32.totalorder %s307, %s323
      %p325 = scmp.eq.s32.totalorder %s48, 0
      %p326 = por %p324, %p325
      %s327 = ssub.s32 %s42, %s49
      %p328 = scmp.eq.s32.totalorder %s327, 0
      %s330 = sadd.s32 %s329, 1
      %s331 = scalar_select %p328, %s329, %s330
      %p334 = pneg %p328
      %p335 = scmp.eq.s32.totalorder %s42, 1
      %p336 = por %p334, %p335
      %p337 = scmp.ne.s32.totalorder %s329, %s332
      %p338 = scmp.eq.s32.totalorder %s42, 0
      %p339 = por %p337, %p338
      %p340 = scmp.ne.s32.totalorder %s329, %s332
      %p341 = scmp.eq.s32.totalorder %s47, 1
      %p342 = por %p340, %p341
      %p343 = scmp.ne.s32.totalorder %s332, %s333
      %p344 = scmp.eq.s32.totalorder %s47, 0
      %p345 = por %p343, %p344
      %p346 = scmp.ne.s32.totalorder %s332, %s333
      %p347 = scmp.eq.s32.totalorder %s48, 1
      %p348 = por %p346, %p347
      %p350 = scmp.ne.s32.totalorder %s333, %s349
      %p351 = scmp.eq.s32.totalorder %s48, 0
      %p352 = por %p350, %p351
      %s353 = ssub.s32 %s42, %s49
      %p354 = scmp.eq.s32.totalorder %s353, 0
      %s356 = sadd.s32 %s355, 1
      %s357 = scalar_select %p354, %s355, %s356
      %p360 = pneg %p354
      %p361 = scmp.eq.s32.totalorder %s42, 1
      %p362 = por %p360, %p361
      %p363 = scmp.ne.s32.totalorder %s355, %s358
      %p364 = scmp.eq.s32.totalorder %s42, 0
      %p365 = por %p363, %p364
      %p366 = scmp.ne.s32.totalorder %s355, %s358
      %p367 = scmp.eq.s32.totalorder %s47, 1
      %p368 = por %p366, %p367
      %p369 = scmp.ne.s32.totalorder %s358, %s359
      %p370 = scmp.eq.s32.totalorder %s47, 0
      %p371 = por %p369, %p370
      %p372 = scmp.ne.s32.totalorder %s358, %s359
      %p373 = scmp.eq.s32.totalorder %s48, 1
      %p374 = por %p372, %p373
      %p376 = scmp.ne.s32.totalorder %s359, %s375
      %p377 = scmp.eq.s32.totalorder %s48, 0
      %p378 = por %p376, %p377
      %s379 = ssub.s32 %s42, %s49
      %p380 = scmp.eq.s32.totalorder %s379, 0
      %s382 = sadd.s32 %s381, 1
      %s383 = scalar_select %p380, %s381, %s382
      %p386 = pneg %p380
      %p387 = scmp.eq.s32.totalorder %s42, 1
      %p388 = por %p386, %p387
      %p389 = scmp.ne.s32.totalorder %s381, %s384
      %p390 = scmp.eq.s32.totalorder %s42, 0
      %p391 = por %p389, %p390
      %p392 = scmp.ne.s32.totalorder %s381, %s384
      %p393 = scmp.eq.s32.totalorder %s47, 1
      %p394 = por %p392, %p393
      %p395 = scmp.ne.s32.totalorder %s384, %s385
      %p396 = scmp.eq.s32.totalorder %s47, 0
      %p397 = por %p395, %p396
      %p398 = scmp.ne.s32.totalorder %s384, %s385
      %p399 = scmp.eq.s32.totalorder %s48, 1
      %p400 = por %p398, %p399
      %p402 = scmp.ne.s32.totalorder %s385, %s401
      %p403 = scmp.eq.s32.totalorder %s48, 0
      %p404 = por %p402, %p403
      %s405 = ssub.s32 %s42, %s49
      %p406 = scmp.eq.s32.totalorder %s405, 0
      %s408 = sadd.s32 %s407, 1
      %s409 = scalar_select %p406, %s407, %s408
      %p412 = pneg %p406
      %p413 = scmp.eq.s32.totalorder %s42, 1
      %p414 = por %p412, %p413
      %p415 = scmp.ne.s32.totalorder %s407, %s410
      %p416 = scmp.eq.s32.totalorder %s42, 0
      %p417 = por %p415, %p416
      %p418 = scmp.ne.s32.totalorder %s407, %s410
      %p419 = scmp.eq.s32.totalorder %s47, 1
      %p420 = por %p418, %p419
      %p421 = scmp.ne.s32.totalorder %s410, %s411
      %p422 = scmp.eq.s32.totalorder %s47, 0
      %p423 = por %p421, %p422
      %p424 = scmp.ne.s32.totalorder %s410, %s411
      %p425 = scmp.eq.s32.totalorder %s48, 1
      %p426 = por %p424, %p425
      %p428 = scmp.ne.s32.totalorder %s411, %s427
      %p429 = scmp.eq.s32.totalorder %s48, 0
      %p430 = por %p428, %p429
      %s431 = ssub.s32 %s42, %s49
      %p432 = scmp.eq.s32.totalorder %s431, 0
      %s434 = sadd.s32 %s433, 1
      %s435 = scalar_select %p432, %s433, %s434
      %p438 = pneg %p432
      %p439 = scmp.eq.s32.totalorder %s42, 1
      %p440 = por %p438, %p439
      %p441 = scmp.ne.s32.totalorder %s433, %s436
      %p442 = scmp.eq.s32.totalorder %s42, 0
      %p443 = por %p441, %p442
      %p444 = scmp.ne.s32.totalorder %s433, %s436
      %p445 = scmp.eq.s32.totalorder %s47, 1
      %p446 = por %p444, %p445
      %p447 = scmp.ne.s32.totalorder %s436, %s437
      %p448 = scmp.eq.s32.totalorder %s47, 0
      %p449 = por %p447, %p448
      %p450 = scmp.ne.s32.totalorder %s436, %s437
      %p451 = scmp.eq.s32.totalorder %s48, 1
      %p452 = por %p450, %p451
      %p454 = scmp.ne.s32.totalorder %s437, %s453
      %p455 = scmp.eq.s32.totalorder %s48, 0
      %p456 = por %p454, %p455
      %s457 = ssub.s32 %s42, %s49
      %p458 = scmp.eq.s32.totalorder %s457, 0
      %s460 = sadd.s32 %s459, 1
      %s461 = scalar_select %p458, %s459, %s460
      %p464 = pneg %p458
      %p465 = scmp.eq.s32.totalorder %s42, 1
      %p466 = por %p464, %p465
      %p467 = scmp.ne.s32.totalorder %s459, %s462
      %p468 = scmp.eq.s32.totalorder %s42, 0
      %p469 = por %p467, %p468
      %p470 = scmp.ne.s32.totalorder %s459, %s462
      %p471 = scmp.eq.s32.totalorder %s47, 1
      %p472 = por %p470, %p471
      %p473 = scmp.ne.s32.totalorder %s462, %s463
      %p474 = scmp.eq.s32.totalorder %s47, 0
      %p475 = por %p473, %p474
      %p476 = scmp.ne.s32.totalorder %s462, %s463
      %p477 = scmp.eq.s32.totalorder %s48, 1
      %p478 = por %p476, %p477
      %p480 = scmp.ne.s32.totalorder %s463, %s479
      %p481 = scmp.eq.s32.totalorder %s48, 0
      %p482 = por %p480, %p481
      %s483 = ssub.s32 %s42, %s49
      %p484 = scmp.eq.s32.totalorder %s483, 0
      %s486 = sadd.s32 %s485, 1
      %s487 = scalar_select %p484, %s485, %s486
      %p490 = pneg %p484
      %p491 = scmp.eq.s32.totalorder %s42, 1
      %p492 = por %p490, %p491
      %p493 = scmp.ne.s32.totalorder %s485, %s488
      %p494 = scmp.eq.s32.totalorder %s42, 0
      %p495 = por %p493, %p494
      %p496 = scmp.ne.s32.totalorder %s485, %s488
      %p497 = scmp.eq.s32.totalorder %s47, 1
      %p498 = por %p496, %p497
      %p499 = scmp.ne.s32.totalorder %s488, %s489
      %p500 = scmp.eq.s32.totalorder %s47, 0
      %p501 = por %p499, %p500
      %p502 = scmp.ne.s32.totalorder %s488, %s489
      %p503 = scmp.eq.s32.totalorder %s48, 1
      %p504 = por %p502, %p503
      %p506 = scmp.ne.s32.totalorder %s489, %s505
      %p507 = scmp.eq.s32.totalorder %s48, 0
      %p508 = por %p506, %p507
      %s510 = sadd.s32 %s509, 1
      %p513 = scmp.eq.s32.totalorder %s42, 1
      %p514 = scmp.ne.s32.totalorder %s509, %s511
      %p515 = scmp.eq.s32.totalorder %s42, 0
      %p516 = por %p514, %p515
      %p517 = scmp.ne.s32.totalorder %s509, %s511
      %p518 = scmp.eq.s32.totalorder %s47, 1
      %p519 = por %p517, %p518
      %p520 = scmp.ne.s32.totalorder %s511, %s512
      %p521 = scmp.eq.s32.totalorder %s47, 0
      %p522 = por %p520, %p521
      %p523 = scmp.ne.s32.totalorder %s511, %s512
      %p524 = scmp.eq.s32.totalorder %s48, 1
      %p525 = por %p523, %p524
      %p527 = scmp.ne.s32.totalorder %s512, %s526
      %p528 = scmp.eq.s32.totalorder %s48, 0
      %p529 = por %p527, %p528
      %s531 = sadd.s32 %s530, 1
      %p534 = scmp.eq.s32.totalorder %s42, 1
      %p535 = scmp.ne.s32.totalorder %s530, %s532
      %p536 = scmp.eq.s32.totalorder %s42, 0
      %p537 = por %p535, %p536
      %p538 = scmp.ne.s32.totalorder %s530, %s532
      %p539 = scmp.eq.s32.totalorder %s47, 1
      %p540 = por %p538, %p539
      %p541 = scmp.ne.s32.totalorder %s532, %s533
      %p542 = scmp.eq.s32.totalorder %s47, 0
      %p543 = por %p541, %p542
      %p544 = scmp.ne.s32.totalorder %s532, %s533
      %p545 = scmp.eq.s32.totalorder %s48, 1
      %p546 = por %p544, %p545
      %p548 = scmp.ne.s32.totalorder %s533, %s547
      %p549 = scmp.eq.s32.totalorder %s48, 0
      %p550 = por %p548, %p549
      %s552 = sadd.s32 %s551, 1
      %p555 = scmp.eq.s32.totalorder %s42, 1
      %p556 = scmp.ne.s32.totalorder %s551, %s553
      %p557 = scmp.eq.s32.totalorder %s42, 0
      %p558 = por %p556, %p557
      %p559 = scmp.ne.s32.totalorder %s551, %s553
      %p560 = scmp.eq.s32.totalorder %s47, 1
      %p561 = por %p559, %p560
      %p562 = scmp.ne.s32.totalorder %s553, %s554
      %p563 = scmp.eq.s32.totalorder %s47, 0
      %p564 = por %p562, %p563
      %p565 = scmp.ne.s32.totalorder %s553, %s554
      %p566 = scmp.eq.s32.totalorder %s48, 1
      %p567 = por %p565, %p566
      %p569 = scmp.ne.s32.totalorder %s554, %s568
      %p570 = scmp.eq.s32.totalorder %s48, 0
      %p571 = por %p569, %p570
      %s573 = sadd.s32 %s572, 1
      %p576 = scmp.eq.s32.totalorder %s42, 1
      %p577 = scmp.ne.s32.totalorder %s572, %s574
      %p578 = scmp.eq.s32.totalorder %s42, 0
      %p579 = por %p577, %p578
      %p580 = scmp.ne.s32.totalorder %s572, %s574
      %p581 = scmp.eq.s32.totalorder %s47, 1
      %p582 = por %p580, %p581
      %p583 = scmp.ne.s32.totalorder %s574, %s575
      %p584 = scmp.eq.s32.totalorder %s47, 0
      %p585 = por %p583, %p584
      %p586 = scmp.ne.s32.totalorder %s574, %s575
      %p587 = scmp.eq.s32.totalorder %s48, 1
      %p588 = por %p586, %p587
      %p590 = scmp.ne.s32.totalorder %s575, %s589
      %p591 = scmp.eq.s32.totalorder %s48, 0
      %p592 = por %p590, %p591
      %p593 = scmp.le.s32.totalorder 1, %s42
      %p594 = scmp.lt.s32.totalorder %s42, 3
      %p595 = pnand %p593, %p594
      %p596 = pneg %p595
      // Predicated region
      $region9: #{tpu_custom_call.1} parent=5 // pred_check
        _
      $region10: #{tpu_custom_call.1} parent=5 // pred_check_branch
        %598 = sbr.rel (%p595) target = $region12
      $region11: #{tpu_custom_call.1} parent=5 // pred_region
        %s599 = ssub.s32 %s42, 1
        // Predicated region
        $region13: #{tpu_custom_call.1} parent=11 // pred_check
          %p600 = pneg %p63
        $region14: #{tpu_custom_call.1} parent=11 // pred_check_branch
          %602 = sbr.rel (%p600) target = $region16
        $region15: #{tpu_custom_call.1} parent=11 // pred_region
          %s604 = ssub.s32 512, 512
          %605 = vsyncadd [#allocation4], %s604
          %s606 = sshll.u32 [#allocation3], 4
          %s607 = int_to_ptr.vmem [resolvable:$true] %s606
          %612 = dma.hbm_to_vmem [thread:$0]  %s0, 512, %s607, [#allocation4], 128, 128, 8
        $region16: #{tpu_custom_call.1} parent=11 // pred_fallthru
          _
        // Predicated region
        $region17: #{tpu_custom_call.1} parent=11 // pred_check
          %p613 = pneg %p84
        $region18: #{tpu_custom_call.1} parent=11 // pred_check_branch
          %615 = sbr.rel (%p613) target = $region20
        $region19: #{tpu_custom_call.1} parent=11 // pred_region
          %s617 = ssub.s32 256, 256
          %618 = vsyncadd [#allocation7], %s617
          %s619 = sshll.u32 [#allocation6], 4
          %s620 = int_to_ptr.vmem [resolvable:$true] %s619
          %625 = dma.hbm_to_vmem [thread:$0]  %s1, 256, %s620, [#allocation7], 128, 128, 8
        $region20: #{tpu_custom_call.1} parent=11 // pred_fallthru
          _
        // Predicated region
        $region21: #{tpu_custom_call.1} parent=11 // pred_check
          %p626 = pneg %p105
        $region22: #{tpu_custom_call.1} parent=11 // pred_check_branch
          %628 = sbr.rel (%p626) target = $region24
        $region23: #{tpu_custom_call.1} parent=11 // pred_region
          %s630 = ssub.s32 512, 512
          %631 = vsyncadd [#allocation7], %s630
          %s632 = sshll.u32 [#allocation8], 4
          %s633 = int_to_ptr.vmem [resolvable:$true] %s632
          %638 = dma.hbm_to_vmem [thread:$0]  %s2, 512, %s633, [#allocation7], 128, 128, 8
        $region24: #{tpu_custom_call.1} parent=11 // pred_fallthru
          _
        // Predicated region
        $region25: #{tpu_custom_call.1} parent=11 // pred_check
          %p639 = pneg %p126
        $region26: #{tpu_custom_call.1} parent=11 // pred_check_branch
          %641 = sbr.rel (%p639) target = $region28
        $region27: #{tpu_custom_call.1} parent=11 // pred_region
          _
        $region28: #{tpu_custom_call.1} parent=11 // pred_fallthru
          _
        // Predicated region
        $region29: #{tpu_custom_call.1} parent=11 // pred_check
          %p642 = pneg %p147
        $region30: #{tpu_custom_call.1} parent=11 // pred_check_branch
          %644 = sbr.rel (%p642) target = $region32
        $region31: #{tpu_custom_call.1} parent=11 // pred_region
          %s646 = ssub.s32 2048, 2048
          %647 = vsyncadd [#allocation10], %s646
          %s648 = sshll.u32 [#allocation9], 4
          %s649 = int_to_ptr.vmem [resolvable:$true] %s648
          %654 = dma.hbm_to_vmem [thread:$0]  %s4, 2048, %s649, [#allocation10], 128, 128, 8
        $region32: #{tpu_custom_call.1} parent=11 // pred_fallthru
          _
        // Predicated region
        $region33: #{tpu_custom_call.1} parent=11 // pred_check
          %p655 = pneg %p168
        $region34: #{tpu_custom_call.1} parent=11 // pred_check_branch
          %657 = sbr.rel (%p655) target = $region36
        $region35: #{tpu_custom_call.1} parent=11 // pred_region
          %s659 = ssub.s32 128, 128
          %660 = vsyncadd [#allocation10], %s659
          %s662 = sshll.u32 [#allocation11], 4
          %s663 = int_to_ptr.vmem [resolvable:$true] %s662
          %665 = dma.hbm_to_vmem [thread:$0]  %s5, 128, %s663, [#allocation10]
        $region36: #{tpu_custom_call.1} parent=11 // pred_fallthru
          _
        // Predicated region
        $region37: #{tpu_custom_call.1} parent=11 // pred_check
          %p666 = pneg %p189
        $region38: #{tpu_custom_call.1} parent=11 // pred_check_branch
          %668 = sbr.rel (%p666) target = $region40
        $region39: #{tpu_custom_call.1} parent=11 // pred_region
          _
        $region40: #{tpu_custom_call.1} parent=11 // pred_fallthru
          _
        // Predicated region
        $region41: #{tpu_custom_call.1} parent=11 // pred_check
          %p669 = pneg %p522
        $region42: #{tpu_custom_call.1} parent=11 // pred_check_branch
          %671 = sbr.rel (%p669) target = $region44
        $region43: #{tpu_custom_call.1} parent=11 // pred_region
          _
        $region44: #{tpu_custom_call.1} parent=11 // pred_fallthru
          _
        // Predicated region
        $region45: #{tpu_custom_call.1} parent=11 // pred_check
          %p672 = pneg %p543
        $region46: #{tpu_custom_call.1} parent=11 // pred_check_branch
          %674 = sbr.rel (%p672) target = $region48
        $region47: #{tpu_custom_call.1} parent=11 // pred_region
          _
        $region48: #{tpu_custom_call.1} parent=11 // pred_fallthru
          _
        // Predicated region
        $region49: #{tpu_custom_call.1} parent=11 // pred_check
          %p675 = pneg %p564
        $region50: #{tpu_custom_call.1} parent=11 // pred_check_branch
          %677 = sbr.rel (%p675) target = $region52
        $region51: #{tpu_custom_call.1} parent=11 // pred_region
          %s679 = ssub.s32 2048, 2048
          %680 = vsyncadd [#allocation22], %s679
          %s681 = sshll.u32 [#allocation21], 4
          %s682 = int_to_ptr.vmem [resolvable:$true] %s681
          %687 = dma.hbm_to_vmem [thread:$0]  %s21, 2048, %s682, [#allocation22], 128, 128, 8
        $region52: #{tpu_custom_call.1} parent=11 // pred_fallthru
          _
      $region12: #{tpu_custom_call.1} parent=5 // pred_fallthru
        _
      %p688 = scmp.lt.s32.totalorder %s42, 2
      // Predicated region
      $region53: #{tpu_custom_call.1} parent=5 // pred_check
        %p689 = pneg %p688
      $region54: #{tpu_custom_call.1} parent=5 // pred_check_branch
        %691 = sbr.rel (%p689) target = $region56
      $region55: #{tpu_custom_call.1} parent=5 // pred_region
        // Predicated region
        $region57: #{tpu_custom_call.1} parent=55 // pred_check
          %p692 = pneg %p209
        $region58: #{tpu_custom_call.1} parent=55 // pred_check_branch
          %694 = sbr.rel (%p692) target = $region60
        $region59: #{tpu_custom_call.1} parent=55 // pred_region
          %s695 = sand.u32 %s42, 1
          %s696 = scalar_lea.sflag [#allocation13], %s695
          %s697 = sand.u32 %s199, 1
          %s698 = scalar_lea.vmem [#allocation12], %s697
          %s700 = ssub.s32 16, 16
          %701 = vsyncadd %s696, %s700
          %s702 = smul.addr %s42, 16
          %s703 = scalar_lea.hbm %s7, %s702
          %s705 = sshll.u32 %s698, 4
          %s706 = int_to_ptr.vmem [resolvable:$true] %s705
          %708 = dma.hbm_to_vmem [thread:$0]  %s703, 16, %s706, %s696
        $region60: #{tpu_custom_call.1} parent=55 // pred_fallthru
          _
        // Predicated region
        $region61: #{tpu_custom_call.1} parent=55 // pred_check
          %p709 = pneg %p235
        $region62: #{tpu_custom_call.1} parent=55 // pred_check_branch
          %711 = sbr.rel (%p709) target = $region64
        $region63: #{tpu_custom_call.1} parent=55 // pred_region
          %s712 = sand.u32 %s42, 1
          %s713 = scalar_lea.sflag [#allocation13], %s712
          %s714 = sand.u32 %s225, 1
          %s715 = scalar_lea.vmem [#allocation14], %s714
          %s717 = ssub.s32 16, 16
          %718 = vsyncadd %s713, %s717
          %s719 = smul.addr %s42, 16
          %s720 = scalar_lea.hbm %s8, %s719
          %s722 = sshll.u32 %s715, 4
          %s723 = int_to_ptr.vmem [resolvable:$true] %s722
          %725 = dma.hbm_to_vmem [thread:$0]  %s720, 16, %s723, %s713
        $region64: #{tpu_custom_call.1} parent=55 // pred_fallthru
          _
        // Predicated region
        $region65: #{tpu_custom_call.1} parent=55 // pred_check
          %p726 = pneg %p261
        $region66: #{tpu_custom_call.1} parent=55 // pred_check_branch
          %728 = sbr.rel (%p726) target = $region68
        $region67: #{tpu_custom_call.1} parent=55 // pred_region
          %s729 = sand.u32 %s42, 1
          %s730 = scalar_lea.sflag [#allocation16], %s729
          %s731 = sand.u32 %s251, 1
          %s732 = smul.addr %s731, 192
          %s733 = scalar_lea.vmem [#allocation15], %s732
          %s735 = ssub.s32 3072, 3072
          %736 = vsyncadd %s730, %s735
          %s737 = smul.addr %s42, 48
          %s738 = smul.addr %s737, 64
          %s739 = scalar_lea.hbm %s9, %s738
          %s740 = sshll.u32 %s733, 4
          %s741 = int_to_ptr.vmem [resolvable:$true] %s740
          %746 = dma.hbm_to_vmem [thread:$0]  %s739, 3072, %s741, %s730, 192, 192, 12
        $region68: #{tpu_custom_call.1} parent=55 // pred_fallthru
          _
        // Predicated region
        $region69: #{tpu_custom_call.1} parent=55 // pred_check
          %p747 = pneg %p287
        $region70: #{tpu_custom_call.1} parent=55 // pred_check_branch
          %749 = sbr.rel (%p747) target = $region72
        $region71: #{tpu_custom_call.1} parent=55 // pred_region
          %s750 = sand.u32 %s42, 1
          %s751 = scalar_lea.sflag [#allocation16], %s750
          %s752 = sand.u32 %s277, 1
          %s753 = smul.addr %s752, 3
          %s754 = scalar_lea.vmem [#allocation17], %s753
          %s756 = ssub.s32 48, 48
          %757 = vsyncadd %s751, %s756
          %s758 = smul.addr %s42, 3
          %s759 = smul.addr %s758, 16
          %s760 = scalar_lea.hbm %s10, %s759
          %s762 = sshll.u32 %s754, 4
          %s763 = int_to_ptr.vmem [resolvable:$true] %s762
          %765 = dma.hbm_to_vmem [thread:$0]  %s760, 48, %s763, %s751
        $region72: #{tpu_custom_call.1} parent=55 // pred_fallthru
          _
        // Predicated region
        $region73: #{tpu_custom_call.1} parent=55 // pred_check
          %p766 = pneg %p313
        $region74: #{tpu_custom_call.1} parent=55 // pred_check_branch
          %768 = sbr.rel (%p766) target = $region76
        $region75: #{tpu_custom_call.1} parent=55 // pred_region
          %p769 = scmp.lt.s32.totalorder %s42, 1
          %s770 = scalar_select %p769, %s42, 1
          %s771 = smul.addr %s770, 16
          %s772 = smul.addr %s771, 4
          %s773 = scalar_lea.vmem %s11, %s772
        $region76: #{tpu_custom_call.1} parent=55 // pred_fallthru
          _
        // Predicated region
        $region77: #{tpu_custom_call.1} parent=55 // pred_check
          %p774 = pneg %p339
        $region78: #{tpu_custom_call.1} parent=55 // pred_check_branch
          %776 = sbr.rel (%p774) target = $region80
        $region79: #{tpu_custom_call.1} parent=55 // pred_region
          %p777 = scmp.lt.s32.totalorder %s42, 1
          %s778 = scalar_select %p777, %s42, 1
          %s779 = scalar_lea.vmem %s12, %s778
        $region80: #{tpu_custom_call.1} parent=55 // pred_fallthru
          _
        // Predicated region
        $region81: #{tpu_custom_call.1} parent=55 // pred_check
          %p780 = pneg %p365
        $region82: #{tpu_custom_call.1} parent=55 // pred_check_branch
          %782 = sbr.rel (%p780) target = $region84
        $region83: #{tpu_custom_call.1} parent=55 // pred_region
          %p783 = scmp.lt.s32.totalorder %s42, 1
          %s784 = scalar_select %p783, %s42, 1
          %s785 = scalar_lea.vmem %s13, %s784
        $region84: #{tpu_custom_call.1} parent=55 // pred_fallthru
          _
        // Predicated region
        $region85: #{tpu_custom_call.1} parent=55 // pred_check
          %p786 = pneg %p391
        $region86: #{tpu_custom_call.1} parent=55 // pred_check_branch
          %788 = sbr.rel (%p786) target = $region88
        $region87: #{tpu_custom_call.1} parent=55 // pred_region
          %p789 = scmp.lt.s32.totalorder %s42, 1
          %s790 = scalar_select %p789, %s42, 1
          %s791 = scalar_lea.vmem %s14, %s790
        $region88: #{tpu_custom_call.1} parent=55 // pred_fallthru
          _
        // Predicated region
        $region89: #{tpu_custom_call.1} parent=55 // pred_check
          %p792 = pneg %p417
        $region90: #{tpu_custom_call.1} parent=55 // pred_check_branch
          %794 = sbr.rel (%p792) target = $region92
        $region91: #{tpu_custom_call.1} parent=55 // pred_region
          %s795 = sand.u32 %s42, 1
          %s796 = scalar_lea.sflag [#allocation19], %s795
          %s797 = sand.u32 %s407, 1
          %s798 = smul.addr %s797, 128
          %s799 = scalar_lea.vmem [#allocation18], %s798
          %s801 = ssub.s32 2048, 2048
          %802 = vsyncadd %s796, %s801
          %s803 = smul.addr %s42, 32
          %s804 = smul.addr %s803, 64
          %s805 = scalar_lea.hbm %s15, %s804
          %s806 = sshll.u32 %s799, 4
          %s807 = int_to_ptr.vmem [resolvable:$true] %s806
          %812 = dma.hbm_to_vmem [thread:$0]  %s805, 2048, %s807, %s796, 128, 128, 8
        $region92: #{tpu_custom_call.1} parent=55 // pred_fallthru
          _
        // Predicated region
        $region93: #{tpu_custom_call.1} parent=55 // pred_check
          %p813 = pneg %p443
        $region94: #{tpu_custom_call.1} parent=55 // pred_check_branch
          %815 = sbr.rel (%p813) target = $region96
        $region95: #{tpu_custom_call.1} parent=55 // pred_region
          %p816 = scmp.lt.s32.totalorder %s42, 1
          %s817 = scalar_select %p816, %s42, 1
          %s818 = smul.addr %s817, 2
          %s819 = scalar_lea.vmem %s16, %s818
        $region96: #{tpu_custom_call.1} parent=55 // pred_fallthru
          _
        // Predicated region
        $region97: #{tpu_custom_call.1} parent=55 // pred_check
          %p820 = pneg %p469
        $region98: #{tpu_custom_call.1} parent=55 // pred_check_branch
          %822 = sbr.rel (%p820) target = $region100
        $region99: #{tpu_custom_call.1} parent=55 // pred_region
          %s823 = sand.u32 %s42, 1
          %s824 = scalar_lea.sflag [#allocation19], %s823
          %s825 = sand.u32 %s459, 1
          %s826 = smul.addr %s825, 128
          %s827 = scalar_lea.vmem [#allocation20], %s826
          %s829 = ssub.s32 2048, 2048
          %830 = vsyncadd %s824, %s829
          %s831 = smul.addr %s42, 32
          %s832 = smul.addr %s831, 64
          %s833 = scalar_lea.hbm %s17, %s832
          %s834 = sshll.u32 %s827, 4
          %s835 = int_to_ptr.vmem [resolvable:$true] %s834
          %840 = dma.hbm_to_vmem [thread:$0]  %s833, 2048, %s835, %s824, 64, 64, 4
        $region100: #{tpu_custom_call.1} parent=55 // pred_fallthru
          _
        // Predicated region
        $region101: #{tpu_custom_call.1} parent=55 // pred_check
          %p841 = pneg %p495
        $region102: #{tpu_custom_call.1} parent=55 // pred_check_branch
          %843 = sbr.rel (%p841) target = $region104
        $region103: #{tpu_custom_call.1} parent=55 // pred_region
          %p844 = scmp.lt.s32.totalorder %s42, 1
          %s845 = scalar_select %p844, %s42, 1
          %s846 = scalar_lea.vmem %s18, %s845
        $region104: #{tpu_custom_call.1} parent=55 // pred_fallthru
          _
      $region56: #{tpu_custom_call.1} parent=5 // pred_fallthru
        _
      %p847 = scmp.le.s32.totalorder 1, %s42
      %p848 = scmp.lt.s32.totalorder %s42, 3
      %p849 = pnand %p847, %p848
      %p850 = pneg %p849
      // Predicated region
      $region105: #{tpu_custom_call.1} parent=5 // pred_check
        _
      $region106: #{tpu_custom_call.1} parent=5 // pred_check_branch
        %852 = sbr.rel (%p849) target = $region108
      $region107: #{tpu_custom_call.1} parent=5 // pred_region
        %s853 = ssub.s32 %s42, 1
        // Predicated region
        $region109: #{tpu_custom_call.1} parent=107 // pred_check
          %p854 = pneg %p63
        $region110: #{tpu_custom_call.1} parent=107 // pred_check_branch
          %856 = sbr.rel (%p854) target = $region112
        $region111: #{tpu_custom_call.1} parent=107 // pred_region
          %857 = dma.done [#allocation4], 512
        $region112: #{tpu_custom_call.1} parent=107 // pred_fallthru
          _
        // Predicated region
        $region113: #{tpu_custom_call.1} parent=107 // pred_check
          %p858 = pneg %p84
        $region114: #{tpu_custom_call.1} parent=107 // pred_check_branch
          %860 = sbr.rel (%p858) target = $region116
        $region115: #{tpu_custom_call.1} parent=107 // pred_region
          %861 = dma.done [#allocation7], 256
        $region116: #{tpu_custom_call.1} parent=107 // pred_fallthru
          _
        // Predicated region
        $region117: #{tpu_custom_call.1} parent=107 // pred_check
          %p862 = pneg %p105
        $region118: #{tpu_custom_call.1} parent=107 // pred_check_branch
          %864 = sbr.rel (%p862) target = $region120
        $region119: #{tpu_custom_call.1} parent=107 // pred_region
          %865 = dma.done [#allocation7], 512
        $region120: #{tpu_custom_call.1} parent=107 // pred_fallthru
          _
        // Predicated region
        $region121: #{tpu_custom_call.1} parent=107 // pred_check
          %p866 = pneg %p147
        $region122: #{tpu_custom_call.1} parent=107 // pred_check_branch
          %868 = sbr.rel (%p866) target = $region124
        $region123: #{tpu_custom_call.1} parent=107 // pred_region
          %869 = dma.done [#allocation10], 2048
        $region124: #{tpu_custom_call.1} parent=107 // pred_fallthru
          _
        // Predicated region
        $region125: #{tpu_custom_call.1} parent=107 // pred_check
          %p870 = pneg %p168
        $region126: #{tpu_custom_call.1} parent=107 // pred_check_branch
          %872 = sbr.rel (%p870) target = $region128
        $region127: #{tpu_custom_call.1} parent=107 // pred_region
          %873 = dma.done [#allocation10], 128
        $region128: #{tpu_custom_call.1} parent=107 // pred_fallthru
          _
        %s874 = sand.u32 %s47, 1
        %s875 = scalar_lea.sflag [#allocation13], %s874
        %s876 = sand.u32 %s202, 1
        %s877 = scalar_lea.vmem [#allocation12], %s876
        // Predicated region
        $region129: #{tpu_custom_call.1} parent=107 // pred_check
          %p878 = pneg %p215
        $region130: #{tpu_custom_call.1} parent=107 // pred_check_branch
          %880 = sbr.rel (%p878) target = $region132
        $region131: #{tpu_custom_call.1} parent=107 // pred_region
          %881 = dma.done %s875, 16
        $region132: #{tpu_custom_call.1} parent=107 // pred_fallthru
          _
        %s882 = sand.u32 %s47, 1
        %s883 = scalar_lea.sflag [#allocation13], %s882
        %s884 = sand.u32 %s228, 1
        %s885 = scalar_lea.vmem [#allocation14], %s884
        // Predicated region
        $region133: #{tpu_custom_call.1} parent=107 // pred_check
          %p886 = pneg %p241
        $region134: #{tpu_custom_call.1} parent=107 // pred_check_branch
          %888 = sbr.rel (%p886) target = $region136
        $region135: #{tpu_custom_call.1} parent=107 // pred_region
          %889 = dma.done %s883, 16
        $region136: #{tpu_custom_call.1} parent=107 // pred_fallthru
          _
        %s890 = sand.u32 %s47, 1
        %s891 = scalar_lea.sflag [#allocation16], %s890
        %s892 = sand.u32 %s254, 1
        %s893 = smul.addr %s892, 192
        %s894 = scalar_lea.vmem [#allocation15], %s893
        // Predicated region
        $region137: #{tpu_custom_call.1} parent=107 // pred_check
          %p895 = pneg %p267
        $region138: #{tpu_custom_call.1} parent=107 // pred_check_branch
          %897 = sbr.rel (%p895) target = $region140
        $region139: #{tpu_custom_call.1} parent=107 // pred_region
          %898 = dma.done %s891, 3072
        $region140: #{tpu_custom_call.1} parent=107 // pred_fallthru
          _
        %s899 = sand.u32 %s47, 1
        %s900 = scalar_lea.sflag [#allocation16], %s899
        %s901 = sand.u32 %s280, 1
        %s902 = smul.addr %s901, 3
        %s903 = scalar_lea.vmem [#allocation17], %s902
        // Predicated region
        $region141: #{tpu_custom_call.1} parent=107 // pred_check
          %p904 = pneg %p293
        $region142: #{tpu_custom_call.1} parent=107 // pred_check_branch
          %906 = sbr.rel (%p904) target = $region144
        $region143: #{tpu_custom_call.1} parent=107 // pred_region
          %907 = dma.done %s900, 48
        $region144: #{tpu_custom_call.1} parent=107 // pred_fallthru
          _
        %s908 = sand.u32 %s47, 1
        %s909 = scalar_lea.sflag [#allocation19], %s908
        %s910 = sand.u32 %s410, 1
        %s911 = smul.addr %s910, 128
        %s912 = scalar_lea.vmem [#allocation18], %s911
        // Predicated region
        $region145: #{tpu_custom_call.1} parent=107 // pred_check
          %p913 = pneg %p423
        $region146: #{tpu_custom_call.1} parent=107 // pred_check_branch
          %915 = sbr.rel (%p913) target = $region148
        $region147: #{tpu_custom_call.1} parent=107 // pred_region
          %916 = dma.done %s909, 2048
        $region148: #{tpu_custom_call.1} parent=107 // pred_fallthru
          _
        %s917 = sand.u32 %s47, 1
        %s918 = scalar_lea.sflag [#allocation19], %s917
        %s919 = sand.u32 %s462, 1
        %s920 = smul.addr %s919, 128
        %s921 = scalar_lea.vmem [#allocation20], %s920
        // Predicated region
        $region149: #{tpu_custom_call.1} parent=107 // pred_check
          %p922 = pneg %p475
        $region150: #{tpu_custom_call.1} parent=107 // pred_check_branch
          %924 = sbr.rel (%p922) target = $region152
        $region151: #{tpu_custom_call.1} parent=107 // pred_region
          %925 = dma.done %s918, 2048
        $region152: #{tpu_custom_call.1} parent=107 // pred_fallthru
          _
        // Predicated region
        $region153: #{tpu_custom_call.1} parent=107 // pred_check
          %p926 = pneg %p564
        $region154: #{tpu_custom_call.1} parent=107 // pred_check_branch
          %928 = sbr.rel (%p926) target = $region156
        $region155: #{tpu_custom_call.1} parent=107 // pred_region
          %929 = dma.done [#allocation22], 2048
        $region156: #{tpu_custom_call.1} parent=107 // pred_fallthru
          _
        %p930 = pneg %p63
        %p931 = pneg %p60
        %p932 = pneg %p84
        %p933 = pneg %p81
        %p934 = pneg %p105
        %p935 = pneg %p102
        %p936 = pneg %p126
        %p937 = pneg %p123
        %p938 = pneg %p147
        %p939 = pneg %p144
        %p940 = pneg %p168
        %p941 = pneg %p165
        %p942 = pneg %p189
        %p943 = pneg %p186
        %s944 = sand.u32 %s47, 1
        %s945 = scalar_lea.sflag [#allocation13], %s944
        %s946 = sand.u32 %s202, 1
        %s947 = scalar_lea.vmem [#allocation12], %s946
        %p948 = pneg %p215
        %p949 = pneg %p212
        %s950 = sand.u32 %s47, 1
        %s951 = scalar_lea.sflag [#allocation13], %s950
        %s952 = sand.u32 %s228, 1
        %s953 = scalar_lea.vmem [#allocation14], %s952
        %p954 = pneg %p241
        %p955 = pneg %p238
        %s956 = sand.u32 %s47, 1
        %s957 = scalar_lea.sflag [#allocation16], %s956
        %s958 = sand.u32 %s254, 1
        %s959 = smul.addr %s958, 192
        %s960 = scalar_lea.vmem [#allocation15], %s959
        %p961 = pneg %p267
        %p962 = pneg %p264
        %s963 = sand.u32 %s47, 1
        %s964 = scalar_lea.sflag [#allocation16], %s963
        %s965 = sand.u32 %s280, 1
        %s966 = smul.addr %s965, 3
        %s967 = scalar_lea.vmem [#allocation17], %s966
        %p968 = pneg %p293
        %p969 = pneg %p290
        %p970 = scmp.lt.s32.totalorder %s47, 1
        %s971 = scalar_select %p970, %s47, 1
        %s972 = smul.addr %s971, 16
        %s973 = smul.addr %s972, 4
        %s974 = scalar_lea.vmem %s11, %s973
        %p975 = pneg %p319
        %p976 = pneg %p316
        %p977 = scmp.lt.s32.totalorder %s47, 1
        %s978 = scalar_select %p977, %s47, 1
        %s979 = scalar_lea.vmem %s12, %s978
        %p980 = pneg %p345
        %p981 = pneg %p342
        %p982 = scmp.lt.s32.totalorder %s47, 1
        %s983 = scalar_select %p982, %s47, 1
        %s984 = scalar_lea.vmem %s13, %s983
        %p985 = pneg %p371
        %p986 = pneg %p368
        %p987 = scmp.lt.s32.totalorder %s47, 1
        %s988 = scalar_select %p987, %s47, 1
        %s989 = scalar_lea.vmem %s14, %s988
        %p990 = pneg %p397
        %p991 = pneg %p394
        %s992 = sand.u32 %s47, 1
        %s993 = scalar_lea.sflag [#allocation19], %s992
        %s994 = sand.u32 %s410, 1
        %s995 = smul.addr %s994, 128
        %s996 = scalar_lea.vmem [#allocation18], %s995
        %p997 = pneg %p423
        %p998 = pneg %p420
        %p999 = scmp.lt.s32.totalorder %s47, 1
        %s1000 = scalar_select %p999, %s47, 1
        %s1001 = smul.addr %s1000, 2
        %s1002 = scalar_lea.vmem %s16, %s1001
        %p1003 = pneg %p449
        %p1004 = pneg %p446
        %s1005 = sand.u32 %s47, 1
        %s1006 = scalar_lea.sflag [#allocation19], %s1005
        %s1007 = sand.u32 %s462, 1
        %s1008 = smul.addr %s1007, 128
        %s1009 = scalar_lea.vmem [#allocation20], %s1008
        %p1010 = pneg %p475
        %p1011 = pneg %p472
        %p1012 = scmp.lt.s32.totalorder %s47, 1
        %s1013 = scalar_select %p1012, %s47, 1
        %s1014 = scalar_lea.vmem %s18, %s1013
        %p1015 = pneg %p501
        %p1016 = pneg %p498
        %p1017 = pneg %p522
        %p1018 = pneg %p519
        %p1019 = pneg %p543
        %p1020 = pneg %p540
        %p1021 = pneg %p564
        %p1022 = pneg %p561
        %p1023 = pneg %p585
        %p1024 = pneg %p582
        %p1025 = scmp.lt.s32.totalorder %s47, 1
        %s1026 = scalar_select %p1025, %s47, 1
        %s1027 = smul.addr %s1026, 16
        %s1028 = smul.addr %s1027, 4
        %s1029 = scalar_lea.vmem %s11, %s1028
        %p1030 = scmp.lt.s32.totalorder %s47, 1
        %s1031 = scalar_select %p1030, %s47, 1
        %s1032 = scalar_lea.vmem %s12, %s1031
        %p1033 = scmp.lt.s32.totalorder %s47, 1
        %s1034 = scalar_select %p1033, %s47, 1
        %s1035 = scalar_lea.vmem %s13, %s1034
        %p1036 = scmp.lt.s32.totalorder %s47, 1
        %s1037 = scalar_select %p1036, %s47, 1
        %s1038 = scalar_lea.vmem %s14, %s1037
        %p1039 = scmp.lt.s32.totalorder %s47, 1
        %s1040 = scalar_select %p1039, %s47, 1
        %s1041 = smul.addr %s1040, 2
        %s1042 = scalar_lea.vmem %s16, %s1041
        %p1043 = scmp.lt.s32.totalorder %s47, 1
        %s1044 = scalar_select %p1043, %s47, 1
        %s1045 = scalar_lea.vmem %s18, %s1044
        %p1047 = scmp.eq.s32.totalorder %s47, 0
        // Predicated region
        $region157: #{tpu_custom_call.1} parent=107 // pred_check
          %p1048 = pneg %p1047
        $region158: #{tpu_custom_call.1} parent=107 // pred_check_branch
          %1050 = sbr.rel (%p1048) target = $region160
        $region159: #{tpu_custom_call.1} parent=107 // pred_region
          %v1051 = vld [vmem:[#allocation3] sm:$0xff]
          %v1052 = vld [vmem:[#allocation3 + $0x8] sm:$0xff]
          %v1053 = vld [vmem:[#allocation3 + $0x10] sm:$0xff]
          %v1054 = vld [vmem:[#allocation3 + $0x18] sm:$0xff]
          %v1055 = vld [vmem:[#allocation6] sm:$0xff]
          %v1056 = vld [vmem:[#allocation6 + $0x8] sm:$0xff]
          %v1057 = vadd.f32 %v1051, %v1055
          %v1058 = vadd.f32 %v1052, %v1056
          %v1059 = vadd.f32 %v1053, %v1055
          %v1060 = vadd.f32 %v1054, %v1056
          %1061 = vst [vmem:[#allocation2] sm:$0xff] %v1057
          %1062 = vst [vmem:[#allocation2 + $0x8] sm:$0xff] %v1058
          %1063 = vst [vmem:[#allocation2 + $0x10] sm:$0xff] %v1059
          %1064 = vst [vmem:[#allocation2 + $0x18] sm:$0xff] %v1060
          %vm1065 = vcmask 0
          %1066 = vst.msk [vmem:[#allocation23] sm:$0x1] %vm1065, 0.0
        $region160: #{tpu_custom_call.1} parent=107 // pred_fallthru
          _
        %v1067 = vld [vmem:[#allocation2] sm:$0xff]
        %v1068 = vld [vmem:[#allocation2 + $0x8] sm:$0xff]
        %v1069 = vld [vmem:[#allocation2 + $0x10] sm:$0xff]
        %v1070 = vld [vmem:[#allocation2 + $0x18] sm:$0xff]
        %v1071 = vld [vmem:[#allocation8] sm:$0xff]
        %v1072 = vld [vmem:[#allocation8 + $0x8] sm:$0xff]
        %v1073 = vld [vmem:[#allocation8 + $0x10] sm:$0xff]
        %v1074 = vld [vmem:[#allocation8 + $0x18] sm:$0xff]
        %v1075 = vld [vmem:[%s3] sm:$0xf]
        %v1076 = vld [vmem:[%s3 + $0x4] sm:$0xf]
        %v1077 = vld [vmem:[%s3 + $0x8] sm:$0xf]
        %v1078 = vld [vmem:[%s3 + $0xc] sm:$0xf]
        %v1079 = vld [vmem:[%s3 + $0x10] sm:$0xf]
        %v1080 = vld [vmem:[%s3 + $0x14] sm:$0xf]
        %v1081 = vld [vmem:[%s3 + $0x18] sm:$0xf]
        %v1082 = vld [vmem:[%s3 + $0x1c] sm:$0xf]
        %v1083 = vld [vmem:[%s3 + $0x20] sm:$0xf]
        %v1084 = vld [vmem:[%s3 + $0x24] sm:$0xf]
        %v1085 = vld [vmem:[%s3 + $0x28] sm:$0xf]
        %v1086 = vld [vmem:[%s3 + $0x2c] sm:$0xf]
        %v1087 = vld [vmem:[%s3 + $0x30] sm:$0xf]
        %v1088 = vld [vmem:[%s3 + $0x34] sm:$0xf]
        %v1089 = vld [vmem:[%s3 + $0x38] sm:$0xf]
        %v1090 = vld [vmem:[%s3 + $0x3c] sm:$0xf]
        %v1091 = vld [vmem:[#allocation9] sm:$0xff]
        %v1092 = vld [vmem:[#allocation9 + $0x8] sm:$0xff]
        %v1093 = vld [vmem:[#allocation9 + $0x10] sm:$0xff]
        %v1094 = vld [vmem:[#allocation9 + $0x18] sm:$0xff]
        %v1095 = vld [vmem:[#allocation9 + $0x20] sm:$0xff]
        %v1096 = vld [vmem:[#allocation9 + $0x28] sm:$0xff]
        %v1097 = vld [vmem:[#allocation9 + $0x30] sm:$0xff]
        %v1098 = vld [vmem:[#allocation9 + $0x38] sm:$0xff]
        %v1099 = vld [vmem:[#allocation9 + $0x40] sm:$0xff]
        %v1100 = vld [vmem:[#allocation9 + $0x48] sm:$0xff]
        %v1101 = vld [vmem:[#allocation9 + $0x50] sm:$0xff]
        %v1102 = vld [vmem:[#allocation9 + $0x58] sm:$0xff]
        %v1103 = vld [vmem:[#allocation9 + $0x60] sm:$0xff]
        %v1104 = vld [vmem:[#allocation9 + $0x68] sm:$0xff]
        %v1105 = vld [vmem:[#allocation9 + $0x70] sm:$0xff]
        %v1106 = vld [vmem:[#allocation9 + $0x78] sm:$0xff]
        %v1107 = vld [vmem:[#allocation11] sm:$0xff]
        %v1108 = vld [vmem:[%s877] sm:$0x1]
        %v1109 = vld [vmem:[%s885] sm:$0x1]
        %1110 = vadd.xlane.f32.xlu0 %v1067
        %v1111 = vpop.xlane.xlu0 %1110
        %1112 = vadd.xlane.f32.xlu0 %v1068
        %v1113 = vpop.xlane.xlu0 %1112
        %1114 = vadd.xlane.f32.xlu0 %v1069
        %v1115 = vpop.xlane.xlu0 %1114
        %1116 = vadd.xlane.f32.xlu0 %v1070
        %v1117 = vpop.xlane.xlu0 %1116
        %v1118 = vrcp.pop 128.0
        %v1119 = vmul.f32 %v1111, %v1118
        %v1120 = vmul.f32 %v1113, %v1118
        %v1121 = vmul.f32 %v1115, %v1118
        %v1122 = vmul.f32 %v1117, %v1118
        %v1123 = vsub.f32 %v1067, %v1119
        %v1124 = vsub.f32 %v1068, %v1120
        %v1125 = vsub.f32 %v1069, %v1121
        %v1126 = vsub.f32 %v1070, %v1122
        %v1127 = vmul.f32 %v1123, %v1123
        %v1128 = vmul.f32 %v1124, %v1124
        %v1129 = vmul.f32 %v1125, %v1125
        %v1130 = vmul.f32 %v1126, %v1126
        %1131 = vadd.xlane.f32.xlu0 %v1127
        %v1132 = vpop.xlane.xlu0 %1131
        %1133 = vadd.xlane.f32.xlu0 %v1128
        %v1134 = vpop.xlane.xlu0 %1133
        %1135 = vadd.xlane.f32.xlu0 %v1129
        %v1136 = vpop.xlane.xlu0 %1135
        %1137 = vadd.xlane.f32.xlu0 %v1130
        %v1138 = vpop.xlane.xlu0 %1137
        %v1139 = vmul.f32 %v1132, %v1118
        %v1140 = vmul.f32 %v1134, %v1118
        %v1141 = vmul.f32 %v1136, %v1118
        %v1142 = vmul.f32 %v1138, %v1118
        %v1143 = vadd.f32 %v1139, 1e-05
        %v1144 = vadd.f32 %v1140, 1e-05
        %v1145 = vadd.f32 %v1141, 1e-05
        %v1146 = vadd.f32 %v1142, 1e-05
        %v1147 = vrsqrt.pop %v1143
        %v1148 = vrsqrt.pop %v1144
        %v1149 = vrsqrt.pop %v1145
        %v1150 = vrsqrt.pop %v1146
        %v1151 = vmul.f32 %v1123, %v1147
        %v1152 = vmul.f32 %v1124, %v1148
        %v1153 = vmul.f32 %v1125, %v1149
        %v1154 = vmul.f32 %v1126, %v1150
        %v1156 = vlaneseq
        %v1157 = vshrl.u32 %v1156, 7
        %v1158 = vsub.s32 0, %v1157
        %v1159 = vrot.slane %v1108, %v1158
        %v1161 = vmul.f32 %v1151, %v1159
        %v1162 = vmul.f32 %v1152, %v1159
        %v1163 = vmul.f32 %v1153, %v1159
        %v1164 = vmul.f32 %v1154, %v1159
        %v1166 = vlaneseq
        %v1167 = vshrl.u32 %v1166, 7
        %v1168 = vsub.s32 0, %v1167
        %v1169 = vrot.slane %v1109, %v1168
        %v1171 = vadd.f32 %v1161, %v1169
        %v1172 = vadd.f32 %v1162, %v1169
        %v1173 = vadd.f32 %v1163, %v1169
        %v1174 = vadd.f32 %v1164, %v1169
        %v1175 = vpack.c.bf16 %v1172, %v1171
        %v1176 = vpack.c.bf16 %v1174, %v1173
        %v1177 = vld [vmem:[%s894] sm:$0xff]
        %v1178 = vld [vmem:[%s894 + $0x8] sm:$0xf]
        %v1179 = vld [vmem:[%s894 + $0xc] sm:$0xff]
        %v1180 = vld [vmem:[%s894 + $0x14] sm:$0xf]
        %v1181 = vld [vmem:[%s894 + $0x18] sm:$0xff]
        %v1182 = vld [vmem:[%s894 + $0x20] sm:$0xf]
        %v1183 = vld [vmem:[%s894 + $0x24] sm:$0xff]
        %v1184 = vld [vmem:[%s894 + $0x2c] sm:$0xf]
        %v1185 = vld [vmem:[%s894 + $0x30] sm:$0xff]
        %v1186 = vld [vmem:[%s894 + $0x38] sm:$0xf]
        %v1187 = vld [vmem:[%s894 + $0x3c] sm:$0xff]
        %v1188 = vld [vmem:[%s894 + $0x44] sm:$0xf]
        %v1189 = vld [vmem:[%s894 + $0x48] sm:$0xff]
        %v1190 = vld [vmem:[%s894 + $0x50] sm:$0xf]
        %v1191 = vld [vmem:[%s894 + $0x54] sm:$0xff]
        %v1192 = vld [vmem:[%s894 + $0x5c] sm:$0xf]
        %v1193 = vld [vmem:[%s894 + $0x60] sm:$0xff]
        %v1194 = vld [vmem:[%s894 + $0x68] sm:$0xf]
        %v1195 = vld [vmem:[%s894 + $0x6c] sm:$0xff]
        %v1196 = vld [vmem:[%s894 + $0x74] sm:$0xf]
        %v1197 = vld [vmem:[%s894 + $0x78] sm:$0xff]
        %v1198 = vld [vmem:[%s894 + $0x80] sm:$0xf]
        %v1199 = vld [vmem:[%s894 + $0x84] sm:$0xff]
        %v1200 = vld [vmem:[%s894 + $0x8c] sm:$0xf]
        %v1201 = vld [vmem:[%s894 + $0x90] sm:$0xff]
        %v1202 = vld [vmem:[%s894 + $0x98] sm:$0xf]
        %v1203 = vld [vmem:[%s894 + $0x9c] sm:$0xff]
        %v1204 = vld [vmem:[%s894 + $0xa4] sm:$0xf]
        %v1205 = vld [vmem:[%s894 + $0xa8] sm:$0xff]
        %v1206 = vld [vmem:[%s894 + $0xb0] sm:$0xf]
        %v1207 = vld [vmem:[%s894 + $0xb4] sm:$0xff]
        %v1208 = vld [vmem:[%s894 + $0xbc] sm:$0xf]
        %v1209 = vld [vmem:[%s903] sm:$0x7]
        %v1211 = vlaneseq
        %v1212 = vshrl.u32 %v1211, 7
        %v1213 = vsub.s32 0, %v1212
        %v1214 = vrot.slane %v1209, %v1213
        %v1215 = vlaneseq
        %v1216 = vshrl.u32 %v1215, 7
        %v1217 = vsub.s32 1, %v1216
        %v1218 = vrot.slane %v1209, %v1217
        %v1219 = vlaneseq
        %v1220 = vshrl.u32 %v1219, 7
        %v1221 = vsub.s32 2, %v1220
        %v1222 = vrot.slane %v1209, %v1221
        %v1258 = vunpack.c.l.b16 %v1177
        %v1259 = vunpack.c.h.b16 %v1177
        %v1260 = vunpack.c.l.b16 %v1178
        %v1261 = vunpack.c.l.b16 %v1179
        %v1262 = vunpack.c.h.b16 %v1179
        %v1263 = vunpack.c.l.b16 %v1180
        %v1264 = vunpack.c.l.b16 %v1181
        %v1265 = vunpack.c.h.b16 %v1181
        %v1266 = vunpack.c.l.b16 %v1182
        %v1267 = vunpack.c.l.b16 %v1183
        %v1268 = vunpack.c.h.b16 %v1183
        %v1269 = vunpack.c.l.b16 %v1184
        %v1270 = vunpack.c.l.b16 %v1185
        %v1271 = vunpack.c.h.b16 %v1185
        %v1272 = vunpack.c.l.b16 %v1186
        %v1273 = vunpack.c.l.b16 %v1187
        %v1274 = vunpack.c.h.b16 %v1187
        %v1275 = vunpack.c.l.b16 %v1188
        %v1276 = vunpack.c.l.b16 %v1189
        %v1277 = vunpack.c.h.b16 %v1189
        %v1278 = vunpack.c.l.b16 %v1190
        %v1279 = vunpack.c.l.b16 %v1191
        %v1280 = vunpack.c.h.b16 %v1191
        %v1281 = vunpack.c.l.b16 %v1192
        %v1282 = vunpack.c.l.b16 %v1193
        %v1283 = vunpack.c.h.b16 %v1193
        %v1284 = vunpack.c.l.b16 %v1194
        %v1285 = vunpack.c.l.b16 %v1195
        %v1286 = vunpack.c.h.b16 %v1195
        %v1287 = vunpack.c.l.b16 %v1196
        %v1288 = vunpack.c.l.b16 %v1197
        %v1289 = vunpack.c.h.b16 %v1197
        %v1290 = vunpack.c.l.b16 %v1198
        %v1291 = vunpack.c.l.b16 %v1199
        %v1292 = vunpack.c.h.b16 %v1199
        %v1293 = vunpack.c.l.b16 %v1200
        %v1294 = vunpack.c.l.b16 %v1201
        %v1295 = vunpack.c.h.b16 %v1201
        %v1296 = vunpack.c.l.b16 %v1202
        %v1297 = vunpack.c.l.b16 %v1203
        %v1298 = vunpack.c.h.b16 %v1203
        %v1299 = vunpack.c.l.b16 %v1204
        %v1300 = vunpack.c.l.b16 %v1205
        %v1301 = vunpack.c.h.b16 %v1205
        %v1302 = vunpack.c.l.b16 %v1206
        %v1303 = vunpack.c.l.b16 %v1207
        %v1304 = vunpack.c.h.b16 %v1207
        %v1305 = vunpack.c.l.b16 %v1208
        %v1306 = vpack.c.b16 %v1261, %v1258
        %v1307 = vpack.c.b16 %v1262, %v1259
        %v1308 = vpack.c.b16 %v1263, %v1260
        %v1309 = vpack.c.b16 %v1267, %v1264
        %v1310 = vpack.c.b16 %v1268, %v1265
        %v1311 = vpack.c.b16 %v1269, %v1266
        %v1312 = vpack.c.b16 %v1273, %v1270
        %v1313 = vpack.c.b16 %v1274, %v1271
        %v1314 = vpack.c.b16 %v1275, %v1272
        %v1315 = vpack.c.b16 %v1279, %v1276
        %v1316 = vpack.c.b16 %v1280, %v1277
        %v1317 = vpack.c.b16 %v1281, %v1278
        %v1318 = vpack.c.b16 %v1285, %v1282
        %v1319 = vpack.c.b16 %v1286, %v1283
        %v1320 = vpack.c.b16 %v1287, %v1284
        %v1321 = vpack.c.b16 %v1291, %v1288
        %v1322 = vpack.c.b16 %v1292, %v1289
        %v1323 = vpack.c.b16 %v1293, %v1290
        %v1324 = vpack.c.b16 %v1297, %v1294
        %v1325 = vpack.c.b16 %v1298, %v1295
        %v1326 = vpack.c.b16 %v1299, %v1296
        %v1327 = vpack.c.b16 %v1303, %v1300
        %v1328 = vpack.c.b16 %v1304, %v1301
        %v1329 = vpack.c.b16 %v1305, %v1302
        %1354 = vmatprep.subr.bf16.mxu0 %v1328
        %1355 = vmatpush1.bf16.msra.mxu0 %v1327
        %1356 = vmatprep.subr.bf16.mxu0 %v1325
        %1357 = vmatpush1.bf16.msra.mxu0 %v1324
        %1358 = vmatprep.subr.bf16.mxu0 %v1322
        %1359 = vmatpush1.bf16.msra.mxu0 %v1321
        %1360 = vmatprep.subr.bf16.mxu0 %v1319
        %1361 = vmatpush1.bf16.msra.mxu0 %v1318
        %1362 = vmatprep.subr.bf16.mxu0 %v1316
        %1363 = vmatpush1.bf16.msra.mxu0 %v1315
        %1364 = vmatprep.subr.bf16.mxu0 %v1313
        %1365 = vmatpush1.bf16.msra.mxu0 %v1312
        %1366 = vmatprep.subr.bf16.mxu0 %v1310
        %1367 = vmatpush1.bf16.msra.mxu0 %v1309
        %1368 = vmatprep.subr.bf16.mxu0 %v1307
        %1369 = vmatpush1.bf16.msra.mxu0 %v1306
        %1370 = vmatprep.subr.bf16.mxu0 0
        %1371 = vmatpush2.bf16.msra.mxu0 0
        %1372 = vmatprep.subr.bf16.mxu0 0
        %1373 = vmatpush2.bf16.msra.mxu0 0
        %1374 = vmatprep.subr.bf16.mxu0 0
        %1375 = vmatpush2.bf16.msra.mxu0 0
        %1376 = vmatprep.subr.bf16.mxu0 0
        %1377 = vmatpush2.bf16.msra.mxu0 0
        %1378 = vmatprep.subr.bf16.mxu0 0
        %1379 = vmatpush2.bf16.msra.mxu0 0
        %1380 = vmatprep.subr.bf16.mxu0 0
        %1381 = vmatpush2.bf16.msra.mxu0 0
        %1382 = vmatprep.subr.bf16.mxu0 0
        %1383 = vmatpush2.bf16.msra.mxu0 0
        %1384 = vmatprep.subr.bf16.mxu0 0
        %1385 = vmatpush2.bf16.msra.mxu0 0
        %1386 = vmatprep.mubr.bf16.mxu0 0
        %1387 = vmatmul.mubr.bf16.gmra.mxu0 %v1175
        %v1388 = vpop.f32.mrf.mxu0
        %v1389 = vadd.f32 %v1214, %v1388
        %v1390 = vpop.f32.mrf.mxu0
        %v1391 = vadd.f32 %v1218, %v1390
        %v1392 = vpop.f32.mrf.mxu0
        %v1393 = vadd.f32 %v1214, %v1392
        %v1394 = vpop.f32.mrf.mxu0
        %v1395 = vadd.f32 %v1218, %v1394
        %1396 = vmatprep.mubr.bf16.mxu0 0
        %1397 = vmatmul.mubr.bf16.gmra.mxu0 %v1176
        %v1398 = vpop.f32.mrf.mxu0
        %v1399 = vadd.f32 %v1214, %v1398
        %v1400 = vpop.f32.mrf.mxu0
        %v1401 = vadd.f32 %v1218, %v1400
        %v1402 = vpop.f32.mrf.mxu0
        %v1403 = vadd.f32 %v1214, %v1402
        %v1404 = vpop.f32.mrf.mxu0
        %v1405 = vadd.f32 %v1218, %v1404
        %1406 = vdwg.mxu0
        %1407 = vmatprep.subr.bf16.mxu0 0
        %1408 = vmatpush1.bf16.msra.mxu0 %v1329
        %1409 = vmatprep.subr.bf16.mxu0 0
        %1410 = vmatpush1.bf16.msra.mxu0 %v1326
        %1411 = vmatprep.subr.bf16.mxu0 0
        %1412 = vmatpush1.bf16.msra.mxu0 %v1323
        %1413 = vmatprep.subr.bf16.mxu0 0
        %1414 = vmatpush1.bf16.msra.mxu0 %v1320
        %1415 = vmatprep.subr.bf16.mxu0 0
        %1416 = vmatpush1.bf16.msra.mxu0 %v1317
        %1417 = vmatprep.subr.bf16.mxu0 0
        %1418 = vmatpush1.bf16.msra.mxu0 %v1314
        %1419 = vmatprep.subr.bf16.mxu0 0
        %1420 = vmatpush1.bf16.msra.mxu0 %v1311
        %1421 = vmatprep.subr.bf16.mxu0 0
        %1422 = vmatpush1.bf16.msra.mxu0 %v1308
        %1423 = vmatprep.subr.bf16.mxu0 0
        %1424 = vmatpush2.bf16.msra.mxu0 0
        %1425 = vmatprep.subr.bf16.mxu0 0
        %1426 = vmatpush2.bf16.msra.mxu0 0
        %1427 = vmatprep.subr.bf16.mxu0 0
        %1428 = vmatpush2.bf16.msra.mxu0 0
        %1429 = vmatprep.subr.bf16.mxu0 0
        %1430 = vmatpush2.bf16.msra.mxu0 0
        %1431 = vmatprep.subr.bf16.mxu0 0
        %1432 = vmatpush2.bf16.msra.mxu0 0
        %1433 = vmatprep.subr.bf16.mxu0 0
        %1434 = vmatpush2.bf16.msra.mxu0 0
        %1435 = vmatprep.subr.bf16.mxu0 0
        %1436 = vmatpush2.bf16.msra.mxu0 0
        %1437 = vmatprep.subr.bf16.mxu0 0
        %1438 = vmatpush2.bf16.msra.mxu0 0
        %1439 = vmatprep.mubr.bf16.mxu0 0
        %1440 = vmatmul.mubr.bf16.gmra.mxu0 %v1175
        %v1441 = vpop.f32.mrf.mxu0
        %v1442 = vadd.f32 %v1222, %v1441
        %v1443 = vpop.f32.mrf.mxu0
        %v1444 = vpop.f32.mrf.mxu0
        %v1445 = vadd.f32 %v1222, %v1444
        %v1446 = vpop.f32.mrf.mxu0
        %1447 = vmatprep.mubr.bf16.mxu0 0
        %1448 = vmatmul.mubr.bf16.gmra.mxu0 %v1176
        %v1449 = vpop.f32.mrf.mxu0
        %v1450 = vadd.f32 %v1222, %v1449
        %v1451 = vpop.f32.mrf.mxu0
        %v1452 = vpop.f32.mrf.mxu0
        %v1453 = vadd.f32 %v1222, %v1452
        %v1454 = vpop.f32.mrf.mxu0
        %1455 = vdwg.mxu0
        %v1456 = vpack.c.bf16 %v1395, %v1391
        %v1457 = vpack.c.bf16 %v1405, %v1401
        %v1474 = vunpack.c.l.b16 %v1075
        %v1475 = vunpack.c.l.b16 %v1076
        %v1476 = vunpack.c.l.b16 %v1077
        %v1477 = vunpack.c.l.b16 %v1078
        %v1478 = vunpack.c.l.b16 %v1079
        %v1479 = vunpack.c.l.b16 %v1080
        %v1480 = vunpack.c.l.b16 %v1081
        %v1481 = vunpack.c.l.b16 %v1082
        %v1482 = vunpack.c.l.b16 %v1083
        %v1483 = vunpack.c.l.b16 %v1084
        %v1484 = vunpack.c.l.b16 %v1085
        %v1485 = vunpack.c.l.b16 %v1086
        %v1486 = vunpack.c.l.b16 %v1087
        %v1487 = vunpack.c.l.b16 %v1088
        %v1488 = vunpack.c.l.b16 %v1089
        %v1489 = vunpack.c.l.b16 %v1090
        %v1490 = vpack.c.b16 %v1475, %v1474
        %v1491 = vpack.c.b16 %v1477, %v1476
        %v1492 = vpack.c.b16 %v1479, %v1478
        %v1493 = vpack.c.b16 %v1481, %v1480
        %v1494 = vpack.c.b16 %v1483, %v1482
        %v1495 = vpack.c.b16 %v1485, %v1484
        %v1496 = vpack.c.b16 %v1487, %v1486
        %v1497 = vpack.c.b16 %v1489, %v1488
        %vm1498 = vcmask 261120
        %v1500 = vsel %vm1498, %v1490, 0
        %v1503 = vsel %vm1498, %v1491, 0
        %v1506 = vsel %vm1498, %v1492, 0
        %v1509 = vsel %vm1498, %v1493, 0
        %v1512 = vsel %vm1498, %v1494, 0
        %v1515 = vsel %vm1498, %v1495, 0
        %v1518 = vsel %vm1498, %v1496, 0
        %v1521 = vsel %vm1498, %v1497, 0
        %1523 = vmatprep.subr.bf16.mxu0 0
        %1524 = vmatpush1.bf16.msra.mxu0 0
        %1525 = vmatprep.subr.bf16.mxu0 0
        %1526 = vmatpush1.bf16.msra.mxu0 0
        %1527 = vmatprep.subr.bf16.mxu0 0
        %1528 = vmatpush1.bf16.msra.mxu0 0
        %1529 = vmatprep.subr.bf16.mxu0 0
        %1530 = vmatpush1.bf16.msra.mxu0 0
        %1531 = vmatprep.subr.bf16.mxu0 0
        %1532 = vmatpush1.bf16.msra.mxu0 0
        %1533 = vmatprep.subr.bf16.mxu0 0
        %1534 = vmatpush1.bf16.msra.mxu0 0
        %1535 = vmatprep.subr.bf16.mxu0 0
        %1536 = vmatpush1.bf16.msra.mxu0 %v1457
        %1537 = vmatprep.subr.bf16.mxu0 0
        %1538 = vmatpush1.bf16.msra.mxu0 %v1456
        %1539 = vmatprep.subr.bf16.mxu0 0
        %1540 = vmatpush2.bf16.msra.mxu0 0
        %1541 = vmatprep.subr.bf16.mxu0 0
        %1542 = vmatpush2.bf16.msra.mxu0 0
        %1543 = vmatprep.subr.bf16.mxu0 0
        %1544 = vmatpush2.bf16.msra.mxu0 0
        %1545 = vmatprep.subr.bf16.mxu0 0
        %1546 = vmatpush2.bf16.msra.mxu0 0
        %1547 = vmatprep.subr.bf16.mxu0 0
        %1548 = vmatpush2.bf16.msra.mxu0 0
        %1549 = vmatprep.subr.bf16.mxu0 0
        %1550 = vmatpush2.bf16.msra.mxu0 0
        %1551 = vmatprep.subr.bf16.mxu0 0
        %1552 = vmatpush2.bf16.msra.mxu0 0
        %1553 = vmatprep.subr.bf16.mxu0 0
        %1554 = vmatpush2.bf16.msra.mxu0 0
        %1555 = vmatprep.mubr.bf16.mxu0 0
        %1556 = vmatmul.mubr.bf16.gmra.mxu0 %v1500
        %v1557 = vpop.f32.mrf.mxu0
        %v1558 = vadd.f32 0.0, %v1557
        %v1559 = vpop.f32.mrf.mxu0
        %v1560 = vpop.f32.mrf.mxu0
        %v1561 = vadd.f32 0.0, %v1560
        %v1562 = vpop.f32.mrf.mxu0
        %1563 = vmatprep.mubr.bf16.mxu0 0
        %1564 = vmatmul.mubr.bf16.gmra.mxu0 %v1503
        %v1565 = vpop.f32.mrf.mxu0
        %v1566 = vadd.f32 0.0, %v1565
        %v1567 = vpop.f32.mrf.mxu0
        %v1568 = vpop.f32.mrf.mxu0
        %v1569 = vadd.f32 0.0, %v1568
        %v1570 = vpop.f32.mrf.mxu0
        %1571 = vmatprep.mubr.bf16.mxu0 0
        %1572 = vmatmul.mubr.bf16.gmra.mxu0 %v1506
        %v1573 = vpop.f32.mrf.mxu0
        %v1574 = vadd.f32 0.0, %v1573
        %v1575 = vpop.f32.mrf.mxu0
        %v1576 = vpop.f32.mrf.mxu0
        %v1577 = vadd.f32 0.0, %v1576
        %v1578 = vpop.f32.mrf.mxu0
        %1579 = vmatprep.mubr.bf16.mxu0 0
        %1580 = vmatmul.mubr.bf16.gmra.mxu0 %v1509
        %v1581 = vpop.f32.mrf.mxu0
        %v1582 = vadd.f32 0.0, %v1581
        %v1583 = vpop.f32.mrf.mxu0
        %v1584 = vpop.f32.mrf.mxu0
        %v1585 = vadd.f32 0.0, %v1584
        %v1586 = vpop.f32.mrf.mxu0
        %1587 = vmatprep.mubr.bf16.mxu0 0
        %1588 = vmatmul.mubr.bf16.gmra.mxu0 %v1512
        %v1589 = vpop.f32.mrf.mxu0
        %v1590 = vadd.f32 0.0, %v1589
        %v1591 = vpop.f32.mrf.mxu0
        %v1592 = vpop.f32.mrf.mxu0
        %v1593 = vadd.f32 0.0, %v1592
        %v1594 = vpop.f32.mrf.mxu0
        %1595 = vmatprep.mubr.bf16.mxu0 0
        %1596 = vmatmul.mubr.bf16.gmra.mxu0 %v1515
        %v1597 = vpop.f32.mrf.mxu0
        %v1598 = vadd.f32 0.0, %v1597
        %v1599 = vpop.f32.mrf.mxu0
        %v1600 = vpop.f32.mrf.mxu0
        %v1601 = vadd.f32 0.0, %v1600
        %v1602 = vpop.f32.mrf.mxu0
        %1603 = vmatprep.mubr.bf16.mxu0 0
        %1604 = vmatmul.mubr.bf16.gmra.mxu0 %v1518
        %v1605 = vpop.f32.mrf.mxu0
        %v1606 = vadd.f32 0.0, %v1605
        %v1607 = vpop.f32.mrf.mxu0
        %v1608 = vpop.f32.mrf.mxu0
        %v1609 = vadd.f32 0.0, %v1608
        %v1610 = vpop.f32.mrf.mxu0
        %1611 = vmatprep.mubr.bf16.mxu0 0
        %1612 = vmatmul.mubr.bf16.gmra.mxu0 %v1521
        %v1613 = vpop.f32.mrf.mxu0
        %v1614 = vadd.f32 0.0, %v1613
        %v1615 = vpop.f32.mrf.mxu0
        %v1616 = vpop.f32.mrf.mxu0
        %v1617 = vadd.f32 0.0, %v1616
        %v1618 = vpop.f32.mrf.mxu0
        %1619 = vdwg.mxu0
        %v1620 = vmul.f32 %v1558, %v1091
        %v1621 = vmul.f32 %v1561, %v1092
        %v1622 = vmul.f32 %v1566, %v1093
        %v1623 = vmul.f32 %v1569, %v1094
        %v1624 = vmul.f32 %v1574, %v1095
        %v1625 = vmul.f32 %v1577, %v1096
        %v1626 = vmul.f32 %v1582, %v1097
        %v1627 = vmul.f32 %v1585, %v1098
        %v1628 = vmul.f32 %v1590, %v1099
        %v1629 = vmul.f32 %v1593, %v1100
        %v1630 = vmul.f32 %v1598, %v1101
        %v1631 = vmul.f32 %v1601, %v1102
        %v1632 = vmul.f32 %v1606, %v1103
        %v1633 = vmul.f32 %v1609, %v1104
        %v1634 = vmul.f32 %v1614, %v1105
        %v1635 = vmul.f32 %v1617, %v1106
        %v1636 = vpack.c.bf16 %v1621, %v1620
        %v1637 = vpack.c.bf16 %v1623, %v1622
        %v1638 = vpack.c.bf16 %v1625, %v1624
        %v1639 = vpack.c.bf16 %v1627, %v1626
        %v1640 = vpack.c.bf16 %v1629, %v1628
        %v1641 = vpack.c.bf16 %v1631, %v1630
        %v1642 = vpack.c.bf16 %v1633, %v1632
        %v1643 = vpack.c.bf16 %v1635, %v1634
        %v1644 = vpack.c.bf16 %v1445, %v1442
        %v1645 = vpack.c.bf16 %v1453, %v1450
        %1646 = vmatprep.subr.bf16.mxu0 0
        %1647 = vmatpush1.bf16.msra.mxu0 0
        %1648 = vmatprep.subr.bf16.mxu0 0
        %1649 = vmatpush1.bf16.msra.mxu0 0
        %1650 = vmatprep.subr.bf16.mxu0 0
        %1651 = vmatpush1.bf16.msra.mxu0 0
        %1652 = vmatprep.subr.bf16.mxu0 0
        %1653 = vmatpush1.bf16.msra.mxu0 0
        %1654 = vmatprep.subr.bf16.mxu0 0
        %1655 = vmatpush1.bf16.msra.mxu0 0
        %1656 = vmatprep.subr.bf16.mxu0 0
        %1657 = vmatpush1.bf16.msra.mxu0 0
        %1658 = vmatprep.subr.bf16.mxu0 0
        %1659 = vmatpush1.bf16.msra.mxu0 %v1645
        %1660 = vmatprep.subr.bf16.mxu0 0
        %1661 = vmatpush1.bf16.msra.mxu0 %v1644
        %1662 = vmatprep.subr.bf16.mxu0 0
        %1663 = vmatpush2.bf16.msra.mxu0 0
        %1664 = vmatprep.subr.bf16.mxu0 0
        %1665 = vmatpush2.bf16.msra.mxu0 0
        %1666 = vmatprep.subr.bf16.mxu0 0
        %1667 = vmatpush2.bf16.msra.mxu0 0
        %1668 = vmatprep.subr.bf16.mxu0 0
        %1669 = vmatpush2.bf16.msra.mxu0 0
        %1670 = vmatprep.subr.bf16.mxu0 0
        %1671 = vmatpush2.bf16.msra.mxu0 0
        %1672 = vmatprep.subr.bf16.mxu0 0
        %1673 = vmatpush2.bf16.msra.mxu0 0
        %1674 = vmatprep.subr.bf16.mxu0 0
        %1675 = vmatpush2.bf16.msra.mxu0 0
        %1676 = vmatprep.subr.bf16.mxu0 0
        %1677 = vmatpush2.bf16.msra.mxu0 0
        %1678 = vmatprep.mubr.bf16.mxu0 0
        %1679 = vmatmul.mubr.bf16.gmra.mxu0 %v1500
        %v1680 = vpop.f32.mrf.mxu0
        %v1681 = vadd.f32 0.0, %v1680
        %v1682 = vpop.f32.mrf.mxu0
        %v1683 = vpop.f32.mrf.mxu0
        %v1684 = vadd.f32 0.0, %v1683
        %v1685 = vpop.f32.mrf.mxu0
        %1686 = vmatprep.mubr.bf16.mxu0 0
        %1687 = vmatmul.mubr.bf16.gmra.mxu0 %v1503
        %v1688 = vpop.f32.mrf.mxu0
        %v1689 = vadd.f32 0.0, %v1688
        %v1690 = vpop.f32.mrf.mxu0
        %v1691 = vpop.f32.mrf.mxu0
        %v1692 = vadd.f32 0.0, %v1691
        %v1693 = vpop.f32.mrf.mxu0
        %1694 = vmatprep.mubr.bf16.mxu0 0
        %1695 = vmatmul.mubr.bf16.gmra.mxu0 %v1506
        %v1696 = vpop.f32.mrf.mxu0
        %v1697 = vadd.f32 0.0, %v1696
        %v1698 = vpop.f32.mrf.mxu0
        %v1699 = vpop.f32.mrf.mxu0
        %v1700 = vadd.f32 0.0, %v1699
        %v1701 = vpop.f32.mrf.mxu0
        %1702 = vmatprep.mubr.bf16.mxu0 0
        %1703 = vmatmul.mubr.bf16.gmra.mxu0 %v1509
        %v1704 = vpop.f32.mrf.mxu0
        %v1705 = vadd.f32 0.0, %v1704
        %v1706 = vpop.f32.mrf.mxu0
        %v1707 = vpop.f32.mrf.mxu0
        %v1708 = vadd.f32 0.0, %v1707
        %v1709 = vpop.f32.mrf.mxu0
        %1710 = vmatprep.mubr.bf16.mxu0 0
        %1711 = vmatmul.mubr.bf16.gmra.mxu0 %v1512
        %v1712 = vpop.f32.mrf.mxu0
        %v1713 = vadd.f32 0.0, %v1712
        %v1714 = vpop.f32.mrf.mxu0
        %v1715 = vpop.f32.mrf.mxu0
        %v1716 = vadd.f32 0.0, %v1715
        %v1717 = vpop.f32.mrf.mxu0
        %1718 = vmatprep.mubr.bf16.mxu0 0
        %1719 = vmatmul.mubr.bf16.gmra.mxu0 %v1515
        %v1720 = vpop.f32.mrf.mxu0
        %v1721 = vadd.f32 0.0, %v1720
        %v1722 = vpop.f32.mrf.mxu0
        %v1723 = vpop.f32.mrf.mxu0
        %v1724 = vadd.f32 0.0, %v1723
        %v1725 = vpop.f32.mrf.mxu0
        %1726 = vmatprep.mubr.bf16.mxu0 0
        %1727 = vmatmul.mubr.bf16.gmra.mxu0 %v1518
        %v1728 = vpop.f32.mrf.mxu0
        %v1729 = vadd.f32 0.0, %v1728
        %v1730 = vpop.f32.mrf.mxu0
        %v1731 = vpop.f32.mrf.mxu0
        %v1732 = vadd.f32 0.0, %v1731
        %v1733 = vpop.f32.mrf.mxu0
        %1734 = vmatprep.mubr.bf16.mxu0 0
        %1735 = vmatmul.mubr.bf16.gmra.mxu0 %v1521
        %v1736 = vpop.f32.mrf.mxu0
        %v1737 = vadd.f32 0.0, %v1736
        %v1738 = vpop.f32.mrf.mxu0
        %v1739 = vpop.f32.mrf.mxu0
        %v1740 = vadd.f32 0.0, %v1739
        %v1741 = vpop.f32.mrf.mxu0
        %1742 = vdwg.mxu0
        %v1743 = vmul.f32 %v1681, %v1091
        %v1744 = vmul.f32 %v1684, %v1092
        %v1745 = vmul.f32 %v1689, %v1093
        %v1746 = vmul.f32 %v1692, %v1094
        %v1747 = vmul.f32 %v1697, %v1095
        %v1748 = vmul.f32 %v1700, %v1096
        %v1749 = vmul.f32 %v1705, %v1097
        %v1750 = vmul.f32 %v1708, %v1098
        %v1751 = vmul.f32 %v1713, %v1099
        %v1752 = vmul.f32 %v1716, %v1100
        %v1753 = vmul.f32 %v1721, %v1101
        %v1754 = vmul.f32 %v1724, %v1102
        %v1755 = vmul.f32 %v1729, %v1103
        %v1756 = vmul.f32 %v1732, %v1104
        %v1757 = vmul.f32 %v1737, %v1105
        %v1758 = vmul.f32 %v1740, %v1106
        %v1759 = vpack.c.bf16 %v1744, %v1743
        %v1760 = vpack.c.bf16 %v1746, %v1745
        %v1761 = vpack.c.bf16 %v1748, %v1747
        %v1762 = vpack.c.bf16 %v1750, %v1749
        %v1763 = vpack.c.bf16 %v1752, %v1751
        %v1764 = vpack.c.bf16 %v1754, %v1753
        %v1765 = vpack.c.bf16 %v1756, %v1755
        %v1766 = vpack.c.bf16 %v1758, %v1757
        %v1767 = vpack.c.bf16 %v1393, %v1389
        %v1768 = vpack.c.bf16 %v1403, %v1399
        %1769 = vmatprep.subr.bf16.mxu0 0
        %1770 = vmatpush1.bf16.xpose.msra.mxu0 %v1643
        %1771 = vmatprep.subr.bf16.mxu0 0
        %1772 = vmatpush1.bf16.xpose.msra.mxu0 %v1642
        %1773 = vmatprep.subr.bf16.mxu0 0
        %1774 = vmatpush1.bf16.xpose.msra.mxu0 %v1641
        %1775 = vmatprep.subr.bf16.mxu0 0
        %1776 = vmatpush1.bf16.xpose.msra.mxu0 %v1640
        %1777 = vmatprep.subr.bf16.mxu0 0
        %1778 = vmatpush1.bf16.xpose.msra.mxu0 %v1639
        %1779 = vmatprep.subr.bf16.mxu0 0
        %1780 = vmatpush1.bf16.xpose.msra.mxu0 %v1638
        %1781 = vmatprep.subr.bf16.mxu0 0
        %1782 = vmatpush1.bf16.xpose.msra.mxu0 %v1637
        %1783 = vmatprep.subr.bf16.mxu0 0
        %1784 = vmatpush1.bf16.xpose.msra.mxu0 %v1636
        %1785 = vmatprep.subr.bf16.mxu0 0
        %1786 = vmatpush2.bf16.xpose.msra.mxu0 0
        %1787 = vmatprep.subr.bf16.mxu0 0
        %1788 = vmatpush2.bf16.xpose.msra.mxu0 0
        %1789 = vmatprep.subr.bf16.mxu0 0
        %1790 = vmatpush2.bf16.xpose.msra.mxu0 0
        %1791 = vmatprep.subr.bf16.mxu0 0
        %1792 = vmatpush2.bf16.xpose.msra.mxu0 0
        %1793 = vmatprep.subr.bf16.mxu0 0
        %1794 = vmatpush2.bf16.xpose.msra.mxu0 0
        %1795 = vmatprep.subr.bf16.mxu0 0
        %1796 = vmatpush2.bf16.xpose.msra.mxu0 0
        %1797 = vmatprep.subr.bf16.mxu0 0
        %1798 = vmatpush2.bf16.xpose.msra.mxu0 0
        %1799 = vmatprep.subr.bf16.mxu0 0
        %1800 = vmatpush2.bf16.xpose.msra.mxu0 0
        %1801 = vmatprep.mubr.bf16.mxu0 0
        %1802 = vmatmul.mubr.bf16.gmra.mxu0 %v1767
        %v1803 = vpop.f32.mrf.mxu0
        %v1804 = vadd.f32 %v1071, %v1803
        %v1805 = vpop.f32.mrf.mxu0
        %v1806 = vpop.f32.mrf.mxu0
        %v1807 = vadd.f32 %v1072, %v1806
        %v1808 = vpop.f32.mrf.mxu0
        %1809 = vmatprep.mubr.bf16.mxu0 0
        %1810 = vmatmul.mubr.bf16.gmra.mxu0 %v1768
        %v1811 = vpop.f32.mrf.mxu0
        %v1812 = vadd.f32 %v1073, %v1811
        %v1813 = vpop.f32.mrf.mxu0
        %v1814 = vpop.f32.mrf.mxu0
        %v1815 = vadd.f32 %v1074, %v1814
        %v1816 = vpop.f32.mrf.mxu0
        %1817 = vdwg.mxu0
        %1818 = vmax.xlane.f32.xlu0 %v1804
        %v1819 = vpop.xlane.xlu0 %1818
        %1820 = vmax.xlane.f32.xlu0 %v1807
        %v1821 = vpop.xlane.xlu0 %1820
        %1822 = vmax.xlane.f32.xlu0 %v1812
        %v1823 = vpop.xlane.xlu0 %1822
        %1824 = vmax.xlane.f32.xlu0 %v1815
        %v1825 = vpop.xlane.xlu0 %1824
        %v1826 = vsub.f32 %v1804, %v1819
        %v1827 = vsub.f32 %v1807, %v1821
        %v1828 = vsub.f32 %v1812, %v1823
        %v1829 = vsub.f32 %v1815, %v1825
        %v1830 = vmul.f32 %v1826, 1.442695
        %v1831 = vpow.pop %v1830
        %v1832 = vmul.f32 %v1827, 1.442695
        %v1833 = vpow.pop %v1832
        %v1834 = vmul.f32 %v1828, 1.442695
        %v1835 = vpow.pop %v1834
        %v1836 = vmul.f32 %v1829, 1.442695
        %v1837 = vpow.pop %v1836
        %1838 = vmatprep.subr.mxu0 0.0
        %1839 = vmatpush1.xpose.msra.mxu0 0.0
        %1840 = vmatprep.subr.mxu0 0.0
        %1841 = vmatpush1.xpose.msra.mxu0 0.0
        %1842 = vmatprep.subr.mxu0 0.0
        %1843 = vmatpush1.xpose.msra.mxu0 0.0
        %1844 = vmatprep.subr.mxu0 0.0
        %1845 = vmatpush1.xpose.msra.mxu0 0.0
        %1846 = vmatprep.subr.mxu0 0.0
        %1847 = vmatpush1.xpose.msra.mxu0 0.0
        %1848 = vmatprep.subr.mxu0 0.0
        %1849 = vmatpush1.xpose.msra.mxu0 0.0
        %1850 = vmatprep.subr.mxu0 0.0
        %1851 = vmatpush1.xpose.msra.mxu0 0.0
        %1852 = vmatprep.subr.mxu0 0.0
        %1853 = vmatpush1.xpose.msra.mxu0 0.0
        %1854 = vmatprep.subr.mxu0 0.0
        %1855 = vmatpush1.xpose.msra.mxu0 0.0
        %1856 = vmatprep.subr.mxu0 0.0
        %1857 = vmatpush1.xpose.msra.mxu0 0.0
        %1858 = vmatprep.subr.mxu0 0.0
        %1859 = vmatpush1.xpose.msra.mxu0 0.0
        %1860 = vmatprep.subr.mxu0 0.0
        %1861 = vmatpush1.xpose.msra.mxu0 0.0
        %1862 = vmatprep.subr.mxu0 0.0
        %1863 = vmatpush1.xpose.msra.mxu0 0.0
        %1864 = vmatprep.subr.mxu0 0.0
        %1865 = vmatpush1.xpose.msra.mxu0 0.0
        %1866 = vmatprep.subr.mxu0 0.0
        %1867 = vmatpush1.xpose.msra.mxu0 0.0
        %1868 = vmatprep.subr.mxu0 0.0
        %1869 = vmatpush1.xpose.msra.mxu0 %v1107
        %1870 = vmatprep.subr.mxu0 0.0
        %1871 = vmatpush2.xpose.msra.mxu0 0.0
        %1872 = vmatprep.subr.mxu0 0.0
        %1873 = vmatpush2.xpose.msra.mxu0 0.0
        %1874 = vmatprep.subr.mxu0 0.0
        %1875 = vmatpush2.xpose.msra.mxu0 0.0
        %1876 = vmatprep.subr.mxu0 0.0
        %1877 = vmatpush2.xpose.msra.mxu0 0.0
        %1878 = vmatprep.subr.mxu0 0.0
        %1879 = vmatpush2.xpose.msra.mxu0 0.0
        %1880 = vmatprep.subr.mxu0 0.0
        %1881 = vmatpush2.xpose.msra.mxu0 0.0
        %1882 = vmatprep.subr.mxu0 0.0
        %1883 = vmatpush2.xpose.msra.mxu0 0.0
        %1884 = vmatprep.subr.mxu0 0.0
        %1885 = vmatpush2.xpose.msra.mxu0 0.0
        %1886 = vmatprep.subr.mxu0 0.0
        %1887 = vmatpush2.xpose.msra.mxu0 0.0
        %1888 = vmatprep.subr.mxu0 0.0
        %1889 = vmatpush2.xpose.msra.mxu0 0.0
        %1890 = vmatprep.subr.mxu0 0.0
        %1891 = vmatpush2.xpose.msra.mxu0 0.0
        %1892 = vmatprep.subr.mxu0 0.0
        %1893 = vmatpush2.xpose.msra.mxu0 0.0
        %1894 = vmatprep.subr.mxu0 0.0
        %1895 = vmatpush2.xpose.msra.mxu0 0.0
        %1896 = vmatprep.subr.mxu0 0.0
        %1897 = vmatpush2.xpose.msra.mxu0 0.0
        %1898 = vmatprep.subr.mxu0 0.0
        %1899 = vmatpush2.xpose.msra.mxu0 0.0
        %1900 = vmatprep.subr.mxu0 0.0
        %1901 = vmatpush2.xpose.msra.mxu0 0.0
        %1902 = vmatprep.mubr.f32.mxu0 0.0
        %1903 = vmatmul.mubr.f32.gmra.mxu0 %v1831
        %v1904 = vpop.f32.mrf.mxu0
        %v1905 = vadd.f32 0.0, %v1904
        %v1906 = vpop.f32.mrf.mxu0
        %1907 = vmatprep.mubr.f32.mxu0 0.0
        %1908 = vmatmul.mubr.f32.gmra.mxu0 %v1833
        %v1909 = vpop.f32.mrf.mxu0
        %v1910 = vadd.f32 0.0, %v1909
        %v1911 = vpop.f32.mrf.mxu0
        %1912 = vmatprep.mubr.f32.mxu0 0.0
        %1913 = vmatmul.mubr.f32.gmra.mxu0 %v1835
        %v1914 = vpop.f32.mrf.mxu0
        %v1915 = vadd.f32 0.0, %v1914
        %v1916 = vpop.f32.mrf.mxu0
        %1917 = vmatprep.mubr.f32.mxu0 0.0
        %1918 = vmatmul.mubr.f32.gmra.mxu0 %v1837
        %v1919 = vpop.f32.mrf.mxu0
        %v1920 = vadd.f32 0.0, %v1919
        %v1921 = vpop.f32.mrf.mxu0
        %1922 = vdwg.mxu0
        %v1923 = vmax.f32 %v1905, 1e-20
        %v1924 = vmax.f32 %v1910, 1e-20
        %v1925 = vmax.f32 %v1915, 1e-20
        %v1926 = vmax.f32 %v1920, 1e-20
        %v1927 = vrcp.pop %v1923
        %v1928 = vrcp.pop %v1924
        %v1929 = vrcp.pop %v1925
        %v1930 = vrcp.pop %v1926
        %vm1931 = vcmask 64512
        %v1933 = vsel %vm1931, %v1927, 0
        %v1936 = vsel %vm1931, %v1928, 0
        %v1939 = vsel %vm1931, %v1929, 0
        %v1942 = vsel %vm1931, %v1930, 0
        %1944 = vmatprep.subr.mxu0 0.0
        %1945 = vmatpush1.msra.mxu0 0.0
        %1946 = vmatprep.subr.mxu0 0.0
        %1947 = vmatpush1.msra.mxu0 0.0
        %1948 = vmatprep.subr.mxu0 0.0
        %1949 = vmatpush1.msra.mxu0 0.0
        %1950 = vmatprep.subr.mxu0 0.0
        %1951 = vmatpush1.msra.mxu0 0.0
        %1952 = vmatprep.subr.mxu0 0.0
        %1953 = vmatpush1.msra.mxu0 0.0
        %1954 = vmatprep.subr.mxu0 0.0
        %1955 = vmatpush1.msra.mxu0 0.0
        %1956 = vmatprep.subr.mxu0 0.0
        %1957 = vmatpush1.msra.mxu0 0.0
        %1958 = vmatprep.subr.mxu0 0.0
        %1959 = vmatpush1.msra.mxu0 0.0
        %1960 = vmatprep.subr.mxu0 0.0
        %1961 = vmatpush1.msra.mxu0 0.0
        %1962 = vmatprep.subr.mxu0 0.0
        %1963 = vmatpush1.msra.mxu0 0.0
        %1964 = vmatprep.subr.mxu0 0.0
        %1965 = vmatpush1.msra.mxu0 0.0
        %1966 = vmatprep.subr.mxu0 0.0
        %1967 = vmatpush1.msra.mxu0 0.0
        %1968 = vmatprep.subr.mxu0 0.0
        %1969 = vmatpush1.msra.mxu0 0.0
        %1970 = vmatprep.subr.mxu0 0.0
        %1971 = vmatpush1.msra.mxu0 0.0
        %1972 = vmatprep.subr.mxu0 0.0
        %1973 = vmatpush1.msra.mxu0 0.0
        %1974 = vmatprep.subr.mxu0 0.0
        %1975 = vmatpush1.msra.mxu0 %v1107
        %1976 = vmatprep.subr.mxu0 0.0
        %1977 = vmatpush2.msra.mxu0 0.0
        %1978 = vmatprep.subr.mxu0 0.0
        %1979 = vmatpush2.msra.mxu0 0.0
        %1980 = vmatprep.subr.mxu0 0.0
        %1981 = vmatpush2.msra.mxu0 0.0
        %1982 = vmatprep.subr.mxu0 0.0
        %1983 = vmatpush2.msra.mxu0 0.0
        %1984 = vmatprep.subr.mxu0 0.0
        %1985 = vmatpush2.msra.mxu0 0.0
        %1986 = vmatprep.subr.mxu0 0.0
        %1987 = vmatpush2.msra.mxu0 0.0
        %1988 = vmatprep.subr.mxu0 0.0
        %1989 = vmatpush2.msra.mxu0 0.0
        %1990 = vmatprep.subr.mxu0 0.0
        %1991 = vmatpush2.msra.mxu0 0.0
        %1992 = vmatprep.subr.mxu0 0.0
        %1993 = vmatpush2.msra.mxu0 0.0
        %1994 = vmatprep.subr.mxu0 0.0
        %1995 = vmatpush2.msra.mxu0 0.0
        %1996 = vmatprep.subr.mxu0 0.0
        %1997 = vmatpush2.msra.mxu0 0.0
        %1998 = vmatprep.subr.mxu0 0.0
        %1999 = vmatpush2.msra.mxu0 0.0
        %2000 = vmatprep.subr.mxu0 0.0
        %2001 = vmatpush2.msra.mxu0 0.0
        %2002 = vmatprep.subr.mxu0 0.0
        %2003 = vmatpush2.msra.mxu0 0.0
        %2004 = vmatprep.subr.mxu0 0.0
        %2005 = vmatpush2.msra.mxu0 0.0
        %2006 = vmatprep.subr.mxu0 0.0
        %2007 = vmatpush2.msra.mxu0 0.0
        %2008 = vmatprep.mubr.f32.mxu0 0.0
        %2009 = vmatmul.mubr.f32.gmra.mxu0 %v1933
        %v2010 = vpop.f32.mrf.mxu0
        %v2011 = vadd.f32 0.0, %v2010
        %v2012 = vpop.f32.mrf.mxu0
        %2013 = vmatprep.mubr.f32.mxu0 0.0
        %2014 = vmatmul.mubr.f32.gmra.mxu0 %v1936
        %v2015 = vpop.f32.mrf.mxu0
        %v2016 = vadd.f32 0.0, %v2015
        %v2017 = vpop.f32.mrf.mxu0
        %2018 = vmatprep.mubr.f32.mxu0 0.0
        %2019 = vmatmul.mubr.f32.gmra.mxu0 %v1939
        %v2020 = vpop.f32.mrf.mxu0
        %v2021 = vadd.f32 0.0, %v2020
        %v2022 = vpop.f32.mrf.mxu0
        %2023 = vmatprep.mubr.f32.mxu0 0.0
        %2024 = vmatmul.mubr.f32.gmra.mxu0 %v1942
        %v2025 = vpop.f32.mrf.mxu0
        %v2026 = vadd.f32 0.0, %v2025
        %v2027 = vpop.f32.mrf.mxu0
        %2028 = vdwg.mxu0
        %v2029 = vmul.f32 %v1831, %v2011
        %v2030 = vmul.f32 %v1833, %v2016
        %v2031 = vmul.f32 %v1835, %v2021
        %v2032 = vmul.f32 %v1837, %v2026
        %v2033 = vpack.c.bf16 %v2030, %v2029
        %v2034 = vpack.c.bf16 %v2032, %v2031
        %2035 = vmatprep.subr.bf16.mxu0 0
        %2036 = vmatpush1.bf16.msra.mxu0 %v1766
        %2037 = vmatprep.subr.bf16.mxu0 0
        %2038 = vmatpush1.bf16.msra.mxu0 %v1765
        %2039 = vmatprep.subr.bf16.mxu0 0
        %2040 = vmatpush1.bf16.msra.mxu0 %v1764
        %2041 = vmatprep.subr.bf16.mxu0 0
        %2042 = vmatpush1.bf16.msra.mxu0 %v1763
        %2043 = vmatprep.subr.bf16.mxu0 0
        %2044 = vmatpush1.bf16.msra.mxu0 %v1762
        %2045 = vmatprep.subr.bf16.mxu0 0
        %2046 = vmatpush1.bf16.msra.mxu0 %v1761
        %2047 = vmatprep.subr.bf16.mxu0 0
        %2048 = vmatpush1.bf16.msra.mxu0 %v1760
        %2049 = vmatprep.subr.bf16.mxu0 0
        %2050 = vmatpush1.bf16.msra.mxu0 %v1759
        %2051 = vmatprep.subr.bf16.mxu0 0
        %2052 = vmatpush2.bf16.msra.mxu0 0
        %2053 = vmatprep.subr.bf16.mxu0 0
        %2054 = vmatpush2.bf16.msra.mxu0 0
        %2055 = vmatprep.subr.bf16.mxu0 0
        %2056 = vmatpush2.bf16.msra.mxu0 0
        %2057 = vmatprep.subr.bf16.mxu0 0
        %2058 = vmatpush2.bf16.msra.mxu0 0
        %2059 = vmatprep.subr.bf16.mxu0 0
        %2060 = vmatpush2.bf16.msra.mxu0 0
        %2061 = vmatprep.subr.bf16.mxu0 0
        %2062 = vmatpush2.bf16.msra.mxu0 0
        %2063 = vmatprep.subr.bf16.mxu0 0
        %2064 = vmatpush2.bf16.msra.mxu0 0
        %2065 = vmatprep.subr.bf16.mxu0 0
        %2066 = vmatpush2.bf16.msra.mxu0 0
        %2067 = vmatprep.mubr.bf16.mxu0 0
        %2068 = vmatmul.mubr.bf16.gmra.mxu0 %v2033
        %v2069 = vpop.f32.mrf.mxu0
        %v2070 = vadd.f32 0.0, %v2069
        %v2071 = vpop.f32.mrf.mxu0
        %v2072 = vpop.f32.mrf.mxu0
        %v2073 = vadd.f32 0.0, %v2072
        %v2074 = vpop.f32.mrf.mxu0
        %2075 = vmatprep.mubr.bf16.mxu0 0
        %2076 = vmatmul.mubr.bf16.gmra.mxu0 %v2034
        %v2077 = vpop.f32.mrf.mxu0
        %v2078 = vadd.f32 0.0, %v2077
        %v2079 = vpop.f32.mrf.mxu0
        %v2080 = vpop.f32.mrf.mxu0
        %v2081 = vadd.f32 0.0, %v2080
        %v2082 = vpop.f32.mrf.mxu0
        %2083 = vdwg.mxu0
        %v2084 = vpack.c.bf16 %v2073, %v2070
        %v2085 = vpack.c.bf16 %v2081, %v2078
        %v2086 = vld [vmem:[%s1029] sm:$0xf]
        %v2087 = vld [vmem:[%s1029 + $0x4] sm:$0xf]
        %v2088 = vld [vmem:[%s1029 + $0x8] sm:$0xf]
        %v2089 = vld [vmem:[%s1029 + $0xc] sm:$0xf]
        %v2090 = vld [vmem:[%s1029 + $0x10] sm:$0xf]
        %v2091 = vld [vmem:[%s1029 + $0x14] sm:$0xf]
        %v2092 = vld [vmem:[%s1029 + $0x18] sm:$0xf]
        %v2093 = vld [vmem:[%s1029 + $0x1c] sm:$0xf]
        %v2094 = vld [vmem:[%s1029 + $0x20] sm:$0xf]
        %v2095 = vld [vmem:[%s1029 + $0x24] sm:$0xf]
        %v2096 = vld [vmem:[%s1029 + $0x28] sm:$0xf]
        %v2097 = vld [vmem:[%s1029 + $0x2c] sm:$0xf]
        %v2098 = vld [vmem:[%s1029 + $0x30] sm:$0xf]
        %v2099 = vld [vmem:[%s1029 + $0x34] sm:$0xf]
        %v2100 = vld [vmem:[%s1029 + $0x38] sm:$0xf]
        %v2101 = vld [vmem:[%s1029 + $0x3c] sm:$0xf]
        %v2102 = vld [vmem:[%s1032] sm:$0x1]
        %v2104 = vlaneseq
        %v2105 = vshrl.u32 %v2104, 7
        %v2106 = vsub.s32 0, %v2105
        %v2107 = vrot.slane %v2102, %v2106
        %v2125 = vunpack.c.l.b16 %v2086
        %v2126 = vunpack.c.l.b16 %v2087
        %v2127 = vunpack.c.l.b16 %v2088
        %v2128 = vunpack.c.l.b16 %v2089
        %v2129 = vunpack.c.l.b16 %v2090
        %v2130 = vunpack.c.l.b16 %v2091
        %v2131 = vunpack.c.l.b16 %v2092
        %v2132 = vunpack.c.l.b16 %v2093
        %v2133 = vunpack.c.l.b16 %v2094
        %v2134 = vunpack.c.l.b16 %v2095
        %v2135 = vunpack.c.l.b16 %v2096
        %v2136 = vunpack.c.l.b16 %v2097
        %v2137 = vunpack.c.l.b16 %v2098
        %v2138 = vunpack.c.l.b16 %v2099
        %v2139 = vunpack.c.l.b16 %v2100
        %v2140 = vunpack.c.l.b16 %v2101
        %v2141 = vpack.c.b16 %v2126, %v2125
        %v2142 = vpack.c.b16 %v2128, %v2127
        %v2143 = vpack.c.b16 %v2130, %v2129
        %v2144 = vpack.c.b16 %v2132, %v2131
        %v2145 = vpack.c.b16 %v2134, %v2133
        %v2146 = vpack.c.b16 %v2136, %v2135
        %v2147 = vpack.c.b16 %v2138, %v2137
        %v2148 = vpack.c.b16 %v2140, %v2139
        %2157 = vmatprep.subr.bf16.mxu0 0
        %2158 = vmatpush1.bf16.msra.mxu0 %v2148
        %2159 = vmatprep.subr.bf16.mxu0 0
        %2160 = vmatpush1.bf16.msra.mxu0 %v2147
        %2161 = vmatprep.subr.bf16.mxu0 0
        %2162 = vmatpush1.bf16.msra.mxu0 %v2146
        %2163 = vmatprep.subr.bf16.mxu0 0
        %2164 = vmatpush1.bf16.msra.mxu0 %v2145
        %2165 = vmatprep.subr.bf16.mxu0 0
        %2166 = vmatpush1.bf16.msra.mxu0 %v2144
        %2167 = vmatprep.subr.bf16.mxu0 0
        %2168 = vmatpush1.bf16.msra.mxu0 %v2143
        %2169 = vmatprep.subr.bf16.mxu0 0
        %2170 = vmatpush1.bf16.msra.mxu0 %v2142
        %2171 = vmatprep.subr.bf16.mxu0 0
        %2172 = vmatpush1.bf16.msra.mxu0 %v2141
        %2173 = vmatprep.subr.bf16.mxu0 0
        %2174 = vmatpush2.bf16.msra.mxu0 0
        %2175 = vmatprep.subr.bf16.mxu0 0
        %2176 = vmatpush2.bf16.msra.mxu0 0
        %2177 = vmatprep.subr.bf16.mxu0 0
        %2178 = vmatpush2.bf16.msra.mxu0 0
        %2179 = vmatprep.subr.bf16.mxu0 0
        %2180 = vmatpush2.bf16.msra.mxu0 0
        %2181 = vmatprep.subr.bf16.mxu0 0
        %2182 = vmatpush2.bf16.msra.mxu0 0
        %2183 = vmatprep.subr.bf16.mxu0 0
        %2184 = vmatpush2.bf16.msra.mxu0 0
        %2185 = vmatprep.subr.bf16.mxu0 0
        %2186 = vmatpush2.bf16.msra.mxu0 0
        %2187 = vmatprep.subr.bf16.mxu0 0
        %2188 = vmatpush2.bf16.msra.mxu0 0
        %2189 = vmatprep.mubr.bf16.mxu0 0
        %2190 = vmatmul.mubr.bf16.gmra.mxu0 %v2084
        %v2191 = vpop.f32.mrf.mxu0
        %v2192 = vadd.f32 %v2107, %v2191
        %v2193 = vpop.f32.mrf.mxu0
        %v2194 = vpop.f32.mrf.mxu0
        %v2195 = vadd.f32 %v2107, %v2194
        %v2196 = vpop.f32.mrf.mxu0
        %2197 = vmatprep.mubr.bf16.mxu0 0
        %2198 = vmatmul.mubr.bf16.gmra.mxu0 %v2085
        %v2199 = vpop.f32.mrf.mxu0
        %v2200 = vadd.f32 %v2107, %v2199
        %v2201 = vpop.f32.mrf.mxu0
        %v2202 = vpop.f32.mrf.mxu0
        %v2203 = vadd.f32 %v2107, %v2202
        %v2204 = vpop.f32.mrf.mxu0
        %2205 = vdwg.mxu0
        %v2206 = vadd.f32 %v1067, %v2192
        %v2207 = vadd.f32 %v1068, %v2195
        %v2208 = vadd.f32 %v1069, %v2200
        %v2209 = vadd.f32 %v1070, %v2203
        %v2210 = vld [vmem:[%s1035] sm:$0x1]
        %v2211 = vld [vmem:[%s1038] sm:$0x1]
        %2212 = vadd.xlane.f32.xlu0 %v2206
        %v2213 = vpop.xlane.xlu0 %2212
        %2214 = vadd.xlane.f32.xlu0 %v2207
        %v2215 = vpop.xlane.xlu0 %2214
        %2216 = vadd.xlane.f32.xlu0 %v2208
        %v2217 = vpop.xlane.xlu0 %2216
        %2218 = vadd.xlane.f32.xlu0 %v2209
        %v2219 = vpop.xlane.xlu0 %2218
        %v2220 = vmul.f32 %v2213, %v1118
        %v2221 = vmul.f32 %v2215, %v1118
        %v2222 = vmul.f32 %v2217, %v1118
        %v2223 = vmul.f32 %v2219, %v1118
        %v2224 = vsub.f32 %v2206, %v2220
        %v2225 = vsub.f32 %v2207, %v2221
        %v2226 = vsub.f32 %v2208, %v2222
        %v2227 = vsub.f32 %v2209, %v2223
        %v2228 = vmul.f32 %v2224, %v2224
        %v2229 = vmul.f32 %v2225, %v2225
        %v2230 = vmul.f32 %v2226, %v2226
        %v2231 = vmul.f32 %v2227, %v2227
        %2232 = vadd.xlane.f32.xlu0 %v2228
        %v2233 = vpop.xlane.xlu0 %2232
        %2234 = vadd.xlane.f32.xlu0 %v2229
        %v2235 = vpop.xlane.xlu0 %2234
        %2236 = vadd.xlane.f32.xlu0 %v2230
        %v2237 = vpop.xlane.xlu0 %2236
        %2238 = vadd.xlane.f32.xlu0 %v2231
        %v2239 = vpop.xlane.xlu0 %2238
        %v2240 = vmul.f32 %v2233, %v1118
        %v2241 = vmul.f32 %v2235, %v1118
        %v2242 = vmul.f32 %v2237, %v1118
        %v2243 = vmul.f32 %v2239, %v1118
        %v2244 = vadd.f32 %v2240, 1e-05
        %v2245 = vadd.f32 %v2241, 1e-05
        %v2246 = vadd.f32 %v2242, 1e-05
        %v2247 = vadd.f32 %v2243, 1e-05
        %v2248 = vrsqrt.pop %v2244
        %v2249 = vrsqrt.pop %v2245
        %v2250 = vrsqrt.pop %v2246
        %v2251 = vrsqrt.pop %v2247
        %v2252 = vmul.f32 %v2224, %v2248
        %v2253 = vmul.f32 %v2225, %v2249
        %v2254 = vmul.f32 %v2226, %v2250
        %v2255 = vmul.f32 %v2227, %v2251
        %v2257 = vlaneseq
        %v2258 = vshrl.u32 %v2257, 7
        %v2259 = vsub.s32 0, %v2258
        %v2260 = vrot.slane %v2210, %v2259
        %v2262 = vmul.f32 %v2252, %v2260
        %v2263 = vmul.f32 %v2253, %v2260
        %v2264 = vmul.f32 %v2254, %v2260
        %v2265 = vmul.f32 %v2255, %v2260
        %v2267 = vlaneseq
        %v2268 = vshrl.u32 %v2267, 7
        %v2269 = vsub.s32 0, %v2268
        %v2270 = vrot.slane %v2211, %v2269
        %v2272 = vadd.f32 %v2262, %v2270
        %v2273 = vadd.f32 %v2263, %v2270
        %v2274 = vadd.f32 %v2264, %v2270
        %v2275 = vadd.f32 %v2265, %v2270
        %v2276 = vpack.c.bf16 %v2273, %v2272
        %v2277 = vpack.c.bf16 %v2275, %v2274
        %v2278 = vld [vmem:[%s912] sm:$0xff]
        %v2279 = vld [vmem:[%s912 + $0x8] sm:$0xff]
        %v2280 = vld [vmem:[%s912 + $0x10] sm:$0xff]
        %v2281 = vld [vmem:[%s912 + $0x18] sm:$0xff]
        %v2282 = vld [vmem:[%s912 + $0x20] sm:$0xff]
        %v2283 = vld [vmem:[%s912 + $0x28] sm:$0xff]
        %v2284 = vld [vmem:[%s912 + $0x30] sm:$0xff]
        %v2285 = vld [vmem:[%s912 + $0x38] sm:$0xff]
        %v2286 = vld [vmem:[%s912 + $0x40] sm:$0xff]
        %v2287 = vld [vmem:[%s912 + $0x48] sm:$0xff]
        %v2288 = vld [vmem:[%s912 + $0x50] sm:$0xff]
        %v2289 = vld [vmem:[%s912 + $0x58] sm:$0xff]
        %v2290 = vld [vmem:[%s912 + $0x60] sm:$0xff]
        %v2291 = vld [vmem:[%s912 + $0x68] sm:$0xff]
        %v2292 = vld [vmem:[%s912 + $0x70] sm:$0xff]
        %v2293 = vld [vmem:[%s912 + $0x78] sm:$0xff]
        %v2294 = vld [vmem:[%s1042] sm:$0x3]
        %v2296 = vlaneseq
        %v2297 = vshrl.u32 %v2296, 7
        %v2298 = vsub.s32 0, %v2297
        %v2299 = vrot.slane %v2294, %v2298
        %v2300 = vlaneseq
        %v2301 = vshrl.u32 %v2300, 7
        %v2302 = vsub.s32 1, %v2301
        %v2303 = vrot.slane %v2294, %v2302
        %v2322 = vunpack.c.l.b16 %v2278
        %v2323 = vunpack.c.h.b16 %v2278
        %v2324 = vunpack.c.l.b16 %v2279
        %v2325 = vunpack.c.h.b16 %v2279
        %v2326 = vunpack.c.l.b16 %v2280
        %v2327 = vunpack.c.h.b16 %v2280
        %v2328 = vunpack.c.l.b16 %v2281
        %v2329 = vunpack.c.h.b16 %v2281
        %v2330 = vunpack.c.l.b16 %v2282
        %v2331 = vunpack.c.h.b16 %v2282
        %v2332 = vunpack.c.l.b16 %v2283
        %v2333 = vunpack.c.h.b16 %v2283
        %v2334 = vunpack.c.l.b16 %v2284
        %v2335 = vunpack.c.h.b16 %v2284
        %v2336 = vunpack.c.l.b16 %v2285
        %v2337 = vunpack.c.h.b16 %v2285
        %v2338 = vunpack.c.l.b16 %v2286
        %v2339 = vunpack.c.h.b16 %v2286
        %v2340 = vunpack.c.l.b16 %v2287
        %v2341 = vunpack.c.h.b16 %v2287
        %v2342 = vunpack.c.l.b16 %v2288
        %v2343 = vunpack.c.h.b16 %v2288
        %v2344 = vunpack.c.l.b16 %v2289
        %v2345 = vunpack.c.h.b16 %v2289
        %v2346 = vunpack.c.l.b16 %v2290
        %v2347 = vunpack.c.h.b16 %v2290
        %v2348 = vunpack.c.l.b16 %v2291
        %v2349 = vunpack.c.h.b16 %v2291
        %v2350 = vunpack.c.l.b16 %v2292
        %v2351 = vunpack.c.h.b16 %v2292
        %v2352 = vunpack.c.l.b16 %v2293
        %v2353 = vunpack.c.h.b16 %v2293
        %v2354 = vpack.c.b16 %v2324, %v2322
        %v2355 = vpack.c.b16 %v2325, %v2323
        %v2356 = vpack.c.b16 %v2328, %v2326
        %v2357 = vpack.c.b16 %v2329, %v2327
        %v2358 = vpack.c.b16 %v2332, %v2330
        %v2359 = vpack.c.b16 %v2333, %v2331
        %v2360 = vpack.c.b16 %v2336, %v2334
        %v2361 = vpack.c.b16 %v2337, %v2335
        %v2362 = vpack.c.b16 %v2340, %v2338
        %v2363 = vpack.c.b16 %v2341, %v2339
        %v2364 = vpack.c.b16 %v2344, %v2342
        %v2365 = vpack.c.b16 %v2345, %v2343
        %v2366 = vpack.c.b16 %v2348, %v2346
        %v2367 = vpack.c.b16 %v2349, %v2347
        %v2368 = vpack.c.b16 %v2352, %v2350
        %v2369 = vpack.c.b16 %v2353, %v2351
        %2386 = vmatprep.subr.bf16.mxu0 %v2369
        %2387 = vmatpush1.bf16.msra.mxu0 %v2368
        %2388 = vmatprep.subr.bf16.mxu0 %v2367
        %2389 = vmatpush1.bf16.msra.mxu0 %v2366
        %2390 = vmatprep.subr.bf16.mxu0 %v2365
        %2391 = vmatpush1.bf16.msra.mxu0 %v2364
        %2392 = vmatprep.subr.bf16.mxu0 %v2363
        %2393 = vmatpush1.bf16.msra.mxu0 %v2362
        %2394 = vmatprep.subr.bf16.mxu0 %v2361
        %2395 = vmatpush1.bf16.msra.mxu0 %v2360
        %2396 = vmatprep.subr.bf16.mxu0 %v2359
        %2397 = vmatpush1.bf16.msra.mxu0 %v2358
        %2398 = vmatprep.subr.bf16.mxu0 %v2357
        %2399 = vmatpush1.bf16.msra.mxu0 %v2356
        %2400 = vmatprep.subr.bf16.mxu0 %v2355
        %2401 = vmatpush1.bf16.msra.mxu0 %v2354
        %2402 = vmatprep.subr.bf16.mxu0 0
        %2403 = vmatpush2.bf16.msra.mxu0 0
        %2404 = vmatprep.subr.bf16.mxu0 0
        %2405 = vmatpush2.bf16.msra.mxu0 0
        %2406 = vmatprep.subr.bf16.mxu0 0
        %2407 = vmatpush2.bf16.msra.mxu0 0
        %2408 = vmatprep.subr.bf16.mxu0 0
        %2409 = vmatpush2.bf16.msra.mxu0 0
        %2410 = vmatprep.subr.bf16.mxu0 0
        %2411 = vmatpush2.bf16.msra.mxu0 0
        %2412 = vmatprep.subr.bf16.mxu0 0
        %2413 = vmatpush2.bf16.msra.mxu0 0
        %2414 = vmatprep.subr.bf16.mxu0 0
        %2415 = vmatpush2.bf16.msra.mxu0 0
        %2416 = vmatprep.subr.bf16.mxu0 0
        %2417 = vmatpush2.bf16.msra.mxu0 0
        %2418 = vmatprep.mubr.bf16.mxu0 0
        %2419 = vmatmul.mubr.bf16.gmra.mxu0 %v2276
        %v2420 = vpop.f32.mrf.mxu0
        %v2421 = vadd.f32 %v2299, %v2420
        %v2422 = vpop.f32.mrf.mxu0
        %v2423 = vadd.f32 %v2303, %v2422
        %v2424 = vpop.f32.mrf.mxu0
        %v2425 = vadd.f32 %v2299, %v2424
        %v2426 = vpop.f32.mrf.mxu0
        %v2427 = vadd.f32 %v2303, %v2426
        %2428 = vmatprep.mubr.bf16.mxu0 0
        %2429 = vmatmul.mubr.bf16.gmra.mxu0 %v2277
        %v2430 = vpop.f32.mrf.mxu0
        %v2431 = vadd.f32 %v2299, %v2430
        %v2432 = vpop.f32.mrf.mxu0
        %v2433 = vadd.f32 %v2303, %v2432
        %v2434 = vpop.f32.mrf.mxu0
        %v2435 = vadd.f32 %v2299, %v2434
        %v2436 = vpop.f32.mrf.mxu0
        %v2437 = vadd.f32 %v2303, %v2436
        %2438 = vdwg.mxu0
        %v2439 = vmax.f32 %v2421, 0.0
        %v2440 = vmax.f32 %v2423, 0.0
        %v2441 = vmax.f32 %v2425, 0.0
        %v2442 = vmax.f32 %v2427, 0.0
        %v2443 = vmax.f32 %v2431, 0.0
        %v2444 = vmax.f32 %v2433, 0.0
        %v2445 = vmax.f32 %v2435, 0.0
        %v2446 = vmax.f32 %v2437, 0.0
        %v2447 = vpack.c.bf16 %v2441, %v2439
        %v2448 = vpack.c.bf16 %v2442, %v2440
        %v2449 = vpack.c.bf16 %v2445, %v2443
        %v2450 = vpack.c.bf16 %v2446, %v2444
        %v2451 = vld [vmem:[%s921] sm:$0xf]
        %v2452 = vld [vmem:[%s921 + $0x4] sm:$0xf]
        %v2453 = vld [vmem:[%s921 + $0x8] sm:$0xf]
        %v2454 = vld [vmem:[%s921 + $0xc] sm:$0xf]
        %v2455 = vld [vmem:[%s921 + $0x10] sm:$0xf]
        %v2456 = vld [vmem:[%s921 + $0x14] sm:$0xf]
        %v2457 = vld [vmem:[%s921 + $0x18] sm:$0xf]
        %v2458 = vld [vmem:[%s921 + $0x1c] sm:$0xf]
        %v2459 = vld [vmem:[%s921 + $0x20] sm:$0xf]
        %v2460 = vld [vmem:[%s921 + $0x24] sm:$0xf]
        %v2461 = vld [vmem:[%s921 + $0x28] sm:$0xf]
        %v2462 = vld [vmem:[%s921 + $0x2c] sm:$0xf]
        %v2463 = vld [vmem:[%s921 + $0x30] sm:$0xf]
        %v2464 = vld [vmem:[%s921 + $0x34] sm:$0xf]
        %v2465 = vld [vmem:[%s921 + $0x38] sm:$0xf]
        %v2466 = vld [vmem:[%s921 + $0x3c] sm:$0xf]
        %v2467 = vld [vmem:[%s921 + $0x40] sm:$0xf]
        %v2468 = vld [vmem:[%s921 + $0x44] sm:$0xf]
        %v2469 = vld [vmem:[%s921 + $0x48] sm:$0xf]
        %v2470 = vld [vmem:[%s921 + $0x4c] sm:$0xf]
        %v2471 = vld [vmem:[%s921 + $0x50] sm:$0xf]
        %v2472 = vld [vmem:[%s921 + $0x54] sm:$0xf]
        %v2473 = vld [vmem:[%s921 + $0x58] sm:$0xf]
        %v2474 = vld [vmem:[%s921 + $0x5c] sm:$0xf]
        %v2475 = vld [vmem:[%s921 + $0x60] sm:$0xf]
        %v2476 = vld [vmem:[%s921 + $0x64] sm:$0xf]
        %v2477 = vld [vmem:[%s921 + $0x68] sm:$0xf]
        %v2478 = vld [vmem:[%s921 + $0x6c] sm:$0xf]
        %v2479 = vld [vmem:[%s921 + $0x70] sm:$0xf]
        %v2480 = vld [vmem:[%s921 + $0x74] sm:$0xf]
        %v2481 = vld [vmem:[%s921 + $0x78] sm:$0xf]
        %v2482 = vld [vmem:[%s921 + $0x7c] sm:$0xf]
        %v2483 = vld [vmem:[%s1045] sm:$0x1]
        %v2485 = vlaneseq
        %v2486 = vshrl.u32 %v2485, 7
        %v2487 = vsub.s32 0, %v2486
        %v2488 = vrot.slane %v2483, %v2487
        %v2522 = vunpack.c.l.b16 %v2451
        %v2523 = vunpack.c.l.b16 %v2452
        %v2524 = vunpack.c.l.b16 %v2453
        %v2525 = vunpack.c.l.b16 %v2454
        %v2526 = vunpack.c.l.b16 %v2455
        %v2527 = vunpack.c.l.b16 %v2456
        %v2528 = vunpack.c.l.b16 %v2457
        %v2529 = vunpack.c.l.b16 %v2458
        %v2530 = vunpack.c.l.b16 %v2459
        %v2531 = vunpack.c.l.b16 %v2460
        %v2532 = vunpack.c.l.b16 %v2461
        %v2533 = vunpack.c.l.b16 %v2462
        %v2534 = vunpack.c.l.b16 %v2463
        %v2535 = vunpack.c.l.b16 %v2464
        %v2536 = vunpack.c.l.b16 %v2465
        %v2537 = vunpack.c.l.b16 %v2466
        %v2538 = vunpack.c.l.b16 %v2467
        %v2539 = vunpack.c.l.b16 %v2468
        %v2540 = vunpack.c.l.b16 %v2469
        %v2541 = vunpack.c.l.b16 %v2470
        %v2542 = vunpack.c.l.b16 %v2471
        %v2543 = vunpack.c.l.b16 %v2472
        %v2544 = vunpack.c.l.b16 %v2473
        %v2545 = vunpack.c.l.b16 %v2474
        %v2546 = vunpack.c.l.b16 %v2475
        %v2547 = vunpack.c.l.b16 %v2476
        %v2548 = vunpack.c.l.b16 %v2477
        %v2549 = vunpack.c.l.b16 %v2478
        %v2550 = vunpack.c.l.b16 %v2479
        %v2551 = vunpack.c.l.b16 %v2480
        %v2552 = vunpack.c.l.b16 %v2481
        %v2553 = vunpack.c.l.b16 %v2482
        %v2554 = vpack.c.b16 %v2523, %v2522
        %v2555 = vpack.c.b16 %v2525, %v2524
        %v2556 = vpack.c.b16 %v2527, %v2526
        %v2557 = vpack.c.b16 %v2529, %v2528
        %v2558 = vpack.c.b16 %v2531, %v2530
        %v2559 = vpack.c.b16 %v2533, %v2532
        %v2560 = vpack.c.b16 %v2535, %v2534
        %v2561 = vpack.c.b16 %v2537, %v2536
        %v2562 = vpack.c.b16 %v2539, %v2538
        %v2563 = vpack.c.b16 %v2541, %v2540
        %v2564 = vpack.c.b16 %v2543, %v2542
        %v2565 = vpack.c.b16 %v2545, %v2544
        %v2566 = vpack.c.b16 %v2547, %v2546
        %v2567 = vpack.c.b16 %v2549, %v2548
        %v2568 = vpack.c.b16 %v2551, %v2550
        %v2569 = vpack.c.b16 %v2553, %v2552
        %2586 = vmatprep.subr.bf16.mxu0 0
        %2587 = vmatpush1.bf16.msra.mxu0 %v2561
        %2588 = vmatprep.subr.bf16.mxu0 0
        %2589 = vmatpush1.bf16.msra.mxu0 %v2560
        %2590 = vmatprep.subr.bf16.mxu0 0
        %2591 = vmatpush1.bf16.msra.mxu0 %v2559
        %2592 = vmatprep.subr.bf16.mxu0 0
        %2593 = vmatpush1.bf16.msra.mxu0 %v2558
        %2594 = vmatprep.subr.bf16.mxu0 0
        %2595 = vmatpush1.bf16.msra.mxu0 %v2557
        %2596 = vmatprep.subr.bf16.mxu0 0
        %2597 = vmatpush1.bf16.msra.mxu0 %v2556
        %2598 = vmatprep.subr.bf16.mxu0 0
        %2599 = vmatpush1.bf16.msra.mxu0 %v2555
        %2600 = vmatprep.subr.bf16.mxu0 0
        %2601 = vmatpush1.bf16.msra.mxu0 %v2554
        %2602 = vmatprep.subr.bf16.mxu0 0
        %2603 = vmatpush2.bf16.msra.mxu0 %v2569
        %2604 = vmatprep.subr.bf16.mxu0 0
        %2605 = vmatpush2.bf16.msra.mxu0 %v2568
        %2606 = vmatprep.subr.bf16.mxu0 0
        %2607 = vmatpush2.bf16.msra.mxu0 %v2567
        %2608 = vmatprep.subr.bf16.mxu0 0
        %2609 = vmatpush2.bf16.msra.mxu0 %v2566
        %2610 = vmatprep.subr.bf16.mxu0 0
        %2611 = vmatpush2.bf16.msra.mxu0 %v2565
        %2612 = vmatprep.subr.bf16.mxu0 0
        %2613 = vmatpush2.bf16.msra.mxu0 %v2564
        %2614 = vmatprep.subr.bf16.mxu0 0
        %2615 = vmatpush2.bf16.msra.mxu0 %v2563
        %2616 = vmatprep.subr.bf16.mxu0 0
        %2617 = vmatpush2.bf16.msra.mxu0 %v2562
        %2618 = vmatprep.mubr.bf16.mxu0 %v2448
        %2619 = vmatmul.mubr.bf16.gmra.mxu0 %v2447
        %v2620 = vpop.f32.mrf.mxu0
        %v2621 = vadd.f32 %v2488, %v2620
        %v2622 = vpop.f32.mrf.mxu0
        %v2623 = vpop.f32.mrf.mxu0
        %v2624 = vadd.f32 %v2488, %v2623
        %v2625 = vpop.f32.mrf.mxu0
        %2626 = vmatprep.mubr.bf16.mxu0 %v2450
        %2627 = vmatmul.mubr.bf16.gmra.mxu0 %v2449
        %v2628 = vpop.f32.mrf.mxu0
        %v2629 = vadd.f32 %v2488, %v2628
        %v2630 = vpop.f32.mrf.mxu0
        %v2631 = vpop.f32.mrf.mxu0
        %v2632 = vadd.f32 %v2488, %v2631
        %v2633 = vpop.f32.mrf.mxu0
        %2634 = vdwg.mxu0
        %v2635 = vadd.f32 %v2206, %v2621
        %v2636 = vadd.f32 %v2207, %v2624
        %v2637 = vadd.f32 %v2208, %v2629
        %v2638 = vadd.f32 %v2209, %v2632
        %2639 = vst [vmem:[#allocation2] sm:$0xff] %v2635
        %2640 = vst [vmem:[#allocation2 + $0x8] sm:$0xff] %v2636
        %2641 = vst [vmem:[#allocation2 + $0x10] sm:$0xff] %v2637
        %2642 = vst [vmem:[#allocation2 + $0x18] sm:$0xff] %v2638
        %p2643 = scmp.eq.s32.totalorder %s47, 1
        // Predicated region
        $region161: #{tpu_custom_call.1} parent=107 // pred_check
          %p2644 = pneg %p2643
        $region162: #{tpu_custom_call.1} parent=107 // pred_check_branch
          %2646 = sbr.rel (%p2644) target = $region164
        $region163: #{tpu_custom_call.1} parent=107 // pred_region
          %v2647 = vld [vmem:[%s19] sm:$0x1]
          %v2648 = vld [vmem:[%s20] sm:$0x1]
          %2649 = vadd.xlane.f32.xlu0 %v2635
          %v2650 = vpop.xlane.xlu0 %2649
          %2651 = vadd.xlane.f32.xlu0 %v2636
          %v2652 = vpop.xlane.xlu0 %2651
          %2653 = vadd.xlane.f32.xlu0 %v2637
          %v2654 = vpop.xlane.xlu0 %2653
          %2655 = vadd.xlane.f32.xlu0 %v2638
          %v2656 = vpop.xlane.xlu0 %2655
          %v2657 = vmul.f32 %v2650, %v1118
          %v2658 = vmul.f32 %v2652, %v1118
          %v2659 = vmul.f32 %v2654, %v1118
          %v2660 = vmul.f32 %v2656, %v1118
          %v2661 = vsub.f32 %v2635, %v2657
          %v2662 = vsub.f32 %v2636, %v2658
          %v2663 = vsub.f32 %v2637, %v2659
          %v2664 = vsub.f32 %v2638, %v2660
          %v2665 = vmul.f32 %v2661, %v2661
          %v2666 = vmul.f32 %v2662, %v2662
          %v2667 = vmul.f32 %v2663, %v2663
          %v2668 = vmul.f32 %v2664, %v2664
          %2669 = vadd.xlane.f32.xlu0 %v2665
          %v2670 = vpop.xlane.xlu0 %2669
          %2671 = vadd.xlane.f32.xlu0 %v2666
          %v2672 = vpop.xlane.xlu0 %2671
          %2673 = vadd.xlane.f32.xlu0 %v2667
          %v2674 = vpop.xlane.xlu0 %2673
          %2675 = vadd.xlane.f32.xlu0 %v2668
          %v2676 = vpop.xlane.xlu0 %2675
          %v2677 = vmul.f32 %v2670, %v1118
          %v2678 = vmul.f32 %v2672, %v1118
          %v2679 = vmul.f32 %v2674, %v1118
          %v2680 = vmul.f32 %v2676, %v1118
          %v2681 = vadd.f32 %v2677, 1e-05
          %v2682 = vadd.f32 %v2678, 1e-05
          %v2683 = vadd.f32 %v2679, 1e-05
          %v2684 = vadd.f32 %v2680, 1e-05
          %v2685 = vrsqrt.pop %v2681
          %v2686 = vrsqrt.pop %v2682
          %v2687 = vrsqrt.pop %v2683
          %v2688 = vrsqrt.pop %v2684
          %v2689 = vmul.f32 %v2661, %v2685
          %v2690 = vmul.f32 %v2662, %v2686
          %v2691 = vmul.f32 %v2663, %v2687
          %v2692 = vmul.f32 %v2664, %v2688
          %v2694 = vlaneseq
          %v2695 = vshrl.u32 %v2694, 7
          %v2696 = vsub.s32 0, %v2695
          %v2697 = vrot.slane %v2647, %v2696
          %v2699 = vmul.f32 %v2689, %v2697
          %v2700 = vmul.f32 %v2690, %v2697
          %v2701 = vmul.f32 %v2691, %v2697
          %v2702 = vmul.f32 %v2692, %v2697
          %v2704 = vlaneseq
          %v2705 = vshrl.u32 %v2704, 7
          %v2706 = vsub.s32 0, %v2705
          %v2707 = vrot.slane %v2648, %v2706
          %v2709 = vadd.f32 %v2699, %v2707
          %v2710 = vadd.f32 %v2700, %v2707
          %v2711 = vadd.f32 %v2701, %v2707
          %v2712 = vadd.f32 %v2702, %v2707
          %v2713 = vpack.c.bf16 %v2710, %v2709
          %v2714 = vpack.c.bf16 %v2712, %v2711
          %v2715 = vld [vmem:[#allocation21] sm:$0xff]
          %v2716 = vld [vmem:[#allocation21 + $0x8] sm:$0xff]
          %v2717 = vld [vmem:[#allocation21 + $0x10] sm:$0xff]
          %v2718 = vld [vmem:[#allocation21 + $0x18] sm:$0xff]
          %v2719 = vld [vmem:[#allocation21 + $0x20] sm:$0xff]
          %v2720 = vld [vmem:[#allocation21 + $0x28] sm:$0xff]
          %v2721 = vld [vmem:[#allocation21 + $0x30] sm:$0xff]
          %v2722 = vld [vmem:[#allocation21 + $0x38] sm:$0xff]
          %v2723 = vld [vmem:[#allocation21 + $0x40] sm:$0xff]
          %v2724 = vld [vmem:[#allocation21 + $0x48] sm:$0xff]
          %v2725 = vld [vmem:[#allocation21 + $0x50] sm:$0xff]
          %v2726 = vld [vmem:[#allocation21 + $0x58] sm:$0xff]
          %v2727 = vld [vmem:[#allocation21 + $0x60] sm:$0xff]
          %v2728 = vld [vmem:[#allocation21 + $0x68] sm:$0xff]
          %v2729 = vld [vmem:[#allocation21 + $0x70] sm:$0xff]
          %v2730 = vld [vmem:[#allocation21 + $0x78] sm:$0xff]
          %v2747 = vunpack.c.l.b16 %v2715
          %v2748 = vunpack.c.h.b16 %v2715
          %v2749 = vunpack.c.l.b16 %v2716
          %v2750 = vunpack.c.h.b16 %v2716
          %v2751 = vunpack.c.l.b16 %v2717
          %v2752 = vunpack.c.h.b16 %v2717
          %v2753 = vunpack.c.l.b16 %v2718
          %v2754 = vunpack.c.h.b16 %v2718
          %v2755 = vunpack.c.l.b16 %v2719
          %v2756 = vunpack.c.h.b16 %v2719
          %v2757 = vunpack.c.l.b16 %v2720
          %v2758 = vunpack.c.h.b16 %v2720
          %v2759 = vunpack.c.l.b16 %v2721
          %v2760 = vunpack.c.h.b16 %v2721
          %v2761 = vunpack.c.l.b16 %v2722
          %v2762 = vunpack.c.h.b16 %v2722
          %v2763 = vunpack.c.l.b16 %v2723
          %v2764 = vunpack.c.h.b16 %v2723
          %v2765 = vunpack.c.l.b16 %v2724
          %v2766 = vunpack.c.h.b16 %v2724
          %v2767 = vunpack.c.l.b16 %v2725
          %v2768 = vunpack.c.h.b16 %v2725
          %v2769 = vunpack.c.l.b16 %v2726
          %v2770 = vunpack.c.h.b16 %v2726
          %v2771 = vunpack.c.l.b16 %v2727
          %v2772 = vunpack.c.h.b16 %v2727
          %v2773 = vunpack.c.l.b16 %v2728
          %v2774 = vunpack.c.h.b16 %v2728
          %v2775 = vunpack.c.l.b16 %v2729
          %v2776 = vunpack.c.h.b16 %v2729
          %v2777 = vunpack.c.l.b16 %v2730
          %v2778 = vunpack.c.h.b16 %v2730
          %v2779 = vpack.c.b16 %v2749, %v2747
          %v2780 = vpack.c.b16 %v2750, %v2748
          %v2781 = vpack.c.b16 %v2753, %v2751
          %v2782 = vpack.c.b16 %v2754, %v2752
          %v2783 = vpack.c.b16 %v2757, %v2755
          %v2784 = vpack.c.b16 %v2758, %v2756
          %v2785 = vpack.c.b16 %v2761, %v2759
          %v2786 = vpack.c.b16 %v2762, %v2760
          %v2787 = vpack.c.b16 %v2765, %v2763
          %v2788 = vpack.c.b16 %v2766, %v2764
          %v2789 = vpack.c.b16 %v2769, %v2767
          %v2790 = vpack.c.b16 %v2770, %v2768
          %v2791 = vpack.c.b16 %v2773, %v2771
          %v2792 = vpack.c.b16 %v2774, %v2772
          %v2793 = vpack.c.b16 %v2777, %v2775
          %v2794 = vpack.c.b16 %v2778, %v2776
          %2811 = vmatprep.subr.bf16.mxu0 %v2794
          %2812 = vmatpush1.bf16.msra.mxu0 %v2793
          %2813 = vmatprep.subr.bf16.mxu0 %v2792
          %2814 = vmatpush1.bf16.msra.mxu0 %v2791
          %2815 = vmatprep.subr.bf16.mxu0 %v2790
          %2816 = vmatpush1.bf16.msra.mxu0 %v2789
          %2817 = vmatprep.subr.bf16.mxu0 %v2788
          %2818 = vmatpush1.bf16.msra.mxu0 %v2787
          %2819 = vmatprep.subr.bf16.mxu0 %v2786
          %2820 = vmatpush1.bf16.msra.mxu0 %v2785
          %2821 = vmatprep.subr.bf16.mxu0 %v2784
          %2822 = vmatpush1.bf16.msra.mxu0 %v2783
          %2823 = vmatprep.subr.bf16.mxu0 %v2782
          %2824 = vmatpush1.bf16.msra.mxu0 %v2781
          %2825 = vmatprep.subr.bf16.mxu0 %v2780
          %2826 = vmatpush1.bf16.msra.mxu0 %v2779
          %2827 = vmatprep.subr.bf16.mxu0 0
          %2828 = vmatpush2.bf16.msra.mxu0 0
          %2829 = vmatprep.subr.bf16.mxu0 0
          %2830 = vmatpush2.bf16.msra.mxu0 0
          %2831 = vmatprep.subr.bf16.mxu0 0
          %2832 = vmatpush2.bf16.msra.mxu0 0
          %2833 = vmatprep.subr.bf16.mxu0 0
          %2834 = vmatpush2.bf16.msra.mxu0 0
          %2835 = vmatprep.subr.bf16.mxu0 0
          %2836 = vmatpush2.bf16.msra.mxu0 0
          %2837 = vmatprep.subr.bf16.mxu0 0
          %2838 = vmatpush2.bf16.msra.mxu0 0
          %2839 = vmatprep.subr.bf16.mxu0 0
          %2840 = vmatpush2.bf16.msra.mxu0 0
          %2841 = vmatprep.subr.bf16.mxu0 0
          %2842 = vmatpush2.bf16.msra.mxu0 0
          %2843 = vmatprep.mubr.bf16.mxu0 0
          %2844 = vmatmul.mubr.bf16.gmra.mxu0 %v2713
          %v2845 = vpop.f32.mrf.mxu0
          %v2846 = vadd.f32 0.0, %v2845
          %v2847 = vpop.f32.mrf.mxu0
          %v2848 = vadd.f32 0.0, %v2847
          %v2849 = vpop.f32.mrf.mxu0
          %v2850 = vadd.f32 0.0, %v2849
          %v2851 = vpop.f32.mrf.mxu0
          %v2852 = vadd.f32 0.0, %v2851
          %2853 = vmatprep.mubr.bf16.mxu0 0
          %2854 = vmatmul.mubr.bf16.gmra.mxu0 %v2714
          %v2855 = vpop.f32.mrf.mxu0
          %v2856 = vadd.f32 0.0, %v2855
          %v2857 = vpop.f32.mrf.mxu0
          %v2858 = vadd.f32 0.0, %v2857
          %v2859 = vpop.f32.mrf.mxu0
          %v2860 = vadd.f32 0.0, %v2859
          %v2861 = vpop.f32.mrf.mxu0
          %v2862 = vadd.f32 0.0, %v2861
          %2863 = vdwg.mxu0
          %v2864 = vld [vmem:[%s6] sm:$0xff]
          %v2865 = vld [vmem:[%s6 + $0x8] sm:$0xff]
          %v2866 = vld [vmem:[%s6 + $0x10] sm:$0xff]
          %v2867 = vld [vmem:[%s6 + $0x18] sm:$0xff]
          %v2868 = vmax.f32 %v2846, %v2848
          %2869 = vmax.xlane.f32.xlu0 %v2868
          %v2870 = vpop.xlane.xlu0 %2869
          %v2871 = vmax.f32 %v2850, %v2852
          %2872 = vmax.xlane.f32.xlu0 %v2871
          %v2873 = vpop.xlane.xlu0 %2872
          %v2874 = vmax.f32 %v2856, %v2858
          %2875 = vmax.xlane.f32.xlu0 %v2874
          %v2876 = vpop.xlane.xlu0 %2875
          %v2877 = vmax.f32 %v2860, %v2862
          %2878 = vmax.xlane.f32.xlu0 %v2877
          %v2879 = vpop.xlane.xlu0 %2878
          %v2880 = vsub.f32 %v2846, %v2870
          %v2881 = vsub.f32 %v2848, %v2870
          %v2882 = vsub.f32 %v2850, %v2873
          %v2883 = vsub.f32 %v2852, %v2873
          %v2884 = vsub.f32 %v2856, %v2876
          %v2885 = vsub.f32 %v2858, %v2876
          %v2886 = vsub.f32 %v2860, %v2879
          %v2887 = vsub.f32 %v2862, %v2879
          %v2888 = vmul.f32 %v2880, 1.442695
          %v2889 = vpow.pop %v2888
          %v2890 = vmul.f32 %v2881, 1.442695
          %v2891 = vpow.pop %v2890
          %v2892 = vmul.f32 %v2882, 1.442695
          %v2893 = vpow.pop %v2892
          %v2894 = vmul.f32 %v2883, 1.442695
          %v2895 = vpow.pop %v2894
          %v2896 = vmul.f32 %v2884, 1.442695
          %v2897 = vpow.pop %v2896
          %v2898 = vmul.f32 %v2885, 1.442695
          %v2899 = vpow.pop %v2898
          %v2900 = vmul.f32 %v2886, 1.442695
          %v2901 = vpow.pop %v2900
          %v2902 = vmul.f32 %v2887, 1.442695
          %v2903 = vpow.pop %v2902
          %v2904 = vadd.f32 %v2889, %v2891
          %2905 = vadd.xlane.f32.xlu0 %v2904
          %v2906 = vpop.xlane.xlu0 %2905
          %v2907 = vadd.f32 %v2893, %v2895
          %2908 = vadd.xlane.f32.xlu0 %v2907
          %v2909 = vpop.xlane.xlu0 %2908
          %v2910 = vadd.f32 %v2897, %v2899
          %2911 = vadd.xlane.f32.xlu0 %v2910
          %v2912 = vpop.xlane.xlu0 %2911
          %v2913 = vadd.f32 %v2901, %v2903
          %2914 = vadd.xlane.f32.xlu0 %v2913
          %v2915 = vpop.xlane.xlu0 %2914
          %v2916 = vlog2.pop %v2906
          %v2917 = vmul.f32 %v2916, 0.6931472
          %v2918 = vlog2.pop %v2909
          %v2919 = vmul.f32 %v2918, 0.6931472
          %v2920 = vlog2.pop %v2912
          %v2921 = vmul.f32 %v2920, 0.6931472
          %v2922 = vlog2.pop %v2915
          %v2923 = vmul.f32 %v2922, 0.6931472
          %v2924 = vadd.f32 %v2870, %v2917
          %v2925 = vadd.f32 %v2873, %v2919
          %v2926 = vadd.f32 %v2876, %v2921
          %v2927 = vadd.f32 %v2879, %v2923
          %v2928 = vlaneseq
          %v2929 = vand.u32 %v2928, 127
          %v2930 = vadd.s32 %v2929, 128
          %2931 = vset.pattern.permute.xlu0 0
          %2932 = vperm.xlu0 %2931, %v2864
          %v2933 = vpop.permute.xlu0 %2932
          %2934 = vset.pattern.permute.xlu0 0
          %2935 = vperm.xlu0 %2934, %v2865
          %v2936 = vpop.permute.xlu0 %2935
          %2937 = vset.pattern.permute.xlu0 0
          %2938 = vperm.xlu0 %2937, %v2866
          %v2939 = vpop.permute.xlu0 %2938
          %2940 = vset.pattern.permute.xlu0 0
          %2941 = vperm.xlu0 %2940, %v2867
          %v2942 = vpop.permute.xlu0 %2941
          %vm2943 = vcmp.eq.s32.totalorder %v2929, %v2933
          %vm2944 = vcmp.eq.s32.totalorder %v2930, %v2933
          %vm2945 = vcmp.eq.s32.totalorder %v2929, %v2936
          %vm2946 = vcmp.eq.s32.totalorder %v2930, %v2936
          %vm2947 = vcmp.eq.s32.totalorder %v2929, %v2939
          %vm2948 = vcmp.eq.s32.totalorder %v2930, %v2939
          %vm2949 = vcmp.eq.s32.totalorder %v2929, %v2942
          %vm2950 = vcmp.eq.s32.totalorder %v2930, %v2942
          %v2951 = vsel %vm2943, 1, 0
          %v2952 = vsel %vm2944, 1, 0
          %v2953 = vsel %vm2945, 1, 0
          %v2954 = vsel %vm2946, 1, 0
          %v2955 = vsel %vm2947, 1, 0
          %v2956 = vsel %vm2948, 1, 0
          %v2957 = vsel %vm2949, 1, 0
          %v2958 = vsel %vm2950, 1, 0
          %v2959 = vcvt.s32.f32 %v2951
          %v2960 = vcvt.s32.f32 %v2952
          %v2961 = vcvt.s32.f32 %v2953
          %v2962 = vcvt.s32.f32 %v2954
          %v2963 = vcvt.s32.f32 %v2955
          %v2964 = vcvt.s32.f32 %v2956
          %v2965 = vcvt.s32.f32 %v2957
          %v2966 = vcvt.s32.f32 %v2958
          %v2967 = vmul.f32 %v2846, %v2959
          %v2968 = vmul.f32 %v2848, %v2960
          %v2969 = vmul.f32 %v2850, %v2961
          %v2970 = vmul.f32 %v2852, %v2962
          %v2971 = vmul.f32 %v2856, %v2963
          %v2972 = vmul.f32 %v2858, %v2964
          %v2973 = vmul.f32 %v2860, %v2965
          %v2974 = vmul.f32 %v2862, %v2966
          %v2975 = vadd.f32 %v2967, %v2968
          %2976 = vadd.xlane.f32.xlu0 %v2975
          %v2977 = vpop.xlane.xlu0 %2976
          %v2978 = vadd.f32 %v2969, %v2970
          %2979 = vadd.xlane.f32.xlu0 %v2978
          %v2980 = vpop.xlane.xlu0 %2979
          %v2981 = vadd.f32 %v2971, %v2972
          %2982 = vadd.xlane.f32.xlu0 %v2981
          %v2983 = vpop.xlane.xlu0 %2982
          %v2984 = vadd.f32 %v2973, %v2974
          %2985 = vadd.xlane.f32.xlu0 %v2984
          %v2986 = vpop.xlane.xlu0 %2985
          %vm2987 = vcmp.ne.s32.totalorder %v2864, 4294967196
          %vm2988 = vcmp.ne.s32.totalorder %v2865, 4294967196
          %vm2989 = vcmp.ne.s32.totalorder %v2866, 4294967196
          %vm2990 = vcmp.ne.s32.totalorder %v2867, 4294967196
          %v2991 = vsel %vm2987, 1, 0
          %v2992 = vsel %vm2988, 1, 0
          %v2993 = vsel %vm2989, 1, 0
          %v2994 = vsel %vm2990, 1, 0
          %v2995 = vcvt.s32.f32 %v2991
          %v2996 = vcvt.s32.f32 %v2992
          %v2997 = vcvt.s32.f32 %v2993
          %v2998 = vcvt.s32.f32 %v2994
          %v2999 = vsub.f32 %v2924, %v2977
          %v3000 = vsub.f32 %v2925, %v2980
          %v3001 = vsub.f32 %v2926, %v2983
          %v3002 = vsub.f32 %v2927, %v2986
          %v3003 = vmul.f32 %v2999, %v2995
          %v3004 = vmul.f32 %v3000, %v2996
          %v3005 = vmul.f32 %v3001, %v2997
          %v3006 = vmul.f32 %v3002, %v2998
          %vm3007 = vcmask 7168
          %v3008 = vsel %vm3007, %v3003, 0.0
          %v3009 = vsel %vm3007, %v3004, 0.0
          %v3010 = vadd.f32 %v3008, %v3009
          %v3011 = vsel %vm3007, %v3005, 0.0
          %v3012 = vadd.f32 %v3010, %v3011
          %v3013 = vsel %vm3007, %v3006, 0.0
          %v3014 = vadd.f32 %v3012, %v3013
          %3015 = vadd.xlane.f32.xlu0 %v3014
          %v3016 = vpop.xlane.xlu0 %3015
          %v3017 = vrot.slane %v3016, 4
          %v3018 = vadd.f32 %v3016, %v3017
          %v3019 = vrot.slane %v3018, 2
          %v3020 = vadd.f32 %v3018, %v3019
          %v3021 = vrot.slane %v3020, 1
          %v3022 = vadd.f32 %v3020, %v3021
          %s3023 = vtos %v3022
          %v3024 = vstv %s3023
          %v3025 = vsel %vm3007, %v2995, 0.0
          %v3026 = vsel %vm3007, %v2996, 0.0
          %v3027 = vadd.f32 %v3025, %v3026
          %v3028 = vsel %vm3007, %v2997, 0.0
          %v3029 = vadd.f32 %v3027, %v3028
          %v3030 = vsel %vm3007, %v2998, 0.0
          %v3031 = vadd.f32 %v3029, %v3030
          %3032 = vadd.xlane.f32.xlu0 %v3031
          %v3033 = vpop.xlane.xlu0 %3032
          %v3034 = vrot.slane %v3033, 4
          %v3035 = vadd.f32 %v3033, %v3034
          %v3036 = vrot.slane %v3035, 2
          %v3037 = vadd.f32 %v3035, %v3036
          %v3038 = vrot.slane %v3037, 1
          %v3039 = vadd.f32 %v3037, %v3038
          %s3040 = vtos %v3039
          %v3041 = vstv %s3040
          %v3042 = vmax.f32 %v3041, 1.0
          %v3043 = vrcp.pop %v3042
          %v3044 = vmul.f32 %v3024, %v3043
          %vm3045 = vcmask 0
          %3046 = vst.msk [vmem:[#allocation23] sm:$0x1] %vm3045, %v3044
        $region164: #{tpu_custom_call.1} parent=107 // pred_fallthru
          _
        // Predicated region
        $region165: #{tpu_custom_call.1} parent=107 // pred_check
          %p3047 = pneg %p582
        $region166: #{tpu_custom_call.1} parent=107 // pred_check_branch
          %3049 = sbr.rel (%p3047) target = $region168
        $region167: #{tpu_custom_call.1} parent=107 // pred_region
          %s3051 = ssub.s32 16, 16
          %3052 = vsyncadd [#allocation5], %s3051
          %s3054 = sshll.u32 [#allocation23], 4
          %s3055 = int_to_ptr.vmem [resolvable:$true] %s3054
          %3057 = dma.vmem_to_hbm [thread:$0]  %s3055, 16, %s22, [#allocation5]
        $region168: #{tpu_custom_call.1} parent=107 // pred_fallthru
          _
        // Predicated region
        $region169: #{tpu_custom_call.1} parent=107 // pred_check
          %p3058 = pneg %p582
        $region170: #{tpu_custom_call.1} parent=107 // pred_check_branch
          %3060 = sbr.rel (%p3058) target = $region172
        $region171: #{tpu_custom_call.1} parent=107 // pred_region
          %3061 = dma.done [#allocation5], 16
        $region172: #{tpu_custom_call.1} parent=107 // pred_fallthru
          _
      $region108: #{tpu_custom_call.1} parent=5 // pred_fallthru
        _
      %p3062 = scmp.le.s32.totalorder 2, %s42
      // Predicated region
      $region173: #{tpu_custom_call.1} parent=5 // pred_check
        %p3063 = pneg %p3062
      $region174: #{tpu_custom_call.1} parent=5 // pred_check_branch
        %3065 = sbr.rel (%p3063) target = $region176
      $region175: #{tpu_custom_call.1} parent=5 // pred_region
        %s3066 = ssub.s32 %s42, 2
      $region176: #{tpu_custom_call.1} parent=5 // pred_fallthru
        _
    $region6: #{tpu_custom_call.1} parent=1 // loop_footer
      %s46 = sadd.s32 1, %s42
    $region7: #{tpu_custom_call.1} parent=1 // loop_footer_branch
      %41 = sbr.rel target = $region3
    $region8: #{tpu_custom_call.1} parent=1 // loop_exit
      _
    %3067 = vsyncpa [#allocation4], 1
    %s3068 = scalar_lea.sflag [#allocation4], 1
    %3069 = vsyncpa %s3068, 1
    %3070 = vsyncpa [#allocation7], 1
    %3071 = vsyncpa [#allocation10], 1
    %3072 = vsyncpa [#allocation13], 1
    %s3073 = scalar_lea.sflag [#allocation13], 1
    %3074 = vsyncpa %s3073, 1
    %3075 = vsyncpa [#allocation16], 1
    %s3076 = scalar_lea.sflag [#allocation16], 1
    %3077 = vsyncpa %s3076, 1
    %3078 = vsyncpa [#allocation19], 1
    %s3079 = scalar_lea.sflag [#allocation19], 1
    %3080 = vsyncpa %s3079, 1
    %3081 = vsyncpa [#allocation22], 1
    %3082 = vsyncpa [#allocation5], 1
    %s3083 = scalar_lea.sflag [#allocation5], 1
    %3084 = vsyncpa %s3083, 1

</llo_original>
